<compile_context>
chip_gen: v7x
topology: tpu7x:2x2x1
jax: 0.10.0
libtpu: 0.0.40
codegen_flags: <defaults>
</compile_context>

<pallas_src>
import functools
import math

import jax
import jax.numpy as jnp
from jax.experimental import pallas as pl
from jax.experimental.pallas import tpu as pltpu

IN_DIM = 2048   # intermediate size (input to dense)
OUT_DIM = 512   # hidden size (dense output / LayerNorm dim)
LN_EPS = 1e-12


def _bert_output_kernel(*refs, res: bool, eps: float):
    if res:
        x_ref, w_ref, b_ref, g_ref, beta_ref, res_ref, o_ref = refs
    else:
        x_ref, w_ref, b_ref, g_ref, beta_ref, o_ref = refs
        res_ref = None

    # In-kernel bf16 cast of the activations (VPU work hidden under the MXU); the
    # weight is already bf16 and VMEM-resident.
    x_bf = x_ref[...].astype(jnp.bfloat16)
    acc = jnp.dot(x_bf, w_ref[...], preferred_element_type=jnp.float32)
    acc = acc + b_ref[...].astype(jnp.float32)

    # TODO(synk): nn.Dropout(0.1) is identity at inference; training-mode RNG masking
    # (pltpu.prng_seed / prng_random_bits) is not implemented here.
    if res:
        acc = acc + res_ref[...].astype(jnp.float32)

    # BertLayerNorm: biased variance over the last dim, epsilon inside the sqrt; f32.
    u = jnp.mean(acc, axis=-1, keepdims=True)
    xc = acc - u
    s = jnp.mean(xc * xc, axis=-1, keepdims=True)
    y = xc * jax.lax.rsqrt(s + eps)
    y = g_ref[...].astype(jnp.float32) * y + beta_ref[...].astype(jnp.float32)
    o_ref[...] = y.astype(o_ref.dtype)


def _round_up(x, m):
    return ((x + m - 1) // m) * m


def _pick_row_tile(M):
    """Row tile: multiple of 16, <= 512, and >= 2 grid steps whenever M >= 32."""
    if M < 32:
        return _round_up(M, 16)
    if M <= 512:
        return _round_up(pl.cdiv(M, 2), 16)
    return 512


def bert_output(hidden_states, input_tensor, weight_t, bias, ln_weight, ln_bias,
                *, res=True, tm=None, out_dtype=jnp.bfloat16):
    """Fused BertOutput forward (inference).

    hidden_states: (..., 2048)  output of BertIntermediate (any float dtype)
    input_tensor:  (..., 512)   residual branch (may be None when res=False)
    weight_t:      (2048, 512)  transpose of PyTorch nn.Linear(2048, 512).weight
    bias:          (512,)
    ln_weight/ln_bias: (512,)   BertLayerNorm parameters
    out_dtype:     dtype of the stored output (bf16 by default to halve writeback;
                   LayerNorm math itself stays f32)
    """
    orig_lead = hidden_states.shape[:-1]
    x = hidden_states.reshape(-1, IN_DIM)
    M = x.shape[0]

    if tm is None:
        tm = _pick_row_tile(M)
    tm = _round_up(tm, 16)
    grid_m = pl.cdiv(M, tm)  # ragged tail handled by Pallas masking (no pad / slice)

    # One-time (tiny) parameter casts; weight is bf16 for the MXU.
    w_bf = weight_t.astype(jnp.bfloat16)
    b2d = bias.reshape(1, OUT_DIM).astype(jnp.float32)
    g2d = ln_weight.reshape(1, OUT_DIM).astype(jnp.float32)
    beta2d = ln_bias.reshape(1, OUT_DIM).astype(jnp.float32)

    in_specs = [
        pl.BlockSpec((tm, IN_DIM), lambda i: (i, 0)),        # activations (native dtype)
        pl.BlockSpec((IN_DIM, OUT_DIM), lambda i: (0, 0)),   # weight, resident in VMEM
        pl.BlockSpec((1, OUT_DIM), lambda i: (0, 0)),        # dense bias
        pl.BlockSpec((1, OUT_DIM), lambda i: (0, 0)),        # LN gamma
        pl.BlockSpec((1, OUT_DIM), lambda i: (0, 0)),        # LN beta
    ]
    args = [x, w_bf, b2d, g2d, beta2d]
    if res:
        # Residual is only DMA'd when it is actually used.
        r = input_tensor.reshape(-1, OUT_DIM)
        in_specs.append(pl.BlockSpec((tm, OUT_DIM), lambda i: (i, 0)))
        args.append(r)

    kernel = functools.partial(_bert_output_kernel, res=res, eps=LN_EPS)

    out = pl.pallas_call(
        kernel,
        out_shape=jax.ShapeDtypeStruct((M, OUT_DIM), out_dtype),
        grid_spec=pltpu.PrefetchScalarGridSpec(
            num_scalar_prefetch=0,
            grid=(grid_m,),
            in_specs=in_specs,
            out_specs=pl.BlockSpec((tm, OUT_DIM), lambda i: (i, 0)),
        ),
        compiler_params=pltpu.CompilerParams(
            dimension_semantics=("parallel",),
            # Comfortable for tm<=512 on all generations; raise (cap ~48-56 MiB on
            # v7x's 64 MiB VMEM) only if tm is pushed past 1024.
            vmem_limit_bytes=32 * 1024 * 1024,
        ),
    )(*args)

    return out.reshape(*orig_lead, OUT_DIM)


def init_params(key):
    """Deterministic synthetic params matching nn.Linear(2048, 512) + BertLayerNorm(512)."""
    kw, kb = jax.random.split(key)
    bound = 1.0 / math.sqrt(IN_DIM)  # PyTorch default uniform init bound
    # PyTorch weight shape (512, 2048); store transposed (2048, 512) for the kernel.
    weight = jax.random.uniform(kw, (OUT_DIM, IN_DIM), jnp.float32, -bound, bound)
    bias = jax.random.uniform(kb, (OUT_DIM,), jnp.float32, -bound, bound)
    ln_weight = jnp.ones((OUT_DIM,), jnp.float32)
    ln_bias = jnp.zeros((OUT_DIM,), jnp.float32)
    return weight.T, bias, ln_weight, ln_bias


def _reference(hidden_states, input_tensor, weight_t, bias, ln_weight, ln_bias, res):
    # Pure-JAX reference with the same bf16 matmul inputs (f32 accumulation) so the
    # comparison matches the kernel's intentional inference-precision choice.
    x = hidden_states.astype(jnp.bfloat16).astype(jnp.float32)
    w = weight_t.astype(jnp.bfloat16).astype(jnp.float32)
    h = jnp.einsum("bsk,kn->bsn", x, w) + bias
    if res:
        h = h + input_tensor
    u = h.mean(-1, keepdims=True)
    s = ((h - u) ** 2).mean(-1, keepdims=True)
    return ln_weight * ((h - u) / jnp.sqrt(s + LN_EPS)) + ln_bias


if __name__ == "__main__":
    key = jax.random.PRNGKey(0)
    kx, kr, kp = jax.random.split(key, 3)

    batch, seq = 2, 8
    hidden_states = jax.random.normal(kx, (batch, seq, IN_DIM), jnp.float32)
    input_tensor = jax.random.normal(kr, (batch, seq, OUT_DIM), jnp.float32)
    weight_t, bias, ln_weight, ln_bias = init_params(kp)

    # Residual path (res=True).
    out = bert_output(hidden_states, input_tensor, weight_t, bias, ln_weight, ln_bias,
                      res=True)
    out = jax.block_until_ready(out)
    ref = _reference(hidden_states, input_tensor, weight_t, bias, ln_weight, ln_bias, True)
    assert out.shape == (batch, seq, OUT_DIM)
    assert out.dtype == jnp.bfloat16
    assert jnp.allclose(out.astype(jnp.float32), ref, atol=2e-2, rtol=2e-2)

    # No-residual path (res=False): residual is neither passed nor DMA'd.
    out_nr = bert_output(hidden_states, None, weight_t, bias, ln_weight, ln_bias,
                         res=False)
    out_nr = jax.block_until_ready(out_nr)
    ref_nr = _reference(hidden_states, input_tensor, weight_t, bias, ln_weight, ln_bias, False)
    assert out_nr.shape == (batch, seq, OUT_DIM)
    assert jnp.allclose(out_nr.astype(jnp.float32), ref_nr, atol=2e-2, rtol=2e-2)

    print("KERNEL_OK")
</pallas_src>

<mosaic_0001>
module attributes {stable_mosaic.version = 11 : i64} {
  func.func @_bert_output_kernel(%arg0: i32, %arg1: memref<16x2048xf32, #tpu.memory_space<vmem>>, %arg2: memref<2048x512xbf16, #tpu.memory_space<vmem>>, %arg3: memref<1x512xf32, #tpu.memory_space<vmem>>, %arg4: memref<1x512xf32, #tpu.memory_space<vmem>>, %arg5: memref<1x512xf32, #tpu.memory_space<vmem>>, %arg6: memref<16x512xf32, #tpu.memory_space<vmem>>, %arg7: memref<16x512xbf16, #tpu.memory_space<vmem>>) attributes {dimension_semantics = [#tpu.dimension_semantics<parallel>], iteration_bounds = array<i64: 1>, scalar_prefetch = 0 : i64, scratch_operands = 0 : i64, tpu.core_type = #tpu.core_type<tc>, window_params = [{transform_indices = @transform_0, window_bounds = array<i64: 16, 2048>}, {pipeline_mode = #tpu.pipeline_mode<synchronous>, transform_indices = @transform_1, window_bounds = array<i64: 2048, 512>}, {pipeline_mode = #tpu.pipeline_mode<synchronous>, transform_indices = @transform_2, window_bounds = array<i64: 1, 512>}, {pipeline_mode = #tpu.pipeline_mode<synchronous>, transform_indices = @transform_3, window_bounds = array<i64: 1, 512>}, {pipeline_mode = #tpu.pipeline_mode<synchronous>, transform_indices = @transform_4, window_bounds = array<i64: 1, 512>}, {transform_indices = @transform_5, window_bounds = array<i64: 16, 512>}, {transform_indices = @transform_6, window_bounds = array<i64: 16, 512>}]} {
    %c0 = arith.constant 0 : index
    %c0_0 = arith.constant 0 : index
    %0 = vector.load %arg1[%c0, %c0_0] : memref<16x2048xf32, #tpu.memory_space<vmem>>, vector<16x2048xf32>
    %1 = arith.truncf %0 : vector<16x2048xf32> to vector<16x2048xbf16>
    %c0_1 = arith.constant 0 : index
    %c0_2 = arith.constant 0 : index
    %2 = vector.load %arg2[%c0_1, %c0_2] : memref<2048x512xbf16, #tpu.memory_space<vmem>>, vector<2048x512xbf16>
    %cst = arith.constant dense<0.000000e+00> : vector<16x512xf32>
    %3 = tpu.matmul %1, %2, %cst {dimension_numbers = #tpu.dot_dimension_numbers<[1], [0], [0], [1], [0, 0, 1, 1], [], []>} : vector<16x2048xbf16>, vector<2048x512xbf16>, vector<16x512xf32> -> vector<16x512xf32>
    %c0_3 = arith.constant 0 : index
    %c0_4 = arith.constant 0 : index
    %4 = vector.load %arg3[%c0_3, %c0_4] : memref<1x512xf32, #tpu.memory_space<vmem>>, vector<1x512xf32>
    %5 = vector.broadcast %4 : vector<1x512xf32> to vector<16x512xf32>
    %6 = arith.addf %3, %5 : vector<16x512xf32>
    %c0_5 = arith.constant 0 : index
    %c0_6 = arith.constant 0 : index
    %7 = vector.load %arg6[%c0_5, %c0_6] : memref<16x512xf32, #tpu.memory_space<vmem>>, vector<16x512xf32>
    %8 = arith.addf %6, %7 : vector<16x512xf32>
    %cst_7 = arith.constant dense<0.000000e+00> : vector<16xf32>
    %9 = vector.multi_reduction <add>, %8, %cst_7 [1] : vector<16x512xf32> to vector<16xf32>
    %10 = vector.shape_cast %9 : vector<16xf32> to vector<16x1xf32>
    %cst_8 = arith.constant 5.120000e+02 : f32
    %11 = vector.broadcast %cst_8 : f32 to vector<16x1xf32>
    %12 = arith.divf %10, %11 : vector<16x1xf32>
    %13 = vector.broadcast %12 : vector<16x1xf32> to vector<16x512xf32>
    %14 = arith.subf %8, %13 : vector<16x512xf32>
    %15 = arith.mulf %14, %14 : vector<16x512xf32>
    %cst_9 = arith.constant dense<0.000000e+00> : vector<16xf32>
    %16 = vector.multi_reduction <add>, %15, %cst_9 [1] : vector<16x512xf32> to vector<16xf32>
    %17 = vector.shape_cast %16 : vector<16xf32> to vector<16x1xf32>
    %cst_10 = arith.constant 5.120000e+02 : f32
    %18 = vector.broadcast %cst_10 : f32 to vector<16x1xf32>
    %19 = arith.divf %17, %18 : vector<16x1xf32>
    %cst_11 = arith.constant 9.99999996E-13 : f32
    %20 = vector.broadcast %cst_11 : f32 to vector<16x1xf32>
    %21 = arith.addf %19, %20 : vector<16x1xf32>
    %22 = math.rsqrt %21 : vector<16x1xf32>
    %23 = vector.broadcast %22 : vector<16x1xf32> to vector<16x512xf32>
    %24 = arith.mulf %14, %23 : vector<16x512xf32>
    %c0_12 = arith.constant 0 : index
    %c0_13 = arith.constant 0 : index
    %25 = vector.load %arg4[%c0_12, %c0_13] : memref<1x512xf32, #tpu.memory_space<vmem>>, vector<1x512xf32>
    %26 = vector.broadcast %25 : vector<1x512xf32> to vector<16x512xf32>
    %27 = arith.mulf %26, %24 : vector<16x512xf32>
    %c0_14 = arith.constant 0 : index
    %c0_15 = arith.constant 0 : index
    %28 = vector.load %arg5[%c0_14, %c0_15] : memref<1x512xf32, #tpu.memory_space<vmem>>, vector<1x512xf32>
    %29 = vector.broadcast %28 : vector<1x512xf32> to vector<16x512xf32>
    %30 = arith.addf %27, %29 : vector<16x512xf32>
    %31 = arith.truncf %30 : vector<16x512xf32> to vector<16x512xbf16>
    %c0_16 = arith.constant 0 : index
    %c0_17 = arith.constant 0 : index
    %32 = vector.load %arg7[%c0_16, %c0_17] : memref<16x512xbf16, #tpu.memory_space<vmem>>, vector<16x512xbf16>
    tpu.vector_store %arg7[%c0_16, %c0_17], %31 {strides = array<i32>} : memref<16x512xbf16, #tpu.memory_space<vmem>>, vector<16x512xbf16>,
    return
  }
  func.func @transform_0(%arg0: i32) -> (i32, i32) {
    %c0_i32 = arith.constant 0 : i32
    %c0_i32_0 = arith.constant 0 : i32
    return %arg0, %c0_i32 : i32, i32
  }
  func.func @transform_1(%arg0: i32) -> (i32, i32) {
    %c0_i32 = arith.constant 0 : i32
    %c0_i32_0 = arith.constant 0 : i32
    %c0_i32_1 = arith.constant 0 : i32
    return %c0_i32, %c0_i32_0 : i32, i32
  }
  func.func @transform_2(%arg0: i32) -> (i32, i32) {
    %c0_i32 = arith.constant 0 : i32
    %c0_i32_0 = arith.constant 0 : i32
    %c0_i32_1 = arith.constant 0 : i32
    return %c0_i32, %c0_i32_0 : i32, i32
  }
  func.func @transform_3(%arg0: i32) -> (i32, i32) {
    %c0_i32 = arith.constant 0 : i32
    %c0_i32_0 = arith.constant 0 : i32
    %c0_i32_1 = arith.constant 0 : i32
    return %c0_i32, %c0_i32_0 : i32, i32
  }
  func.func @transform_4(%arg0: i32) -> (i32, i32) {
    %c0_i32 = arith.constant 0 : i32
    %c0_i32_0 = arith.constant 0 : i32
    %c0_i32_1 = arith.constant 0 : i32
    return %c0_i32, %c0_i32_0 : i32, i32
  }
  func.func @transform_5(%arg0: i32) -> (i32, i32) {
    %c0_i32 = arith.constant 0 : i32
    %c0_i32_0 = arith.constant 0 : i32
    return %arg0, %c0_i32 : i32, i32
  }
  func.func @transform_6(%arg0: i32) -> (i32, i32) {
    %c0_i32 = arith.constant 0 : i32
    %c0_i32_0 = arith.constant 0 : i32
    return %arg0, %c0_i32 : i32, i32
  }
}

</mosaic_0001>

<llo_original>
// kernel: tpu_custom_call.1
$region0: #{tpu_custom_call.1}
  #allocation0 [shape = 'u32[]', space=smem, size = 0x4, offset = 0x4, fixed_abs, tag = 'smem constant byte address 0x4 - core index']
  #allocation1 [shape = 'u32[144,128]{1,0:T(1,128)}', space=vmem, size = 0x12000, scoped, tag = 'internal scratch']
  %s0 = inlined_call_operand.hbm [shape: f32[16,2048], index: 0, kind: input, shape index: {}]
  %s1 = inlined_call_operand.hbm [shape: bf16[2048,512], index: 1, kind: input, shape index: {}]
  %s2 = inlined_call_operand.hbm [shape: f32[1,512], index: 2, kind: input, shape index: {}]
  %s3 = inlined_call_operand.hbm [shape: f32[1,512], index: 3, kind: input, shape index: {}]
  %s4 = inlined_call_operand.hbm [shape: f32[1,512], index: 4, kind: input, shape index: {}]
  %s5 = inlined_call_operand.hbm [shape: f32[16,512], index: 5, kind: input, shape index: {}]
  %s6 = inlined_call_operand.hbm [shape: bf16[16,512], index: 6, kind: output, shape index: {}]
  %s7 = sld [smem:[#allocation0]]
  $region58: #{tpu_custom_call.1} parent=0
    _
  %s9 = ssub.s32 1, %s7
  %s10 = scalar_select 0, %s9, %s7
  $region1: #{tpu_custom_call.1} parent=0
    #allocation2 [shape = 'u8[131072]{0}', space=vmem, size = 0x20000, scoped, tag = 'input window, operand 0, single buffered']
    #allocation3 [shape = 's32[1]{0}', space=sflag, size = 0x4, scoped, tag = 'scoped memory for tpu_custom_call.1']
    #allocation4 [shape = 's32[1]{0}', space=sflag, size = 0x4, scoped, tag = 'scoped memory for tpu_custom_call.1']
    #allocation5 [shape = 'u8[2097152]{0}', space=vmem, size = 0x200000, scoped, tag = 'input window, operand 1, single buffered']
    #allocation6 [shape = 's32[1]{0}', space=sflag, size = 0x4, scoped, tag = 'scoped memory for tpu_custom_call.1']
    #allocation7 [shape = 'u8[2048]{0}', space=vmem, size = 0x800, scoped, tag = 'input window, operand 2, single buffered']
    #allocation8 [shape = 'u8[2048]{0}', space=vmem, size = 0x800, scoped, tag = 'input window, operand 3, single buffered']
    #allocation9 [shape = 's32[1]{0}', space=sflag, size = 0x4, scoped, tag = 'scoped memory for tpu_custom_call.1']
    #allocation10 [shape = 'u8[2048]{0}', space=vmem, size = 0x800, scoped, tag = 'input window, operand 4, single buffered']
    #allocation11 [shape = 'u8[32768]{0}', space=vmem, size = 0x8000, scoped, tag = 'input window, operand 5, single buffered']
    #allocation12 [shape = 's32[1]{0}', space=sflag, size = 0x4, scoped, tag = 'scoped memory for tpu_custom_call.1']
    #allocation13 [shape = 'u8[16384]{0}', space=vmem, size = 0x4000, scoped, tag = 'output window, operand 0, single buffered']
    %11 = vsyncpa [#allocation3], 0
    %12 = vsyncpa [#allocation6], 0
    %13 = vsyncpa [#allocation9], 0
    %14 = vsyncpa [#allocation12], 0
    %15 = vsyncpa [#allocation4], 0
    // Predicated region
    $region2: #{tpu_custom_call.1} parent=1 // pred_check
      _
    $region3: #{tpu_custom_call.1} parent=1 // pred_check_branch
      %17 = sbr.rel (0) target = $region5
    $region4: #{tpu_custom_call.1} parent=1 // pred_region
      %s19 = ssub.s32 4096, 4096
      %20 = vsyncadd [#allocation3], %s19
      %s21 = sshll.u32 [#allocation2], 4
      %s22 = int_to_ptr.vmem [resolvable:$true] %s21
      %27 = dma.hbm_to_vmem [thread:$0]  %s0, 4096, %s22, [#allocation3], 2048, 2048, 128
    $region5: #{tpu_custom_call.1} parent=1 // pred_fallthru
      _
    // Predicated region
    $region6: #{tpu_custom_call.1} parent=1 // pred_check
      _
    $region7: #{tpu_custom_call.1} parent=1 // pred_check_branch
      %29 = sbr.rel (0) target = $region9
    $region8: #{tpu_custom_call.1} parent=1 // pred_region
      %s31 = ssub.s32 65536, 65536
      %32 = vsyncadd [#allocation6], %s31
      %s33 = sshll.u32 [#allocation5], 4
      %s34 = int_to_ptr.vmem [resolvable:$true] %s33
      %39 = dma.hbm_to_vmem [thread:$0]  %s1, 65536, %s34, [#allocation6], 256, 256, 16
    $region9: #{tpu_custom_call.1} parent=1 // pred_fallthru
      _
    // Predicated region
    $region10: #{tpu_custom_call.1} parent=1 // pred_check
      _
    $region11: #{tpu_custom_call.1} parent=1 // pred_check_branch
      %41 = sbr.rel (0) target = $region13
    $region12: #{tpu_custom_call.1} parent=1 // pred_region
      %s43 = ssub.s32 64, 64
      %44 = vsyncadd [#allocation6], %s43
      %s46 = sshll.u32 [#allocation7], 4
      %s47 = int_to_ptr.vmem [resolvable:$true] %s46
      %49 = dma.hbm_to_vmem [thread:$0]  %s2, 64, %s47, [#allocation6]
    $region13: #{tpu_custom_call.1} parent=1 // pred_fallthru
      _
    // Predicated region
    $region14: #{tpu_custom_call.1} parent=1 // pred_check
      _
    $region15: #{tpu_custom_call.1} parent=1 // pred_check_branch
      %51 = sbr.rel (0) target = $region17
    $region16: #{tpu_custom_call.1} parent=1 // pred_region
      %s53 = ssub.s32 64, 64
      %54 = vsyncadd [#allocation9], %s53
      %s56 = sshll.u32 [#allocation8], 4
      %s57 = int_to_ptr.vmem [resolvable:$true] %s56
      %59 = dma.hbm_to_vmem [thread:$0]  %s3, 64, %s57, [#allocation9]
    $region17: #{tpu_custom_call.1} parent=1 // pred_fallthru
      _
    // Predicated region
    $region18: #{tpu_custom_call.1} parent=1 // pred_check
      _
    $region19: #{tpu_custom_call.1} parent=1 // pred_check_branch
      %61 = sbr.rel (0) target = $region21
    $region20: #{tpu_custom_call.1} parent=1 // pred_region
      %s63 = ssub.s32 64, 64
      %64 = vsyncadd [#allocation9], %s63
      %s66 = sshll.u32 [#allocation10], 4
      %s67 = int_to_ptr.vmem [resolvable:$true] %s66
      %69 = dma.hbm_to_vmem [thread:$0]  %s4, 64, %s67, [#allocation9]
    $region21: #{tpu_custom_call.1} parent=1 // pred_fallthru
      _
    // Predicated region
    $region22: #{tpu_custom_call.1} parent=1 // pred_check
      _
    $region23: #{tpu_custom_call.1} parent=1 // pred_check_branch
      %71 = sbr.rel (0) target = $region25
    $region24: #{tpu_custom_call.1} parent=1 // pred_region
      %s73 = ssub.s32 1024, 1024
      %74 = vsyncadd [#allocation12], %s73
      %s75 = sshll.u32 [#allocation11], 4
      %s76 = int_to_ptr.vmem [resolvable:$true] %s75
      %81 = dma.hbm_to_vmem [thread:$0]  %s5, 1024, %s76, [#allocation12], 512, 512, 32
    $region25: #{tpu_custom_call.1} parent=1 // pred_fallthru
      _
    // Predicated region
    $region26: #{tpu_custom_call.1} parent=1 // pred_check
      _
    $region27: #{tpu_custom_call.1} parent=1 // pred_check_branch
      %83 = sbr.rel (0) target = $region29
    $region28: #{tpu_custom_call.1} parent=1 // pred_region
      %84 = dma.done [#allocation3], 4096
    $region29: #{tpu_custom_call.1} parent=1 // pred_fallthru
      _
    // Predicated region
    $region30: #{tpu_custom_call.1} parent=1 // pred_check
      _
    $region31: #{tpu_custom_call.1} parent=1 // pred_check_branch
      %86 = sbr.rel (0) target = $region33
    $region32: #{tpu_custom_call.1} parent=1 // pred_region
      %87 = dma.done [#allocation6], 65536
    $region33: #{tpu_custom_call.1} parent=1 // pred_fallthru
      _
    // Predicated region
    $region34: #{tpu_custom_call.1} parent=1 // pred_check
      _
    $region35: #{tpu_custom_call.1} parent=1 // pred_check_branch
      %89 = sbr.rel (0) target = $region37
    $region36: #{tpu_custom_call.1} parent=1 // pred_region
      %90 = dma.done [#allocation6], 64
    $region37: #{tpu_custom_call.1} parent=1 // pred_fallthru
      _
    // Predicated region
    $region38: #{tpu_custom_call.1} parent=1 // pred_check
      _
    $region39: #{tpu_custom_call.1} parent=1 // pred_check_branch
      %92 = sbr.rel (0) target = $region41
    $region40: #{tpu_custom_call.1} parent=1 // pred_region
      %93 = dma.done [#allocation9], 64
    $region41: #{tpu_custom_call.1} parent=1 // pred_fallthru
      _
    // Predicated region
    $region42: #{tpu_custom_call.1} parent=1 // pred_check
      _
    $region43: #{tpu_custom_call.1} parent=1 // pred_check_branch
      %95 = sbr.rel (0) target = $region45
    $region44: #{tpu_custom_call.1} parent=1 // pred_region
      %96 = dma.done [#allocation9], 64
    $region45: #{tpu_custom_call.1} parent=1 // pred_fallthru
      _
    // Predicated region
    $region46: #{tpu_custom_call.1} parent=1 // pred_check
      _
    $region47: #{tpu_custom_call.1} parent=1 // pred_check_branch
      %98 = sbr.rel (0) target = $region49
    $region48: #{tpu_custom_call.1} parent=1 // pred_region
      %99 = dma.done [#allocation12], 1024
    $region49: #{tpu_custom_call.1} parent=1 // pred_fallthru
      _
    %v100 = vld [vmem:[#allocation2] sm:$0xff]
    %v101 = vld [vmem:[#allocation2 + $0x8] sm:$0xff]
    %v102 = vld [vmem:[#allocation2 + $0x10] sm:$0xff]
    %v103 = vld [vmem:[#allocation2 + $0x18] sm:$0xff]
    %v104 = vld [vmem:[#allocation2 + $0x20] sm:$0xff]
    %v105 = vld [vmem:[#allocation2 + $0x28] sm:$0xff]
    %v106 = vld [vmem:[#allocation2 + $0x30] sm:$0xff]
    %v107 = vld [vmem:[#allocation2 + $0x38] sm:$0xff]
    %v108 = vld [vmem:[#allocation2 + $0x40] sm:$0xff]
    %v109 = vld [vmem:[#allocation2 + $0x48] sm:$0xff]
    %v110 = vld [vmem:[#allocation2 + $0x50] sm:$0xff]
    %v111 = vld [vmem:[#allocation2 + $0x58] sm:$0xff]
    %v112 = vld [vmem:[#allocation2 + $0x60] sm:$0xff]
    %v113 = vld [vmem:[#allocation2 + $0x68] sm:$0xff]
    %v114 = vld [vmem:[#allocation2 + $0x70] sm:$0xff]
    %v115 = vld [vmem:[#allocation2 + $0x78] sm:$0xff]
    %v116 = vld [vmem:[#allocation2 + $0x80] sm:$0xff]
    %v117 = vld [vmem:[#allocation2 + $0x88] sm:$0xff]
    %v118 = vld [vmem:[#allocation2 + $0x90] sm:$0xff]
    %v119 = vld [vmem:[#allocation2 + $0x98] sm:$0xff]
    %v120 = vld [vmem:[#allocation2 + $0xa0] sm:$0xff]
    %v121 = vld [vmem:[#allocation2 + $0xa8] sm:$0xff]
    %v122 = vld [vmem:[#allocation2 + $0xb0] sm:$0xff]
    %v123 = vld [vmem:[#allocation2 + $0xb8] sm:$0xff]
    %v124 = vld [vmem:[#allocation2 + $0xc0] sm:$0xff]
    %v125 = vld [vmem:[#allocation2 + $0xc8] sm:$0xff]
    %v126 = vld [vmem:[#allocation2 + $0xd0] sm:$0xff]
    %v127 = vld [vmem:[#allocation2 + $0xd8] sm:$0xff]
    %v128 = vld [vmem:[#allocation2 + $0xe0] sm:$0xff]
    %v129 = vld [vmem:[#allocation2 + $0xe8] sm:$0xff]
    %v130 = vld [vmem:[#allocation2 + $0xf0] sm:$0xff]
    %v131 = vld [vmem:[#allocation2 + $0xf8] sm:$0xff]
    %v132 = vpack.c.bf16 %v116, %v100
    %v133 = vpack.c.bf16 %v117, %v101
    %v134 = vpack.c.bf16 %v118, %v102
    %v135 = vpack.c.bf16 %v119, %v103
    %v136 = vpack.c.bf16 %v120, %v104
    %v137 = vpack.c.bf16 %v121, %v105
    %v138 = vpack.c.bf16 %v122, %v106
    %v139 = vpack.c.bf16 %v123, %v107
    %v140 = vpack.c.bf16 %v124, %v108
    %v141 = vpack.c.bf16 %v125, %v109
    %v142 = vpack.c.bf16 %v126, %v110
    %v143 = vpack.c.bf16 %v127, %v111
    %v144 = vpack.c.bf16 %v128, %v112
    %v145 = vpack.c.bf16 %v129, %v113
    %v146 = vpack.c.bf16 %v130, %v114
    %v147 = vpack.c.bf16 %v131, %v115
    %v148 = vld [vmem:[#allocation5] sm:$0xff]
    %v149 = vld [vmem:[#allocation5 + $0x8] sm:$0xff]
    %v150 = vld [vmem:[#allocation5 + $0x10] sm:$0xff]
    %v151 = vld [vmem:[#allocation5 + $0x18] sm:$0xff]
    %v152 = vld [vmem:[#allocation5 + $0x20] sm:$0xff]
    %v153 = vld [vmem:[#allocation5 + $0x28] sm:$0xff]
    %v154 = vld [vmem:[#allocation5 + $0x30] sm:$0xff]
    %v155 = vld [vmem:[#allocation5 + $0x38] sm:$0xff]
    %v156 = vld [vmem:[#allocation5 + $0x40] sm:$0xff]
    %v157 = vld [vmem:[#allocation5 + $0x48] sm:$0xff]
    %v158 = vld [vmem:[#allocation5 + $0x50] sm:$0xff]
    %v159 = vld [vmem:[#allocation5 + $0x58] sm:$0xff]
    %v160 = vld [vmem:[#allocation5 + $0x60] sm:$0xff]
    %v161 = vld [vmem:[#allocation5 + $0x68] sm:$0xff]
    %v162 = vld [vmem:[#allocation5 + $0x70] sm:$0xff]
    %v163 = vld [vmem:[#allocation5 + $0x78] sm:$0xff]
    %v164 = vld [vmem:[#allocation5 + $0x80] sm:$0xff]
    %v165 = vld [vmem:[#allocation5 + $0x88] sm:$0xff]
    %v166 = vld [vmem:[#allocation5 + $0x90] sm:$0xff]
    %v167 = vld [vmem:[#allocation5 + $0x98] sm:$0xff]
    %v168 = vld [vmem:[#allocation5 + $0xa0] sm:$0xff]
    %v169 = vld [vmem:[#allocation5 + $0xa8] sm:$0xff]
    %v170 = vld [vmem:[#allocation5 + $0xb0] sm:$0xff]
    %v171 = vld [vmem:[#allocation5 + $0xb8] sm:$0xff]
    %v172 = vld [vmem:[#allocation5 + $0xc0] sm:$0xff]
    %v173 = vld [vmem:[#allocation5 + $0xc8] sm:$0xff]
    %v174 = vld [vmem:[#allocation5 + $0xd0] sm:$0xff]
    %v175 = vld [vmem:[#allocation5 + $0xd8] sm:$0xff]
    %v176 = vld [vmem:[#allocation5 + $0xe0] sm:$0xff]
    %v177 = vld [vmem:[#allocation5 + $0xe8] sm:$0xff]
    %v178 = vld [vmem:[#allocation5 + $0xf0] sm:$0xff]
    %v179 = vld [vmem:[#allocation5 + $0xf8] sm:$0xff]
    %v180 = vld [vmem:[#allocation5 + $0x100] sm:$0xff]
    %v181 = vld [vmem:[#allocation5 + $0x108] sm:$0xff]
    %v182 = vld [vmem:[#allocation5 + $0x110] sm:$0xff]
    %v183 = vld [vmem:[#allocation5 + $0x118] sm:$0xff]
    %v184 = vld [vmem:[#allocation5 + $0x120] sm:$0xff]
    %v185 = vld [vmem:[#allocation5 + $0x128] sm:$0xff]
    %v186 = vld [vmem:[#allocation5 + $0x130] sm:$0xff]
    %v187 = vld [vmem:[#allocation5 + $0x138] sm:$0xff]
    %v188 = vld [vmem:[#allocation5 + $0x140] sm:$0xff]
    %v189 = vld [vmem:[#allocation5 + $0x148] sm:$0xff]
    %v190 = vld [vmem:[#allocation5 + $0x150] sm:$0xff]
    %v191 = vld [vmem:[#allocation5 + $0x158] sm:$0xff]
    %v192 = vld [vmem:[#allocation5 + $0x160] sm:$0xff]
    %v193 = vld [vmem:[#allocation5 + $0x168] sm:$0xff]
    %v194 = vld [vmem:[#allocation5 + $0x170] sm:$0xff]
    %v195 = vld [vmem:[#allocation5 + $0x178] sm:$0xff]
    %v196 = vld [vmem:[#allocation5 + $0x180] sm:$0xff]
    %v197 = vld [vmem:[#allocation5 + $0x188] sm:$0xff]
    %v198 = vld [vmem:[#allocation5 + $0x190] sm:$0xff]
    %v199 = vld [vmem:[#allocation5 + $0x198] sm:$0xff]
    %v200 = vld [vmem:[#allocation5 + $0x1a0] sm:$0xff]
    %v201 = vld [vmem:[#allocation5 + $0x1a8] sm:$0xff]
    %v202 = vld [vmem:[#allocation5 + $0x1b0] sm:$0xff]
    %v203 = vld [vmem:[#allocation5 + $0x1b8] sm:$0xff]
    %v204 = vld [vmem:[#allocation5 + $0x1c0] sm:$0xff]
    %v205 = vld [vmem:[#allocation5 + $0x1c8] sm:$0xff]
    %v206 = vld [vmem:[#allocation5 + $0x1d0] sm:$0xff]
    %v207 = vld [vmem:[#allocation5 + $0x1d8] sm:$0xff]
    %v208 = vld [vmem:[#allocation5 + $0x1e0] sm:$0xff]
    %v209 = vld [vmem:[#allocation5 + $0x1e8] sm:$0xff]
    %v210 = vld [vmem:[#allocation5 + $0x1f0] sm:$0xff]
    %v211 = vld [vmem:[#allocation5 + $0x1f8] sm:$0xff]
    %v212 = vld [vmem:[#allocation5 + $0x200] sm:$0xff]
    %v213 = vld [vmem:[#allocation5 + $0x208] sm:$0xff]
    %v214 = vld [vmem:[#allocation5 + $0x210] sm:$0xff]
    %v215 = vld [vmem:[#allocation5 + $0x218] sm:$0xff]
    %v216 = vld [vmem:[#allocation5 + $0x220] sm:$0xff]
    %v217 = vld [vmem:[#allocation5 + $0x228] sm:$0xff]
    %v218 = vld [vmem:[#allocation5 + $0x230] sm:$0xff]
    %v219 = vld [vmem:[#allocation5 + $0x238] sm:$0xff]
    %v220 = vld [vmem:[#allocation5 + $0x240] sm:$0xff]
    %v221 = vld [vmem:[#allocation5 + $0x248] sm:$0xff]
    %v222 = vld [vmem:[#allocation5 + $0x250] sm:$0xff]
    %v223 = vld [vmem:[#allocation5 + $0x258] sm:$0xff]
    %v224 = vld [vmem:[#allocation5 + $0x260] sm:$0xff]
    %v225 = vld [vmem:[#allocation5 + $0x268] sm:$0xff]
    %v226 = vld [vmem:[#allocation5 + $0x270] sm:$0xff]
    %v227 = vld [vmem:[#allocation5 + $0x278] sm:$0xff]
    %v228 = vld [vmem:[#allocation5 + $0x280] sm:$0xff]
    %v229 = vld [vmem:[#allocation5 + $0x288] sm:$0xff]
    %v230 = vld [vmem:[#allocation5 + $0x290] sm:$0xff]
    %v231 = vld [vmem:[#allocation5 + $0x298] sm:$0xff]
    %v232 = vld [vmem:[#allocation5 + $0x2a0] sm:$0xff]
    %v233 = vld [vmem:[#allocation5 + $0x2a8] sm:$0xff]
    %v234 = vld [vmem:[#allocation5 + $0x2b0] sm:$0xff]
    %v235 = vld [vmem:[#allocation5 + $0x2b8] sm:$0xff]
    %v236 = vld [vmem:[#allocation5 + $0x2c0] sm:$0xff]
    %v237 = vld [vmem:[#allocation5 + $0x2c8] sm:$0xff]
    %v238 = vld [vmem:[#allocation5 + $0x2d0] sm:$0xff]
    %v239 = vld [vmem:[#allocation5 + $0x2d8] sm:$0xff]
    %v240 = vld [vmem:[#allocation5 + $0x2e0] sm:$0xff]
    %v241 = vld [vmem:[#allocation5 + $0x2e8] sm:$0xff]
    %v242 = vld [vmem:[#allocation5 + $0x2f0] sm:$0xff]
    %v243 = vld [vmem:[#allocation5 + $0x2f8] sm:$0xff]
    %v244 = vld [vmem:[#allocation5 + $0x300] sm:$0xff]
    %v245 = vld [vmem:[#allocation5 + $0x308] sm:$0xff]
    %v246 = vld [vmem:[#allocation5 + $0x310] sm:$0xff]
    %v247 = vld [vmem:[#allocation5 + $0x318] sm:$0xff]
    %v248 = vld [vmem:[#allocation5 + $0x320] sm:$0xff]
    %v249 = vld [vmem:[#allocation5 + $0x328] sm:$0xff]
    %v250 = vld [vmem:[#allocation5 + $0x330] sm:$0xff]
    %v251 = vld [vmem:[#allocation5 + $0x338] sm:$0xff]
    %v252 = vld [vmem:[#allocation5 + $0x340] sm:$0xff]
    %v253 = vld [vmem:[#allocation5 + $0x348] sm:$0xff]
    %v254 = vld [vmem:[#allocation5 + $0x350] sm:$0xff]
    %v255 = vld [vmem:[#allocation5 + $0x358] sm:$0xff]
    %v256 = vld [vmem:[#allocation5 + $0x360] sm:$0xff]
    %v257 = vld [vmem:[#allocation5 + $0x368] sm:$0xff]
    %v258 = vld [vmem:[#allocation5 + $0x370] sm:$0xff]
    %v259 = vld [vmem:[#allocation5 + $0x378] sm:$0xff]
    %v260 = vld [vmem:[#allocation5 + $0x380] sm:$0xff]
    %v261 = vld [vmem:[#allocation5 + $0x388] sm:$0xff]
    %v262 = vld [vmem:[#allocation5 + $0x390] sm:$0xff]
    %v263 = vld [vmem:[#allocation5 + $0x398] sm:$0xff]
    %v264 = vld [vmem:[#allocation5 + $0x3a0] sm:$0xff]
    %v265 = vld [vmem:[#allocation5 + $0x3a8] sm:$0xff]
    %v266 = vld [vmem:[#allocation5 + $0x3b0] sm:$0xff]
    %v267 = vld [vmem:[#allocation5 + $0x3b8] sm:$0xff]
    %v268 = vld [vmem:[#allocation5 + $0x3c0] sm:$0xff]
    %v269 = vld [vmem:[#allocation5 + $0x3c8] sm:$0xff]
    %v270 = vld [vmem:[#allocation5 + $0x3d0] sm:$0xff]
    %v271 = vld [vmem:[#allocation5 + $0x3d8] sm:$0xff]
    %v272 = vld [vmem:[#allocation5 + $0x3e0] sm:$0xff]
    %v273 = vld [vmem:[#allocation5 + $0x3e8] sm:$0xff]
    %v274 = vld [vmem:[#allocation5 + $0x3f0] sm:$0xff]
    %v275 = vld [vmem:[#allocation5 + $0x3f8] sm:$0xff]
    %v276 = vld [vmem:[#allocation5 + $0x400] sm:$0xff]
    %v277 = vld [vmem:[#allocation5 + $0x408] sm:$0xff]
    %v278 = vld [vmem:[#allocation5 + $0x410] sm:$0xff]
    %v279 = vld [vmem:[#allocation5 + $0x418] sm:$0xff]
    %v280 = vld [vmem:[#allocation5 + $0x420] sm:$0xff]
    %v281 = vld [vmem:[#allocation5 + $0x428] sm:$0xff]
    %v282 = vld [vmem:[#allocation5 + $0x430] sm:$0xff]
    %v283 = vld [vmem:[#allocation5 + $0x438] sm:$0xff]
    %v284 = vld [vmem:[#allocation5 + $0x440] sm:$0xff]
    %v285 = vld [vmem:[#allocation5 + $0x448] sm:$0xff]
    %v286 = vld [vmem:[#allocation5 + $0x450] sm:$0xff]
    %v287 = vld [vmem:[#allocation5 + $0x458] sm:$0xff]
    %v288 = vld [vmem:[#allocation5 + $0x460] sm:$0xff]
    %v289 = vld [vmem:[#allocation5 + $0x468] sm:$0xff]
    %v290 = vld [vmem:[#allocation5 + $0x470] sm:$0xff]
    %v291 = vld [vmem:[#allocation5 + $0x478] sm:$0xff]
    %v292 = vld [vmem:[#allocation5 + $0x480] sm:$0xff]
    %v293 = vld [vmem:[#allocation5 + $0x488] sm:$0xff]
    %v294 = vld [vmem:[#allocation5 + $0x490] sm:$0xff]
    %v295 = vld [vmem:[#allocation5 + $0x498] sm:$0xff]
    %v296 = vld [vmem:[#allocation5 + $0x4a0] sm:$0xff]
    %v297 = vld [vmem:[#allocation5 + $0x4a8] sm:$0xff]
    %v298 = vld [vmem:[#allocation5 + $0x4b0] sm:$0xff]
    %v299 = vld [vmem:[#allocation5 + $0x4b8] sm:$0xff]
    %v300 = vld [vmem:[#allocation5 + $0x4c0] sm:$0xff]
    %v301 = vld [vmem:[#allocation5 + $0x4c8] sm:$0xff]
    %v302 = vld [vmem:[#allocation5 + $0x4d0] sm:$0xff]
    %v303 = vld [vmem:[#allocation5 + $0x4d8] sm:$0xff]
    %v304 = vld [vmem:[#allocation5 + $0x4e0] sm:$0xff]
    %v305 = vld [vmem:[#allocation5 + $0x4e8] sm:$0xff]
    %v306 = vld [vmem:[#allocation5 + $0x4f0] sm:$0xff]
    %v307 = vld [vmem:[#allocation5 + $0x4f8] sm:$0xff]
    %v308 = vld [vmem:[#allocation5 + $0x500] sm:$0xff]
    %v309 = vld [vmem:[#allocation5 + $0x508] sm:$0xff]
    %v310 = vld [vmem:[#allocation5 + $0x510] sm:$0xff]
    %v311 = vld [vmem:[#allocation5 + $0x518] sm:$0xff]
    %v312 = vld [vmem:[#allocation5 + $0x520] sm:$0xff]
    %v313 = vld [vmem:[#allocation5 + $0x528] sm:$0xff]
    %v314 = vld [vmem:[#allocation5 + $0x530] sm:$0xff]
    %v315 = vld [vmem:[#allocation5 + $0x538] sm:$0xff]
    %v316 = vld [vmem:[#allocation5 + $0x540] sm:$0xff]
    %v317 = vld [vmem:[#allocation5 + $0x548] sm:$0xff]
    %v318 = vld [vmem:[#allocation5 + $0x550] sm:$0xff]
    %v319 = vld [vmem:[#allocation5 + $0x558] sm:$0xff]
    %v320 = vld [vmem:[#allocation5 + $0x560] sm:$0xff]
    %v321 = vld [vmem:[#allocation5 + $0x568] sm:$0xff]
    %v322 = vld [vmem:[#allocation5 + $0x570] sm:$0xff]
    %v323 = vld [vmem:[#allocation5 + $0x578] sm:$0xff]
    %v324 = vld [vmem:[#allocation5 + $0x580] sm:$0xff]
    %v325 = vld [vmem:[#allocation5 + $0x588] sm:$0xff]
    %v326 = vld [vmem:[#allocation5 + $0x590] sm:$0xff]
    %v327 = vld [vmem:[#allocation5 + $0x598] sm:$0xff]
    %v328 = vld [vmem:[#allocation5 + $0x5a0] sm:$0xff]
    %v329 = vld [vmem:[#allocation5 + $0x5a8] sm:$0xff]
    %v330 = vld [vmem:[#allocation5 + $0x5b0] sm:$0xff]
    %v331 = vld [vmem:[#allocation5 + $0x5b8] sm:$0xff]
    %v332 = vld [vmem:[#allocation5 + $0x5c0] sm:$0xff]
    %v333 = vld [vmem:[#allocation5 + $0x5c8] sm:$0xff]
    %v334 = vld [vmem:[#allocation5 + $0x5d0] sm:$0xff]
    %v335 = vld [vmem:[#allocation5 + $0x5d8] sm:$0xff]
    %v336 = vld [vmem:[#allocation5 + $0x5e0] sm:$0xff]
    %v337 = vld [vmem:[#allocation5 + $0x5e8] sm:$0xff]
    %v338 = vld [vmem:[#allocation5 + $0x5f0] sm:$0xff]
    %v339 = vld [vmem:[#allocation5 + $0x5f8] sm:$0xff]
    %v340 = vld [vmem:[#allocation5 + $0x600] sm:$0xff]
    %v341 = vld [vmem:[#allocation5 + $0x608] sm:$0xff]
    %v342 = vld [vmem:[#allocation5 + $0x610] sm:$0xff]
    %v343 = vld [vmem:[#allocation5 + $0x618] sm:$0xff]
    %v344 = vld [vmem:[#allocation5 + $0x620] sm:$0xff]
    %v345 = vld [vmem:[#allocation5 + $0x628] sm:$0xff]
    %v346 = vld [vmem:[#allocation5 + $0x630] sm:$0xff]
    %v347 = vld [vmem:[#allocation5 + $0x638] sm:$0xff]
    %v348 = vld [vmem:[#allocation5 + $0x640] sm:$0xff]
    %v349 = vld [vmem:[#allocation5 + $0x648] sm:$0xff]
    %v350 = vld [vmem:[#allocation5 + $0x650] sm:$0xff]
    %v351 = vld [vmem:[#allocation5 + $0x658] sm:$0xff]
    %v352 = vld [vmem:[#allocation5 + $0x660] sm:$0xff]
    %v353 = vld [vmem:[#allocation5 + $0x668] sm:$0xff]
    %v354 = vld [vmem:[#allocation5 + $0x670] sm:$0xff]
    %v355 = vld [vmem:[#allocation5 + $0x678] sm:$0xff]
    %v356 = vld [vmem:[#allocation5 + $0x680] sm:$0xff]
    %v357 = vld [vmem:[#allocation5 + $0x688] sm:$0xff]
    %v358 = vld [vmem:[#allocation5 + $0x690] sm:$0xff]
    %v359 = vld [vmem:[#allocation5 + $0x698] sm:$0xff]
    %v360 = vld [vmem:[#allocation5 + $0x6a0] sm:$0xff]
    %v361 = vld [vmem:[#allocation5 + $0x6a8] sm:$0xff]
    %v362 = vld [vmem:[#allocation5 + $0x6b0] sm:$0xff]
    %v363 = vld [vmem:[#allocation5 + $0x6b8] sm:$0xff]
    %v364 = vld [vmem:[#allocation5 + $0x6c0] sm:$0xff]
    %v365 = vld [vmem:[#allocation5 + $0x6c8] sm:$0xff]
    %v366 = vld [vmem:[#allocation5 + $0x6d0] sm:$0xff]
    %v367 = vld [vmem:[#allocation5 + $0x6d8] sm:$0xff]
    %v368 = vld [vmem:[#allocation5 + $0x6e0] sm:$0xff]
    %v369 = vld [vmem:[#allocation5 + $0x6e8] sm:$0xff]
    %v370 = vld [vmem:[#allocation5 + $0x6f0] sm:$0xff]
    %v371 = vld [vmem:[#allocation5 + $0x6f8] sm:$0xff]
    %v372 = vld [vmem:[#allocation5 + $0x700] sm:$0xff]
    %v373 = vld [vmem:[#allocation5 + $0x708] sm:$0xff]
    %v374 = vld [vmem:[#allocation5 + $0x710] sm:$0xff]
    %v375 = vld [vmem:[#allocation5 + $0x718] sm:$0xff]
    %v376 = vld [vmem:[#allocation5 + $0x720] sm:$0xff]
    %v377 = vld [vmem:[#allocation5 + $0x728] sm:$0xff]
    %v378 = vld [vmem:[#allocation5 + $0x730] sm:$0xff]
    %v379 = vld [vmem:[#allocation5 + $0x738] sm:$0xff]
    %v380 = vld [vmem:[#allocation5 + $0x740] sm:$0xff]
    %v381 = vld [vmem:[#allocation5 + $0x748] sm:$0xff]
    %v382 = vld [vmem:[#allocation5 + $0x750] sm:$0xff]
    %v383 = vld [vmem:[#allocation5 + $0x758] sm:$0xff]
    %v384 = vld [vmem:[#allocation5 + $0x760] sm:$0xff]
    %v385 = vld [vmem:[#allocation5 + $0x768] sm:$0xff]
    %v386 = vld [vmem:[#allocation5 + $0x770] sm:$0xff]
    %v387 = vld [vmem:[#allocation5 + $0x778] sm:$0xff]
    %v388 = vld [vmem:[#allocation5 + $0x780] sm:$0xff]
    %v389 = vld [vmem:[#allocation5 + $0x788] sm:$0xff]
    %v390 = vld [vmem:[#allocation5 + $0x790] sm:$0xff]
    %v391 = vld [vmem:[#allocation5 + $0x798] sm:$0xff]
    %v392 = vld [vmem:[#allocation5 + $0x7a0] sm:$0xff]
    %v393 = vld [vmem:[#allocation5 + $0x7a8] sm:$0xff]
    %v394 = vld [vmem:[#allocation5 + $0x7b0] sm:$0xff]
    %v395 = vld [vmem:[#allocation5 + $0x7b8] sm:$0xff]
    %v396 = vld [vmem:[#allocation5 + $0x7c0] sm:$0xff]
    %v397 = vld [vmem:[#allocation5 + $0x7c8] sm:$0xff]
    %v398 = vld [vmem:[#allocation5 + $0x7d0] sm:$0xff]
    %v399 = vld [vmem:[#allocation5 + $0x7d8] sm:$0xff]
    %v400 = vld [vmem:[#allocation5 + $0x7e0] sm:$0xff]
    %v401 = vld [vmem:[#allocation5 + $0x7e8] sm:$0xff]
    %v402 = vld [vmem:[#allocation5 + $0x7f0] sm:$0xff]
    %v403 = vld [vmem:[#allocation5 + $0x7f8] sm:$0xff]
    %v404 = vld [vmem:[#allocation5 + $0x800] sm:$0xff]
    %v405 = vld [vmem:[#allocation5 + $0x808] sm:$0xff]
    %v406 = vld [vmem:[#allocation5 + $0x810] sm:$0xff]
    %v407 = vld [vmem:[#allocation5 + $0x818] sm:$0xff]
    %v408 = vld [vmem:[#allocation5 + $0x820] sm:$0xff]
    %v409 = vld [vmem:[#allocation5 + $0x828] sm:$0xff]
    %v410 = vld [vmem:[#allocation5 + $0x830] sm:$0xff]
    %v411 = vld [vmem:[#allocation5 + $0x838] sm:$0xff]
    %v412 = vld [vmem:[#allocation5 + $0x840] sm:$0xff]
    %v413 = vld [vmem:[#allocation5 + $0x848] sm:$0xff]
    %v414 = vld [vmem:[#allocation5 + $0x850] sm:$0xff]
    %v415 = vld [vmem:[#allocation5 + $0x858] sm:$0xff]
    %v416 = vld [vmem:[#allocation5 + $0x860] sm:$0xff]
    %v417 = vld [vmem:[#allocation5 + $0x868] sm:$0xff]
    %v418 = vld [vmem:[#allocation5 + $0x870] sm:$0xff]
    %v419 = vld [vmem:[#allocation5 + $0x878] sm:$0xff]
    %v420 = vld [vmem:[#allocation5 + $0x880] sm:$0xff]
    %v421 = vld [vmem:[#allocation5 + $0x888] sm:$0xff]
    %v422 = vld [vmem:[#allocation5 + $0x890] sm:$0xff]
    %v423 = vld [vmem:[#allocation5 + $0x898] sm:$0xff]
    %v424 = vld [vmem:[#allocation5 + $0x8a0] sm:$0xff]
    %v425 = vld [vmem:[#allocation5 + $0x8a8] sm:$0xff]
    %v426 = vld [vmem:[#allocation5 + $0x8b0] sm:$0xff]
    %v427 = vld [vmem:[#allocation5 + $0x8b8] sm:$0xff]
    %v428 = vld [vmem:[#allocation5 + $0x8c0] sm:$0xff]
    %v429 = vld [vmem:[#allocation5 + $0x8c8] sm:$0xff]
    %v430 = vld [vmem:[#allocation5 + $0x8d0] sm:$0xff]
    %v431 = vld [vmem:[#allocation5 + $0x8d8] sm:$0xff]
    %v432 = vld [vmem:[#allocation5 + $0x8e0] sm:$0xff]
    %v433 = vld [vmem:[#allocation5 + $0x8e8] sm:$0xff]
    %v434 = vld [vmem:[#allocation5 + $0x8f0] sm:$0xff]
    %v435 = vld [vmem:[#allocation5 + $0x8f8] sm:$0xff]
    %v436 = vld [vmem:[#allocation5 + $0x900] sm:$0xff]
    %v437 = vld [vmem:[#allocation5 + $0x908] sm:$0xff]
    %v438 = vld [vmem:[#allocation5 + $0x910] sm:$0xff]
    %v439 = vld [vmem:[#allocation5 + $0x918] sm:$0xff]
    %v440 = vld [vmem:[#allocation5 + $0x920] sm:$0xff]
    %v441 = vld [vmem:[#allocation5 + $0x928] sm:$0xff]
    %v442 = vld [vmem:[#allocation5 + $0x930] sm:$0xff]
    %v443 = vld [vmem:[#allocation5 + $0x938] sm:$0xff]
    %v444 = vld [vmem:[#allocation5 + $0x940] sm:$0xff]
    %v445 = vld [vmem:[#allocation5 + $0x948] sm:$0xff]
    %v446 = vld [vmem:[#allocation5 + $0x950] sm:$0xff]
    %v447 = vld [vmem:[#allocation5 + $0x958] sm:$0xff]
    %v448 = vld [vmem:[#allocation5 + $0x960] sm:$0xff]
    %v449 = vld [vmem:[#allocation5 + $0x968] sm:$0xff]
    %v450 = vld [vmem:[#allocation5 + $0x970] sm:$0xff]
    %v451 = vld [vmem:[#allocation5 + $0x978] sm:$0xff]
    %v452 = vld [vmem:[#allocation5 + $0x980] sm:$0xff]
    %v453 = vld [vmem:[#allocation5 + $0x988] sm:$0xff]
    %v454 = vld [vmem:[#allocation5 + $0x990] sm:$0xff]
    %v455 = vld [vmem:[#allocation5 + $0x998] sm:$0xff]
    %v456 = vld [vmem:[#allocation5 + $0x9a0] sm:$0xff]
    %v457 = vld [vmem:[#allocation5 + $0x9a8] sm:$0xff]
    %v458 = vld [vmem:[#allocation5 + $0x9b0] sm:$0xff]
    %v459 = vld [vmem:[#allocation5 + $0x9b8] sm:$0xff]
    %v460 = vld [vmem:[#allocation5 + $0x9c0] sm:$0xff]
    %v461 = vld [vmem:[#allocation5 + $0x9c8] sm:$0xff]
    %v462 = vld [vmem:[#allocation5 + $0x9d0] sm:$0xff]
    %v463 = vld [vmem:[#allocation5 + $0x9d8] sm:$0xff]
    %v464 = vld [vmem:[#allocation5 + $0x9e0] sm:$0xff]
    %v465 = vld [vmem:[#allocation5 + $0x9e8] sm:$0xff]
    %v466 = vld [vmem:[#allocation5 + $0x9f0] sm:$0xff]
    %v467 = vld [vmem:[#allocation5 + $0x9f8] sm:$0xff]
    %v468 = vld [vmem:[#allocation5 + $0xa00] sm:$0xff]
    %v469 = vld [vmem:[#allocation5 + $0xa08] sm:$0xff]
    %v470 = vld [vmem:[#allocation5 + $0xa10] sm:$0xff]
    %v471 = vld [vmem:[#allocation5 + $0xa18] sm:$0xff]
    %v472 = vld [vmem:[#allocation5 + $0xa20] sm:$0xff]
    %v473 = vld [vmem:[#allocation5 + $0xa28] sm:$0xff]
    %v474 = vld [vmem:[#allocation5 + $0xa30] sm:$0xff]
    %v475 = vld [vmem:[#allocation5 + $0xa38] sm:$0xff]
    %v476 = vld [vmem:[#allocation5 + $0xa40] sm:$0xff]
    %v477 = vld [vmem:[#allocation5 + $0xa48] sm:$0xff]
    %v478 = vld [vmem:[#allocation5 + $0xa50] sm:$0xff]
    %v479 = vld [vmem:[#allocation5 + $0xa58] sm:$0xff]
    %v480 = vld [vmem:[#allocation5 + $0xa60] sm:$0xff]
    %v481 = vld [vmem:[#allocation5 + $0xa68] sm:$0xff]
    %v482 = vld [vmem:[#allocation5 + $0xa70] sm:$0xff]
    %v483 = vld [vmem:[#allocation5 + $0xa78] sm:$0xff]
    %v484 = vld [vmem:[#allocation5 + $0xa80] sm:$0xff]
    %v485 = vld [vmem:[#allocation5 + $0xa88] sm:$0xff]
    %v486 = vld [vmem:[#allocation5 + $0xa90] sm:$0xff]
    %v487 = vld [vmem:[#allocation5 + $0xa98] sm:$0xff]
    %v488 = vld [vmem:[#allocation5 + $0xaa0] sm:$0xff]
    %v489 = vld [vmem:[#allocation5 + $0xaa8] sm:$0xff]
    %v490 = vld [vmem:[#allocation5 + $0xab0] sm:$0xff]
    %v491 = vld [vmem:[#allocation5 + $0xab8] sm:$0xff]
    %v492 = vld [vmem:[#allocation5 + $0xac0] sm:$0xff]
    %v493 = vld [vmem:[#allocation5 + $0xac8] sm:$0xff]
    %v494 = vld [vmem:[#allocation5 + $0xad0] sm:$0xff]
    %v495 = vld [vmem:[#allocation5 + $0xad8] sm:$0xff]
    %v496 = vld [vmem:[#allocation5 + $0xae0] sm:$0xff]
    %v497 = vld [vmem:[#allocation5 + $0xae8] sm:$0xff]
    %v498 = vld [vmem:[#allocation5 + $0xaf0] sm:$0xff]
    %v499 = vld [vmem:[#allocation5 + $0xaf8] sm:$0xff]
    %v500 = vld [vmem:[#allocation5 + $0xb00] sm:$0xff]
    %v501 = vld [vmem:[#allocation5 + $0xb08] sm:$0xff]
    %v502 = vld [vmem:[#allocation5 + $0xb10] sm:$0xff]
    %v503 = vld [vmem:[#allocation5 + $0xb18] sm:$0xff]
    %v504 = vld [vmem:[#allocation5 + $0xb20] sm:$0xff]
    %v505 = vld [vmem:[#allocation5 + $0xb28] sm:$0xff]
    %v506 = vld [vmem:[#allocation5 + $0xb30] sm:$0xff]
    %v507 = vld [vmem:[#allocation5 + $0xb38] sm:$0xff]
    %v508 = vld [vmem:[#allocation5 + $0xb40] sm:$0xff]
    %v509 = vld [vmem:[#allocation5 + $0xb48] sm:$0xff]
    %v510 = vld [vmem:[#allocation5 + $0xb50] sm:$0xff]
    %v511 = vld [vmem:[#allocation5 + $0xb58] sm:$0xff]
    %v512 = vld [vmem:[#allocation5 + $0xb60] sm:$0xff]
    %v513 = vld [vmem:[#allocation5 + $0xb68] sm:$0xff]
    %v514 = vld [vmem:[#allocation5 + $0xb70] sm:$0xff]
    %v515 = vld [vmem:[#allocation5 + $0xb78] sm:$0xff]
    %v516 = vld [vmem:[#allocation5 + $0xb80] sm:$0xff]
    %v517 = vld [vmem:[#allocation5 + $0xb88] sm:$0xff]
    %v518 = vld [vmem:[#allocation5 + $0xb90] sm:$0xff]
    %v519 = vld [vmem:[#allocation5 + $0xb98] sm:$0xff]
    %v520 = vld [vmem:[#allocation5 + $0xba0] sm:$0xff]
    %v521 = vld [vmem:[#allocation5 + $0xba8] sm:$0xff]
    %v522 = vld [vmem:[#allocation5 + $0xbb0] sm:$0xff]
    %v523 = vld [vmem:[#allocation5 + $0xbb8] sm:$0xff]
    %v524 = vld [vmem:[#allocation5 + $0xbc0] sm:$0xff]
    %v525 = vld [vmem:[#allocation5 + $0xbc8] sm:$0xff]
    %v526 = vld [vmem:[#allocation5 + $0xbd0] sm:$0xff]
    %v527 = vld [vmem:[#allocation5 + $0xbd8] sm:$0xff]
    %v528 = vld [vmem:[#allocation5 + $0xbe0] sm:$0xff]
    %v529 = vld [vmem:[#allocation5 + $0xbe8] sm:$0xff]
    %v530 = vld [vmem:[#allocation5 + $0xbf0] sm:$0xff]
    %v531 = vld [vmem:[#allocation5 + $0xbf8] sm:$0xff]
    %v532 = vld [vmem:[#allocation5 + $0xc00] sm:$0xff]
    %v533 = vld [vmem:[#allocation5 + $0xc08] sm:$0xff]
    %v534 = vld [vmem:[#allocation5 + $0xc10] sm:$0xff]
    %v535 = vld [vmem:[#allocation5 + $0xc18] sm:$0xff]
    %v536 = vld [vmem:[#allocation5 + $0xc20] sm:$0xff]
    %v537 = vld [vmem:[#allocation5 + $0xc28] sm:$0xff]
    %v538 = vld [vmem:[#allocation5 + $0xc30] sm:$0xff]
    %v539 = vld [vmem:[#allocation5 + $0xc38] sm:$0xff]
    %v540 = vld [vmem:[#allocation5 + $0xc40] sm:$0xff]
    %v541 = vld [vmem:[#allocation5 + $0xc48] sm:$0xff]
    %v542 = vld [vmem:[#allocation5 + $0xc50] sm:$0xff]
    %v543 = vld [vmem:[#allocation5 + $0xc58] sm:$0xff]
    %v544 = vld [vmem:[#allocation5 + $0xc60] sm:$0xff]
    %v545 = vld [vmem:[#allocation5 + $0xc68] sm:$0xff]
    %v546 = vld [vmem:[#allocation5 + $0xc70] sm:$0xff]
    %v547 = vld [vmem:[#allocation5 + $0xc78] sm:$0xff]
    %v548 = vld [vmem:[#allocation5 + $0xc80] sm:$0xff]
    %v549 = vld [vmem:[#allocation5 + $0xc88] sm:$0xff]
    %v550 = vld [vmem:[#allocation5 + $0xc90] sm:$0xff]
    %v551 = vld [vmem:[#allocation5 + $0xc98] sm:$0xff]
    %v552 = vld [vmem:[#allocation5 + $0xca0] sm:$0xff]
    %v553 = vld [vmem:[#allocation5 + $0xca8] sm:$0xff]
    %v554 = vld [vmem:[#allocation5 + $0xcb0] sm:$0xff]
    %v555 = vld [vmem:[#allocation5 + $0xcb8] sm:$0xff]
    %v556 = vld [vmem:[#allocation5 + $0xcc0] sm:$0xff]
    %v557 = vld [vmem:[#allocation5 + $0xcc8] sm:$0xff]
    %v558 = vld [vmem:[#allocation5 + $0xcd0] sm:$0xff]
    %v559 = vld [vmem:[#allocation5 + $0xcd8] sm:$0xff]
    %v560 = vld [vmem:[#allocation5 + $0xce0] sm:$0xff]
    %v561 = vld [vmem:[#allocation5 + $0xce8] sm:$0xff]
    %v562 = vld [vmem:[#allocation5 + $0xcf0] sm:$0xff]
    %v563 = vld [vmem:[#allocation5 + $0xcf8] sm:$0xff]
    %v564 = vld [vmem:[#allocation5 + $0xd00] sm:$0xff]
    %v565 = vld [vmem:[#allocation5 + $0xd08] sm:$0xff]
    %v566 = vld [vmem:[#allocation5 + $0xd10] sm:$0xff]
    %v567 = vld [vmem:[#allocation5 + $0xd18] sm:$0xff]
    %v568 = vld [vmem:[#allocation5 + $0xd20] sm:$0xff]
    %v569 = vld [vmem:[#allocation5 + $0xd28] sm:$0xff]
    %v570 = vld [vmem:[#allocation5 + $0xd30] sm:$0xff]
    %v571 = vld [vmem:[#allocation5 + $0xd38] sm:$0xff]
    %v572 = vld [vmem:[#allocation5 + $0xd40] sm:$0xff]
    %v573 = vld [vmem:[#allocation5 + $0xd48] sm:$0xff]
    %v574 = vld [vmem:[#allocation5 + $0xd50] sm:$0xff]
    %v575 = vld [vmem:[#allocation5 + $0xd58] sm:$0xff]
    %v576 = vld [vmem:[#allocation5 + $0xd60] sm:$0xff]
    %v577 = vld [vmem:[#allocation5 + $0xd68] sm:$0xff]
    %v578 = vld [vmem:[#allocation5 + $0xd70] sm:$0xff]
    %v579 = vld [vmem:[#allocation5 + $0xd78] sm:$0xff]
    %v580 = vld [vmem:[#allocation5 + $0xd80] sm:$0xff]
    %v581 = vld [vmem:[#allocation5 + $0xd88] sm:$0xff]
    %v582 = vld [vmem:[#allocation5 + $0xd90] sm:$0xff]
    %v583 = vld [vmem:[#allocation5 + $0xd98] sm:$0xff]
    %v584 = vld [vmem:[#allocation5 + $0xda0] sm:$0xff]
    %v585 = vld [vmem:[#allocation5 + $0xda8] sm:$0xff]
    %v586 = vld [vmem:[#allocation5 + $0xdb0] sm:$0xff]
    %v587 = vld [vmem:[#allocation5 + $0xdb8] sm:$0xff]
    %v588 = vld [vmem:[#allocation5 + $0xdc0] sm:$0xff]
    %v589 = vld [vmem:[#allocation5 + $0xdc8] sm:$0xff]
    %v590 = vld [vmem:[#allocation5 + $0xdd0] sm:$0xff]
    %v591 = vld [vmem:[#allocation5 + $0xdd8] sm:$0xff]
    %v592 = vld [vmem:[#allocation5 + $0xde0] sm:$0xff]
    %v593 = vld [vmem:[#allocation5 + $0xde8] sm:$0xff]
    %v594 = vld [vmem:[#allocation5 + $0xdf0] sm:$0xff]
    %v595 = vld [vmem:[#allocation5 + $0xdf8] sm:$0xff]
    %v596 = vld [vmem:[#allocation5 + $0xe00] sm:$0xff]
    %v597 = vld [vmem:[#allocation5 + $0xe08] sm:$0xff]
    %v598 = vld [vmem:[#allocation5 + $0xe10] sm:$0xff]
    %v599 = vld [vmem:[#allocation5 + $0xe18] sm:$0xff]
    %v600 = vld [vmem:[#allocation5 + $0xe20] sm:$0xff]
    %v601 = vld [vmem:[#allocation5 + $0xe28] sm:$0xff]
    %v602 = vld [vmem:[#allocation5 + $0xe30] sm:$0xff]
    %v603 = vld [vmem:[#allocation5 + $0xe38] sm:$0xff]
    %v604 = vld [vmem:[#allocation5 + $0xe40] sm:$0xff]
    %v605 = vld [vmem:[#allocation5 + $0xe48] sm:$0xff]
    %v606 = vld [vmem:[#allocation5 + $0xe50] sm:$0xff]
    %v607 = vld [vmem:[#allocation5 + $0xe58] sm:$0xff]
    %v608 = vld [vmem:[#allocation5 + $0xe60] sm:$0xff]
    %v609 = vld [vmem:[#allocation5 + $0xe68] sm:$0xff]
    %v610 = vld [vmem:[#allocation5 + $0xe70] sm:$0xff]
    %v611 = vld [vmem:[#allocation5 + $0xe78] sm:$0xff]
    %v612 = vld [vmem:[#allocation5 + $0xe80] sm:$0xff]
    %v613 = vld [vmem:[#allocation5 + $0xe88] sm:$0xff]
    %v614 = vld [vmem:[#allocation5 + $0xe90] sm:$0xff]
    %v615 = vld [vmem:[#allocation5 + $0xe98] sm:$0xff]
    %v616 = vld [vmem:[#allocation5 + $0xea0] sm:$0xff]
    %v617 = vld [vmem:[#allocation5 + $0xea8] sm:$0xff]
    %v618 = vld [vmem:[#allocation5 + $0xeb0] sm:$0xff]
    %v619 = vld [vmem:[#allocation5 + $0xeb8] sm:$0xff]
    %v620 = vld [vmem:[#allocation5 + $0xec0] sm:$0xff]
    %v621 = vld [vmem:[#allocation5 + $0xec8] sm:$0xff]
    %v622 = vld [vmem:[#allocation5 + $0xed0] sm:$0xff]
    %v623 = vld [vmem:[#allocation5 + $0xed8] sm:$0xff]
    %v624 = vld [vmem:[#allocation5 + $0xee0] sm:$0xff]
    %v625 = vld [vmem:[#allocation5 + $0xee8] sm:$0xff]
    %v626 = vld [vmem:[#allocation5 + $0xef0] sm:$0xff]
    %v627 = vld [vmem:[#allocation5 + $0xef8] sm:$0xff]
    %v628 = vld [vmem:[#allocation5 + $0xf00] sm:$0xff]
    %v629 = vld [vmem:[#allocation5 + $0xf08] sm:$0xff]
    %v630 = vld [vmem:[#allocation5 + $0xf10] sm:$0xff]
    %v631 = vld [vmem:[#allocation5 + $0xf18] sm:$0xff]
    %v632 = vld [vmem:[#allocation5 + $0xf20] sm:$0xff]
    %v633 = vld [vmem:[#allocation5 + $0xf28] sm:$0xff]
    %v634 = vld [vmem:[#allocation5 + $0xf30] sm:$0xff]
    %v635 = vld [vmem:[#allocation5 + $0xf38] sm:$0xff]
    %v636 = vld [vmem:[#allocation5 + $0xf40] sm:$0xff]
    %v637 = vld [vmem:[#allocation5 + $0xf48] sm:$0xff]
    %v638 = vld [vmem:[#allocation5 + $0xf50] sm:$0xff]
    %v639 = vld [vmem:[#allocation5 + $0xf58] sm:$0xff]
    %v640 = vld [vmem:[#allocation5 + $0xf60] sm:$0xff]
    %v641 = vld [vmem:[#allocation5 + $0xf68] sm:$0xff]
    %v642 = vld [vmem:[#allocation5 + $0xf70] sm:$0xff]
    %v643 = vld [vmem:[#allocation5 + $0xf78] sm:$0xff]
    %v644 = vld [vmem:[#allocation5 + $0xf80] sm:$0xff]
    %v645 = vld [vmem:[#allocation5 + $0xf88] sm:$0xff]
    %v646 = vld [vmem:[#allocation5 + $0xf90] sm:$0xff]
    %v647 = vld [vmem:[#allocation5 + $0xf98] sm:$0xff]
    %v648 = vld [vmem:[#allocation5 + $0xfa0] sm:$0xff]
    %v649 = vld [vmem:[#allocation5 + $0xfa8] sm:$0xff]
    %v650 = vld [vmem:[#allocation5 + $0xfb0] sm:$0xff]
    %v651 = vld [vmem:[#allocation5 + $0xfb8] sm:$0xff]
    %v652 = vld [vmem:[#allocation5 + $0xfc0] sm:$0xff]
    %v653 = vld [vmem:[#allocation5 + $0xfc8] sm:$0xff]
    %v654 = vld [vmem:[#allocation5 + $0xfd0] sm:$0xff]
    %v655 = vld [vmem:[#allocation5 + $0xfd8] sm:$0xff]
    %v656 = vld [vmem:[#allocation5 + $0xfe0] sm:$0xff]
    %v657 = vld [vmem:[#allocation5 + $0xfe8] sm:$0xff]
    %v658 = vld [vmem:[#allocation5 + $0xff0] sm:$0xff]
    %v659 = vld [vmem:[#allocation5 + $0xff8] sm:$0xff]
    %v660 = vld [vmem:[#allocation7] sm:$0xf]
    %v662 = vlaneseq
    %v663 = vshrl.u32 %v662, 7
    %v664 = vsub.s32 0, %v663
    %v665 = vrot.slane %v660, %v664
    %v666 = vlaneseq
    %v667 = vshrl.u32 %v666, 7
    %v668 = vsub.s32 1, %v667
    %v669 = vrot.slane %v660, %v668
    %v670 = vlaneseq
    %v671 = vshrl.u32 %v670, 7
    %v672 = vsub.s32 2, %v671
    %v673 = vrot.slane %v660, %v672
    %v674 = vlaneseq
    %v675 = vshrl.u32 %v674, 7
    %v676 = vsub.s32 3, %v675
    %v677 = vrot.slane %v660, %v676
    %v1194 = vunpack.c.l.b16 %v148
    %v1195 = vunpack.c.h.b16 %v148
    %v1196 = vunpack.c.l.b16 %v149
    %v1197 = vunpack.c.h.b16 %v149
    %v1198 = vunpack.c.l.b16 %v150
    %v1199 = vunpack.c.h.b16 %v150
    %v1200 = vunpack.c.l.b16 %v151
    %v1201 = vunpack.c.h.b16 %v151
    %v1202 = vunpack.c.l.b16 %v152
    %v1203 = vunpack.c.h.b16 %v152
    %v1204 = vunpack.c.l.b16 %v153
    %v1205 = vunpack.c.h.b16 %v153
    %v1206 = vunpack.c.l.b16 %v154
    %v1207 = vunpack.c.h.b16 %v154
    %v1208 = vunpack.c.l.b16 %v155
    %v1209 = vunpack.c.h.b16 %v155
    %v1210 = vunpack.c.l.b16 %v156
    %v1211 = vunpack.c.h.b16 %v156
    %v1212 = vunpack.c.l.b16 %v157
    %v1213 = vunpack.c.h.b16 %v157
    %v1214 = vunpack.c.l.b16 %v158
    %v1215 = vunpack.c.h.b16 %v158
    %v1216 = vunpack.c.l.b16 %v159
    %v1217 = vunpack.c.h.b16 %v159
    %v1218 = vunpack.c.l.b16 %v160
    %v1219 = vunpack.c.h.b16 %v160
    %v1220 = vunpack.c.l.b16 %v161
    %v1221 = vunpack.c.h.b16 %v161
    %v1222 = vunpack.c.l.b16 %v162
    %v1223 = vunpack.c.h.b16 %v162
    %v1224 = vunpack.c.l.b16 %v163
    %v1225 = vunpack.c.h.b16 %v163
    %v1226 = vunpack.c.l.b16 %v164
    %v1227 = vunpack.c.h.b16 %v164
    %v1228 = vunpack.c.l.b16 %v165
    %v1229 = vunpack.c.h.b16 %v165
    %v1230 = vunpack.c.l.b16 %v166
    %v1231 = vunpack.c.h.b16 %v166
    %v1232 = vunpack.c.l.b16 %v167
    %v1233 = vunpack.c.h.b16 %v167
    %v1234 = vunpack.c.l.b16 %v168
    %v1235 = vunpack.c.h.b16 %v168
    %v1236 = vunpack.c.l.b16 %v169
    %v1237 = vunpack.c.h.b16 %v169
    %v1238 = vunpack.c.l.b16 %v170
    %v1239 = vunpack.c.h.b16 %v170
    %v1240 = vunpack.c.l.b16 %v171
    %v1241 = vunpack.c.h.b16 %v171
    %v1242 = vunpack.c.l.b16 %v172
    %v1243 = vunpack.c.h.b16 %v172
    %v1244 = vunpack.c.l.b16 %v173
    %v1245 = vunpack.c.h.b16 %v173
    %v1246 = vunpack.c.l.b16 %v174
    %v1247 = vunpack.c.h.b16 %v174
    %v1248 = vunpack.c.l.b16 %v175
    %v1249 = vunpack.c.h.b16 %v175
    %v1250 = vunpack.c.l.b16 %v176
    %v1251 = vunpack.c.h.b16 %v176
    %v1252 = vunpack.c.l.b16 %v177
    %v1253 = vunpack.c.h.b16 %v177
    %v1254 = vunpack.c.l.b16 %v178
    %v1255 = vunpack.c.h.b16 %v178
    %v1256 = vunpack.c.l.b16 %v179
    %v1257 = vunpack.c.h.b16 %v179
    %v1258 = vunpack.c.l.b16 %v180
    %v1259 = vunpack.c.h.b16 %v180
    %v1260 = vunpack.c.l.b16 %v181
    %v1261 = vunpack.c.h.b16 %v181
    %v1262 = vunpack.c.l.b16 %v182
    %v1263 = vunpack.c.h.b16 %v182
    %v1264 = vunpack.c.l.b16 %v183
    %v1265 = vunpack.c.h.b16 %v183
    %v1266 = vunpack.c.l.b16 %v184
    %v1267 = vunpack.c.h.b16 %v184
    %v1268 = vunpack.c.l.b16 %v185
    %v1269 = vunpack.c.h.b16 %v185
    %v1270 = vunpack.c.l.b16 %v186
    %v1271 = vunpack.c.h.b16 %v186
    %v1272 = vunpack.c.l.b16 %v187
    %v1273 = vunpack.c.h.b16 %v187
    %v1274 = vunpack.c.l.b16 %v188
    %v1275 = vunpack.c.h.b16 %v188
    %v1276 = vunpack.c.l.b16 %v189
    %v1277 = vunpack.c.h.b16 %v189
    %v1278 = vunpack.c.l.b16 %v190
    %v1279 = vunpack.c.h.b16 %v190
    %v1280 = vunpack.c.l.b16 %v191
    %v1281 = vunpack.c.h.b16 %v191
    %v1282 = vunpack.c.l.b16 %v192
    %v1283 = vunpack.c.h.b16 %v192
    %v1284 = vunpack.c.l.b16 %v193
    %v1285 = vunpack.c.h.b16 %v193
    %v1286 = vunpack.c.l.b16 %v194
    %v1287 = vunpack.c.h.b16 %v194
    %v1288 = vunpack.c.l.b16 %v195
    %v1289 = vunpack.c.h.b16 %v195
    %v1290 = vunpack.c.l.b16 %v196
    %v1291 = vunpack.c.h.b16 %v196
    %v1292 = vunpack.c.l.b16 %v197
    %v1293 = vunpack.c.h.b16 %v197
    %v1294 = vunpack.c.l.b16 %v198
    %v1295 = vunpack.c.h.b16 %v198
    %v1296 = vunpack.c.l.b16 %v199
    %v1297 = vunpack.c.h.b16 %v199
    %v1298 = vunpack.c.l.b16 %v200
    %v1299 = vunpack.c.h.b16 %v200
    %v1300 = vunpack.c.l.b16 %v201
    %v1301 = vunpack.c.h.b16 %v201
    %v1302 = vunpack.c.l.b16 %v202
    %v1303 = vunpack.c.h.b16 %v202
    %v1304 = vunpack.c.l.b16 %v203
    %v1305 = vunpack.c.h.b16 %v203
    %v1306 = vunpack.c.l.b16 %v204
    %v1307 = vunpack.c.h.b16 %v204
    %v1308 = vunpack.c.l.b16 %v205
    %v1309 = vunpack.c.h.b16 %v205
    %v1310 = vunpack.c.l.b16 %v206
    %v1311 = vunpack.c.h.b16 %v206
    %v1312 = vunpack.c.l.b16 %v207
    %v1313 = vunpack.c.h.b16 %v207
    %v1314 = vunpack.c.l.b16 %v208
    %v1315 = vunpack.c.h.b16 %v208
    %v1316 = vunpack.c.l.b16 %v209
    %v1317 = vunpack.c.h.b16 %v209
    %v1318 = vunpack.c.l.b16 %v210
    %v1319 = vunpack.c.h.b16 %v210
    %v1320 = vunpack.c.l.b16 %v211
    %v1321 = vunpack.c.h.b16 %v211
    %v1322 = vunpack.c.l.b16 %v212
    %v1323 = vunpack.c.h.b16 %v212
    %v1324 = vunpack.c.l.b16 %v213
    %v1325 = vunpack.c.h.b16 %v213
    %v1326 = vunpack.c.l.b16 %v214
    %v1327 = vunpack.c.h.b16 %v214
    %v1328 = vunpack.c.l.b16 %v215
    %v1329 = vunpack.c.h.b16 %v215
    %v1330 = vunpack.c.l.b16 %v216
    %v1331 = vunpack.c.h.b16 %v216
    %v1332 = vunpack.c.l.b16 %v217
    %v1333 = vunpack.c.h.b16 %v217
    %v1334 = vunpack.c.l.b16 %v218
    %v1335 = vunpack.c.h.b16 %v218
    %v1336 = vunpack.c.l.b16 %v219
    %v1337 = vunpack.c.h.b16 %v219
    %v1338 = vunpack.c.l.b16 %v220
    %v1339 = vunpack.c.h.b16 %v220
    %v1340 = vunpack.c.l.b16 %v221
    %v1341 = vunpack.c.h.b16 %v221
    %v1342 = vunpack.c.l.b16 %v222
    %v1343 = vunpack.c.h.b16 %v222
    %v1344 = vunpack.c.l.b16 %v223
    %v1345 = vunpack.c.h.b16 %v223
    %v1346 = vunpack.c.l.b16 %v224
    %v1347 = vunpack.c.h.b16 %v224
    %v1348 = vunpack.c.l.b16 %v225
    %v1349 = vunpack.c.h.b16 %v225
    %v1350 = vunpack.c.l.b16 %v226
    %v1351 = vunpack.c.h.b16 %v226
    %v1352 = vunpack.c.l.b16 %v227
    %v1353 = vunpack.c.h.b16 %v227
    %v1354 = vunpack.c.l.b16 %v228
    %v1355 = vunpack.c.h.b16 %v228
    %v1356 = vunpack.c.l.b16 %v229
    %v1357 = vunpack.c.h.b16 %v229
    %v1358 = vunpack.c.l.b16 %v230
    %v1359 = vunpack.c.h.b16 %v230
    %v1360 = vunpack.c.l.b16 %v231
    %v1361 = vunpack.c.h.b16 %v231
    %v1362 = vunpack.c.l.b16 %v232
    %v1363 = vunpack.c.h.b16 %v232
    %v1364 = vunpack.c.l.b16 %v233
    %v1365 = vunpack.c.h.b16 %v233
    %v1366 = vunpack.c.l.b16 %v234
    %v1367 = vunpack.c.h.b16 %v234
    %v1368 = vunpack.c.l.b16 %v235
    %v1369 = vunpack.c.h.b16 %v235
    %v1370 = vunpack.c.l.b16 %v236
    %v1371 = vunpack.c.h.b16 %v236
    %v1372 = vunpack.c.l.b16 %v237
    %v1373 = vunpack.c.h.b16 %v237
    %v1374 = vunpack.c.l.b16 %v238
    %v1375 = vunpack.c.h.b16 %v238
    %v1376 = vunpack.c.l.b16 %v239
    %v1377 = vunpack.c.h.b16 %v239
    %v1378 = vunpack.c.l.b16 %v240
    %v1379 = vunpack.c.h.b16 %v240
    %v1380 = vunpack.c.l.b16 %v241
    %v1381 = vunpack.c.h.b16 %v241
    %v1382 = vunpack.c.l.b16 %v242
    %v1383 = vunpack.c.h.b16 %v242
    %v1384 = vunpack.c.l.b16 %v243
    %v1385 = vunpack.c.h.b16 %v243
    %v1386 = vunpack.c.l.b16 %v244
    %v1387 = vunpack.c.h.b16 %v244
    %v1388 = vunpack.c.l.b16 %v245
    %v1389 = vunpack.c.h.b16 %v245
    %v1390 = vunpack.c.l.b16 %v246
    %v1391 = vunpack.c.h.b16 %v246
    %v1392 = vunpack.c.l.b16 %v247
    %v1393 = vunpack.c.h.b16 %v247
    %v1394 = vunpack.c.l.b16 %v248
    %v1395 = vunpack.c.h.b16 %v248
    %v1396 = vunpack.c.l.b16 %v249
    %v1397 = vunpack.c.h.b16 %v249
    %v1398 = vunpack.c.l.b16 %v250
    %v1399 = vunpack.c.h.b16 %v250
    %v1400 = vunpack.c.l.b16 %v251
    %v1401 = vunpack.c.h.b16 %v251
    %v1402 = vunpack.c.l.b16 %v252
    %v1403 = vunpack.c.h.b16 %v252
    %v1404 = vunpack.c.l.b16 %v253
    %v1405 = vunpack.c.h.b16 %v253
    %v1406 = vunpack.c.l.b16 %v254
    %v1407 = vunpack.c.h.b16 %v254
    %v1408 = vunpack.c.l.b16 %v255
    %v1409 = vunpack.c.h.b16 %v255
    %v1410 = vunpack.c.l.b16 %v256
    %v1411 = vunpack.c.h.b16 %v256
    %v1412 = vunpack.c.l.b16 %v257
    %v1413 = vunpack.c.h.b16 %v257
    %v1414 = vunpack.c.l.b16 %v258
    %v1415 = vunpack.c.h.b16 %v258
    %v1416 = vunpack.c.l.b16 %v259
    %v1417 = vunpack.c.h.b16 %v259
    %v1418 = vunpack.c.l.b16 %v260
    %v1419 = vunpack.c.h.b16 %v260
    %v1420 = vunpack.c.l.b16 %v261
    %v1421 = vunpack.c.h.b16 %v261
    %v1422 = vunpack.c.l.b16 %v262
    %v1423 = vunpack.c.h.b16 %v262
    %v1424 = vunpack.c.l.b16 %v263
    %v1425 = vunpack.c.h.b16 %v263
    %v1426 = vunpack.c.l.b16 %v264
    %v1427 = vunpack.c.h.b16 %v264
    %v1428 = vunpack.c.l.b16 %v265
    %v1429 = vunpack.c.h.b16 %v265
    %v1430 = vunpack.c.l.b16 %v266
    %v1431 = vunpack.c.h.b16 %v266
    %v1432 = vunpack.c.l.b16 %v267
    %v1433 = vunpack.c.h.b16 %v267
    %v1434 = vunpack.c.l.b16 %v268
    %v1435 = vunpack.c.h.b16 %v268
    %v1436 = vunpack.c.l.b16 %v269
    %v1437 = vunpack.c.h.b16 %v269
    %v1438 = vunpack.c.l.b16 %v270
    %v1439 = vunpack.c.h.b16 %v270
    %v1440 = vunpack.c.l.b16 %v271
    %v1441 = vunpack.c.h.b16 %v271
    %v1442 = vunpack.c.l.b16 %v272
    %v1443 = vunpack.c.h.b16 %v272
    %v1444 = vunpack.c.l.b16 %v273
    %v1445 = vunpack.c.h.b16 %v273
    %v1446 = vunpack.c.l.b16 %v274
    %v1447 = vunpack.c.h.b16 %v274
    %v1448 = vunpack.c.l.b16 %v275
    %v1449 = vunpack.c.h.b16 %v275
    %v1450 = vunpack.c.l.b16 %v276
    %v1451 = vunpack.c.h.b16 %v276
    %v1452 = vunpack.c.l.b16 %v277
    %v1453 = vunpack.c.h.b16 %v277
    %v1454 = vunpack.c.l.b16 %v278
    %v1455 = vunpack.c.h.b16 %v278
    %v1456 = vunpack.c.l.b16 %v279
    %v1457 = vunpack.c.h.b16 %v279
    %v1458 = vunpack.c.l.b16 %v280
    %v1459 = vunpack.c.h.b16 %v280
    %v1460 = vunpack.c.l.b16 %v281
    %v1461 = vunpack.c.h.b16 %v281
    %v1462 = vunpack.c.l.b16 %v282
    %v1463 = vunpack.c.h.b16 %v282
    %v1464 = vunpack.c.l.b16 %v283
    %v1465 = vunpack.c.h.b16 %v283
    %v1466 = vunpack.c.l.b16 %v284
    %v1467 = vunpack.c.h.b16 %v284
    %v1468 = vunpack.c.l.b16 %v285
    %v1469 = vunpack.c.h.b16 %v285
    %v1470 = vunpack.c.l.b16 %v286
    %v1471 = vunpack.c.h.b16 %v286
    %v1472 = vunpack.c.l.b16 %v287
    %v1473 = vunpack.c.h.b16 %v287
    %v1474 = vunpack.c.l.b16 %v288
    %v1475 = vunpack.c.h.b16 %v288
    %v1476 = vunpack.c.l.b16 %v289
    %v1477 = vunpack.c.h.b16 %v289
    %v1478 = vunpack.c.l.b16 %v290
    %v1479 = vunpack.c.h.b16 %v290
    %v1480 = vunpack.c.l.b16 %v291
    %v1481 = vunpack.c.h.b16 %v291
    %v1482 = vunpack.c.l.b16 %v292
    %v1483 = vunpack.c.h.b16 %v292
    %v1484 = vunpack.c.l.b16 %v293
    %v1485 = vunpack.c.h.b16 %v293
    %v1486 = vunpack.c.l.b16 %v294
    %v1487 = vunpack.c.h.b16 %v294
    %v1488 = vunpack.c.l.b16 %v295
    %v1489 = vunpack.c.h.b16 %v295
    %v1490 = vunpack.c.l.b16 %v296
    %v1491 = vunpack.c.h.b16 %v296
    %v1492 = vunpack.c.l.b16 %v297
    %v1493 = vunpack.c.h.b16 %v297
    %v1494 = vunpack.c.l.b16 %v298
    %v1495 = vunpack.c.h.b16 %v298
    %v1496 = vunpack.c.l.b16 %v299
    %v1497 = vunpack.c.h.b16 %v299
    %v1498 = vunpack.c.l.b16 %v300
    %v1499 = vunpack.c.h.b16 %v300
    %v1500 = vunpack.c.l.b16 %v301
    %v1501 = vunpack.c.h.b16 %v301
    %v1502 = vunpack.c.l.b16 %v302
    %v1503 = vunpack.c.h.b16 %v302
    %v1504 = vunpack.c.l.b16 %v303
    %v1505 = vunpack.c.h.b16 %v303
    %v1506 = vunpack.c.l.b16 %v304
    %v1507 = vunpack.c.h.b16 %v304
    %v1508 = vunpack.c.l.b16 %v305
    %v1509 = vunpack.c.h.b16 %v305
    %v1510 = vunpack.c.l.b16 %v306
    %v1511 = vunpack.c.h.b16 %v306
    %v1512 = vunpack.c.l.b16 %v307
    %v1513 = vunpack.c.h.b16 %v307
    %v1514 = vunpack.c.l.b16 %v308
    %v1515 = vunpack.c.h.b16 %v308
    %v1516 = vunpack.c.l.b16 %v309
    %v1517 = vunpack.c.h.b16 %v309
    %v1518 = vunpack.c.l.b16 %v310
    %v1519 = vunpack.c.h.b16 %v310
    %v1520 = vunpack.c.l.b16 %v311
    %v1521 = vunpack.c.h.b16 %v311
    %v1522 = vunpack.c.l.b16 %v312
    %v1523 = vunpack.c.h.b16 %v312
    %v1524 = vunpack.c.l.b16 %v313
    %v1525 = vunpack.c.h.b16 %v313
    %v1526 = vunpack.c.l.b16 %v314
    %v1527 = vunpack.c.h.b16 %v314
    %v1528 = vunpack.c.l.b16 %v315
    %v1529 = vunpack.c.h.b16 %v315
    %v1530 = vunpack.c.l.b16 %v316
    %v1531 = vunpack.c.h.b16 %v316
    %v1532 = vunpack.c.l.b16 %v317
    %v1533 = vunpack.c.h.b16 %v317
    %v1534 = vunpack.c.l.b16 %v318
    %v1535 = vunpack.c.h.b16 %v318
    %v1536 = vunpack.c.l.b16 %v319
    %v1537 = vunpack.c.h.b16 %v319
    %v1538 = vunpack.c.l.b16 %v320
    %v1539 = vunpack.c.h.b16 %v320
    %v1540 = vunpack.c.l.b16 %v321
    %v1541 = vunpack.c.h.b16 %v321
    %v1542 = vunpack.c.l.b16 %v322
    %v1543 = vunpack.c.h.b16 %v322
    %v1544 = vunpack.c.l.b16 %v323
    %v1545 = vunpack.c.h.b16 %v323
    %v1546 = vunpack.c.l.b16 %v324
    %v1547 = vunpack.c.h.b16 %v324
    %v1548 = vunpack.c.l.b16 %v325
    %v1549 = vunpack.c.h.b16 %v325
    %v1550 = vunpack.c.l.b16 %v326
    %v1551 = vunpack.c.h.b16 %v326
    %v1552 = vunpack.c.l.b16 %v327
    %v1553 = vunpack.c.h.b16 %v327
    %v1554 = vunpack.c.l.b16 %v328
    %v1555 = vunpack.c.h.b16 %v328
    %v1556 = vunpack.c.l.b16 %v329
    %v1557 = vunpack.c.h.b16 %v329
    %v1558 = vunpack.c.l.b16 %v330
    %v1559 = vunpack.c.h.b16 %v330
    %v1560 = vunpack.c.l.b16 %v331
    %v1561 = vunpack.c.h.b16 %v331
    %v1562 = vunpack.c.l.b16 %v332
    %v1563 = vunpack.c.h.b16 %v332
    %v1564 = vunpack.c.l.b16 %v333
    %v1565 = vunpack.c.h.b16 %v333
    %v1566 = vunpack.c.l.b16 %v334
    %v1567 = vunpack.c.h.b16 %v334
    %v1568 = vunpack.c.l.b16 %v335
    %v1569 = vunpack.c.h.b16 %v335
    %v1570 = vunpack.c.l.b16 %v336
    %v1571 = vunpack.c.h.b16 %v336
    %v1572 = vunpack.c.l.b16 %v337
    %v1573 = vunpack.c.h.b16 %v337
    %v1574 = vunpack.c.l.b16 %v338
    %v1575 = vunpack.c.h.b16 %v338
    %v1576 = vunpack.c.l.b16 %v339
    %v1577 = vunpack.c.h.b16 %v339
    %v1578 = vunpack.c.l.b16 %v340
    %v1579 = vunpack.c.h.b16 %v340
    %v1580 = vunpack.c.l.b16 %v341
    %v1581 = vunpack.c.h.b16 %v341
    %v1582 = vunpack.c.l.b16 %v342
    %v1583 = vunpack.c.h.b16 %v342
    %v1584 = vunpack.c.l.b16 %v343
    %v1585 = vunpack.c.h.b16 %v343
    %v1586 = vunpack.c.l.b16 %v344
    %v1587 = vunpack.c.h.b16 %v344
    %v1588 = vunpack.c.l.b16 %v345
    %v1589 = vunpack.c.h.b16 %v345
    %v1590 = vunpack.c.l.b16 %v346
    %v1591 = vunpack.c.h.b16 %v346
    %v1592 = vunpack.c.l.b16 %v347
    %v1593 = vunpack.c.h.b16 %v347
    %v1594 = vunpack.c.l.b16 %v348
    %v1595 = vunpack.c.h.b16 %v348
    %v1596 = vunpack.c.l.b16 %v349
    %v1597 = vunpack.c.h.b16 %v349
    %v1598 = vunpack.c.l.b16 %v350
    %v1599 = vunpack.c.h.b16 %v350
    %v1600 = vunpack.c.l.b16 %v351
    %v1601 = vunpack.c.h.b16 %v351
    %v1602 = vunpack.c.l.b16 %v352
    %v1603 = vunpack.c.h.b16 %v352
    %v1604 = vunpack.c.l.b16 %v353
    %v1605 = vunpack.c.h.b16 %v353
    %v1606 = vunpack.c.l.b16 %v354
    %v1607 = vunpack.c.h.b16 %v354
    %v1608 = vunpack.c.l.b16 %v355
    %v1609 = vunpack.c.h.b16 %v355
    %v1610 = vunpack.c.l.b16 %v356
    %v1611 = vunpack.c.h.b16 %v356
    %v1612 = vunpack.c.l.b16 %v357
    %v1613 = vunpack.c.h.b16 %v357
    %v1614 = vunpack.c.l.b16 %v358
    %v1615 = vunpack.c.h.b16 %v358
    %v1616 = vunpack.c.l.b16 %v359
    %v1617 = vunpack.c.h.b16 %v359
    %v1618 = vunpack.c.l.b16 %v360
    %v1619 = vunpack.c.h.b16 %v360
    %v1620 = vunpack.c.l.b16 %v361
    %v1621 = vunpack.c.h.b16 %v361
    %v1622 = vunpack.c.l.b16 %v362
    %v1623 = vunpack.c.h.b16 %v362
    %v1624 = vunpack.c.l.b16 %v363
    %v1625 = vunpack.c.h.b16 %v363
    %v1626 = vunpack.c.l.b16 %v364
    %v1627 = vunpack.c.h.b16 %v364
    %v1628 = vunpack.c.l.b16 %v365
    %v1629 = vunpack.c.h.b16 %v365
    %v1630 = vunpack.c.l.b16 %v366
    %v1631 = vunpack.c.h.b16 %v366
    %v1632 = vunpack.c.l.b16 %v367
    %v1633 = vunpack.c.h.b16 %v367
    %v1634 = vunpack.c.l.b16 %v368
    %v1635 = vunpack.c.h.b16 %v368
    %v1636 = vunpack.c.l.b16 %v369
    %v1637 = vunpack.c.h.b16 %v369
    %v1638 = vunpack.c.l.b16 %v370
    %v1639 = vunpack.c.h.b16 %v370
    %v1640 = vunpack.c.l.b16 %v371
    %v1641 = vunpack.c.h.b16 %v371
    %v1642 = vunpack.c.l.b16 %v372
    %v1643 = vunpack.c.h.b16 %v372
    %v1644 = vunpack.c.l.b16 %v373
    %v1645 = vunpack.c.h.b16 %v373
    %v1646 = vunpack.c.l.b16 %v374
    %v1647 = vunpack.c.h.b16 %v374
    %v1648 = vunpack.c.l.b16 %v375
    %v1649 = vunpack.c.h.b16 %v375
    %v1650 = vunpack.c.l.b16 %v376
    %v1651 = vunpack.c.h.b16 %v376
    %v1652 = vunpack.c.l.b16 %v377
    %v1653 = vunpack.c.h.b16 %v377
    %v1654 = vunpack.c.l.b16 %v378
    %v1655 = vunpack.c.h.b16 %v378
    %v1656 = vunpack.c.l.b16 %v379
    %v1657 = vunpack.c.h.b16 %v379
    %v1658 = vunpack.c.l.b16 %v380
    %v1659 = vunpack.c.h.b16 %v380
    %v1660 = vunpack.c.l.b16 %v381
    %v1661 = vunpack.c.h.b16 %v381
    %v1662 = vunpack.c.l.b16 %v382
    %v1663 = vunpack.c.h.b16 %v382
    %v1664 = vunpack.c.l.b16 %v383
    %v1665 = vunpack.c.h.b16 %v383
    %v1666 = vunpack.c.l.b16 %v384
    %v1667 = vunpack.c.h.b16 %v384
    %v1668 = vunpack.c.l.b16 %v385
    %v1669 = vunpack.c.h.b16 %v385
    %v1670 = vunpack.c.l.b16 %v386
    %v1671 = vunpack.c.h.b16 %v386
    %v1672 = vunpack.c.l.b16 %v387
    %v1673 = vunpack.c.h.b16 %v387
    %v1674 = vunpack.c.l.b16 %v388
    %v1675 = vunpack.c.h.b16 %v388
    %v1676 = vunpack.c.l.b16 %v389
    %v1677 = vunpack.c.h.b16 %v389
    %v1678 = vunpack.c.l.b16 %v390
    %v1679 = vunpack.c.h.b16 %v390
    %v1680 = vunpack.c.l.b16 %v391
    %v1681 = vunpack.c.h.b16 %v391
    %v1682 = vunpack.c.l.b16 %v392
    %v1683 = vunpack.c.h.b16 %v392
    %v1684 = vunpack.c.l.b16 %v393
    %v1685 = vunpack.c.h.b16 %v393
    %v1686 = vunpack.c.l.b16 %v394
    %v1687 = vunpack.c.h.b16 %v394
    %v1688 = vunpack.c.l.b16 %v395
    %v1689 = vunpack.c.h.b16 %v395
    %v1690 = vunpack.c.l.b16 %v396
    %v1691 = vunpack.c.h.b16 %v396
    %v1692 = vunpack.c.l.b16 %v397
    %v1693 = vunpack.c.h.b16 %v397
    %v1694 = vunpack.c.l.b16 %v398
    %v1695 = vunpack.c.h.b16 %v398
    %v1696 = vunpack.c.l.b16 %v399
    %v1697 = vunpack.c.h.b16 %v399
    %v1698 = vunpack.c.l.b16 %v400
    %v1699 = vunpack.c.h.b16 %v400
    %v1700 = vunpack.c.l.b16 %v401
    %v1701 = vunpack.c.h.b16 %v401
    %v1702 = vunpack.c.l.b16 %v402
    %v1703 = vunpack.c.h.b16 %v402
    %v1704 = vunpack.c.l.b16 %v403
    %v1705 = vunpack.c.h.b16 %v403
    %v1706 = vunpack.c.l.b16 %v404
    %v1707 = vunpack.c.h.b16 %v404
    %v1708 = vunpack.c.l.b16 %v405
    %v1709 = vunpack.c.h.b16 %v405
    %v1710 = vunpack.c.l.b16 %v406
    %v1711 = vunpack.c.h.b16 %v406
    %v1712 = vunpack.c.l.b16 %v407
    %v1713 = vunpack.c.h.b16 %v407
    %v1714 = vunpack.c.l.b16 %v408
    %v1715 = vunpack.c.h.b16 %v408
    %v1716 = vunpack.c.l.b16 %v409
    %v1717 = vunpack.c.h.b16 %v409
    %v1718 = vunpack.c.l.b16 %v410
    %v1719 = vunpack.c.h.b16 %v410
    %v1720 = vunpack.c.l.b16 %v411
    %v1721 = vunpack.c.h.b16 %v411
    %v1722 = vunpack.c.l.b16 %v412
    %v1723 = vunpack.c.h.b16 %v412
    %v1724 = vunpack.c.l.b16 %v413
    %v1725 = vunpack.c.h.b16 %v413
    %v1726 = vunpack.c.l.b16 %v414
    %v1727 = vunpack.c.h.b16 %v414
    %v1728 = vunpack.c.l.b16 %v415
    %v1729 = vunpack.c.h.b16 %v415
    %v1730 = vunpack.c.l.b16 %v416
    %v1731 = vunpack.c.h.b16 %v416
    %v1732 = vunpack.c.l.b16 %v417
    %v1733 = vunpack.c.h.b16 %v417
    %v1734 = vunpack.c.l.b16 %v418
    %v1735 = vunpack.c.h.b16 %v418
    %v1736 = vunpack.c.l.b16 %v419
    %v1737 = vunpack.c.h.b16 %v419
    %v1738 = vunpack.c.l.b16 %v420
    %v1739 = vunpack.c.h.b16 %v420
    %v1740 = vunpack.c.l.b16 %v421
    %v1741 = vunpack.c.h.b16 %v421
    %v1742 = vunpack.c.l.b16 %v422
    %v1743 = vunpack.c.h.b16 %v422
    %v1744 = vunpack.c.l.b16 %v423
    %v1745 = vunpack.c.h.b16 %v423
    %v1746 = vunpack.c.l.b16 %v424
    %v1747 = vunpack.c.h.b16 %v424
    %v1748 = vunpack.c.l.b16 %v425
    %v1749 = vunpack.c.h.b16 %v425
    %v1750 = vunpack.c.l.b16 %v426
    %v1751 = vunpack.c.h.b16 %v426
    %v1752 = vunpack.c.l.b16 %v427
    %v1753 = vunpack.c.h.b16 %v427
    %v1754 = vunpack.c.l.b16 %v428
    %v1755 = vunpack.c.h.b16 %v428
    %v1756 = vunpack.c.l.b16 %v429
    %v1757 = vunpack.c.h.b16 %v429
    %v1758 = vunpack.c.l.b16 %v430
    %v1759 = vunpack.c.h.b16 %v430
    %v1760 = vunpack.c.l.b16 %v431
    %v1761 = vunpack.c.h.b16 %v431
    %v1762 = vunpack.c.l.b16 %v432
    %v1763 = vunpack.c.h.b16 %v432
    %v1764 = vunpack.c.l.b16 %v433
    %v1765 = vunpack.c.h.b16 %v433
    %v1766 = vunpack.c.l.b16 %v434
    %v1767 = vunpack.c.h.b16 %v434
    %v1768 = vunpack.c.l.b16 %v435
    %v1769 = vunpack.c.h.b16 %v435
    %v1770 = vunpack.c.l.b16 %v436
    %v1771 = vunpack.c.h.b16 %v436
    %v1772 = vunpack.c.l.b16 %v437
    %v1773 = vunpack.c.h.b16 %v437
    %v1774 = vunpack.c.l.b16 %v438
    %v1775 = vunpack.c.h.b16 %v438
    %v1776 = vunpack.c.l.b16 %v439
    %v1777 = vunpack.c.h.b16 %v439
    %v1778 = vunpack.c.l.b16 %v440
    %v1779 = vunpack.c.h.b16 %v440
    %v1780 = vunpack.c.l.b16 %v441
    %v1781 = vunpack.c.h.b16 %v441
    %v1782 = vunpack.c.l.b16 %v442
    %v1783 = vunpack.c.h.b16 %v442
    %v1784 = vunpack.c.l.b16 %v443
    %v1785 = vunpack.c.h.b16 %v443
    %v1786 = vunpack.c.l.b16 %v444
    %v1787 = vunpack.c.h.b16 %v444
    %v1788 = vunpack.c.l.b16 %v445
    %v1789 = vunpack.c.h.b16 %v445
    %v1790 = vunpack.c.l.b16 %v446
    %v1791 = vunpack.c.h.b16 %v446
    %v1792 = vunpack.c.l.b16 %v447
    %v1793 = vunpack.c.h.b16 %v447
    %v1794 = vunpack.c.l.b16 %v448
    %v1795 = vunpack.c.h.b16 %v448
    %v1796 = vunpack.c.l.b16 %v449
    %v1797 = vunpack.c.h.b16 %v449
    %v1798 = vunpack.c.l.b16 %v450
    %v1799 = vunpack.c.h.b16 %v450
    %v1800 = vunpack.c.l.b16 %v451
    %v1801 = vunpack.c.h.b16 %v451
    %v1802 = vunpack.c.l.b16 %v452
    %v1803 = vunpack.c.h.b16 %v452
    %v1804 = vunpack.c.l.b16 %v453
    %v1805 = vunpack.c.h.b16 %v453
    %v1806 = vunpack.c.l.b16 %v454
    %v1807 = vunpack.c.h.b16 %v454
    %v1808 = vunpack.c.l.b16 %v455
    %v1809 = vunpack.c.h.b16 %v455
    %v1810 = vunpack.c.l.b16 %v456
    %v1811 = vunpack.c.h.b16 %v456
    %v1812 = vunpack.c.l.b16 %v457
    %v1813 = vunpack.c.h.b16 %v457
    %v1814 = vunpack.c.l.b16 %v458
    %v1815 = vunpack.c.h.b16 %v458
    %v1816 = vunpack.c.l.b16 %v459
    %v1817 = vunpack.c.h.b16 %v459
    %v1818 = vunpack.c.l.b16 %v460
    %v1819 = vunpack.c.h.b16 %v460
    %v1820 = vunpack.c.l.b16 %v461
    %v1821 = vunpack.c.h.b16 %v461
    %v1822 = vunpack.c.l.b16 %v462
    %v1823 = vunpack.c.h.b16 %v462
    %v1824 = vunpack.c.l.b16 %v463
    %v1825 = vunpack.c.h.b16 %v463
    %v1826 = vunpack.c.l.b16 %v464
    %v1827 = vunpack.c.h.b16 %v464
    %v1828 = vunpack.c.l.b16 %v465
    %v1829 = vunpack.c.h.b16 %v465
    %v1830 = vunpack.c.l.b16 %v466
    %v1831 = vunpack.c.h.b16 %v466
    %v1832 = vunpack.c.l.b16 %v467
    %v1833 = vunpack.c.h.b16 %v467
    %v1834 = vunpack.c.l.b16 %v468
    %v1835 = vunpack.c.h.b16 %v468
    %v1836 = vunpack.c.l.b16 %v469
    %v1837 = vunpack.c.h.b16 %v469
    %v1838 = vunpack.c.l.b16 %v470
    %v1839 = vunpack.c.h.b16 %v470
    %v1840 = vunpack.c.l.b16 %v471
    %v1841 = vunpack.c.h.b16 %v471
    %v1842 = vunpack.c.l.b16 %v472
    %v1843 = vunpack.c.h.b16 %v472
    %v1844 = vunpack.c.l.b16 %v473
    %v1845 = vunpack.c.h.b16 %v473
    %v1846 = vunpack.c.l.b16 %v474
    %v1847 = vunpack.c.h.b16 %v474
    %v1848 = vunpack.c.l.b16 %v475
    %v1849 = vunpack.c.h.b16 %v475
    %v1850 = vunpack.c.l.b16 %v476
    %v1851 = vunpack.c.h.b16 %v476
    %v1852 = vunpack.c.l.b16 %v477
    %v1853 = vunpack.c.h.b16 %v477
    %v1854 = vunpack.c.l.b16 %v478
    %v1855 = vunpack.c.h.b16 %v478
    %v1856 = vunpack.c.l.b16 %v479
    %v1857 = vunpack.c.h.b16 %v479
    %v1858 = vunpack.c.l.b16 %v480
    %v1859 = vunpack.c.h.b16 %v480
    %v1860 = vunpack.c.l.b16 %v481
    %v1861 = vunpack.c.h.b16 %v481
    %v1862 = vunpack.c.l.b16 %v482
    %v1863 = vunpack.c.h.b16 %v482
    %v1864 = vunpack.c.l.b16 %v483
    %v1865 = vunpack.c.h.b16 %v483
    %v1866 = vunpack.c.l.b16 %v484
    %v1867 = vunpack.c.h.b16 %v484
    %v1868 = vunpack.c.l.b16 %v485
    %v1869 = vunpack.c.h.b16 %v485
    %v1870 = vunpack.c.l.b16 %v486
    %v1871 = vunpack.c.h.b16 %v486
    %v1872 = vunpack.c.l.b16 %v487
    %v1873 = vunpack.c.h.b16 %v487
    %v1874 = vunpack.c.l.b16 %v488
    %v1875 = vunpack.c.h.b16 %v488
    %v1876 = vunpack.c.l.b16 %v489
    %v1877 = vunpack.c.h.b16 %v489
    %v1878 = vunpack.c.l.b16 %v490
    %v1879 = vunpack.c.h.b16 %v490
    %v1880 = vunpack.c.l.b16 %v491
    %v1881 = vunpack.c.h.b16 %v491
    %v1882 = vunpack.c.l.b16 %v492
    %v1883 = vunpack.c.h.b16 %v492
    %v1884 = vunpack.c.l.b16 %v493
    %v1885 = vunpack.c.h.b16 %v493
    %v1886 = vunpack.c.l.b16 %v494
    %v1887 = vunpack.c.h.b16 %v494
    %v1888 = vunpack.c.l.b16 %v495
    %v1889 = vunpack.c.h.b16 %v495
    %v1890 = vunpack.c.l.b16 %v496
    %v1891 = vunpack.c.h.b16 %v496
    %v1892 = vunpack.c.l.b16 %v497
    %v1893 = vunpack.c.h.b16 %v497
    %v1894 = vunpack.c.l.b16 %v498
    %v1895 = vunpack.c.h.b16 %v498
    %v1896 = vunpack.c.l.b16 %v499
    %v1897 = vunpack.c.h.b16 %v499
    %v1898 = vunpack.c.l.b16 %v500
    %v1899 = vunpack.c.h.b16 %v500
    %v1900 = vunpack.c.l.b16 %v501
    %v1901 = vunpack.c.h.b16 %v501
    %v1902 = vunpack.c.l.b16 %v502
    %v1903 = vunpack.c.h.b16 %v502
    %v1904 = vunpack.c.l.b16 %v503
    %v1905 = vunpack.c.h.b16 %v503
    %v1906 = vunpack.c.l.b16 %v504
    %v1907 = vunpack.c.h.b16 %v504
    %v1908 = vunpack.c.l.b16 %v505
    %v1909 = vunpack.c.h.b16 %v505
    %v1910 = vunpack.c.l.b16 %v506
    %v1911 = vunpack.c.h.b16 %v506
    %v1912 = vunpack.c.l.b16 %v507
    %v1913 = vunpack.c.h.b16 %v507
    %v1914 = vunpack.c.l.b16 %v508
    %v1915 = vunpack.c.h.b16 %v508
    %v1916 = vunpack.c.l.b16 %v509
    %v1917 = vunpack.c.h.b16 %v509
    %v1918 = vunpack.c.l.b16 %v510
    %v1919 = vunpack.c.h.b16 %v510
    %v1920 = vunpack.c.l.b16 %v511
    %v1921 = vunpack.c.h.b16 %v511
    %v1922 = vunpack.c.l.b16 %v512
    %v1923 = vunpack.c.h.b16 %v512
    %v1924 = vunpack.c.l.b16 %v513
    %v1925 = vunpack.c.h.b16 %v513
    %v1926 = vunpack.c.l.b16 %v514
    %v1927 = vunpack.c.h.b16 %v514
    %v1928 = vunpack.c.l.b16 %v515
    %v1929 = vunpack.c.h.b16 %v515
    %v1930 = vunpack.c.l.b16 %v516
    %v1931 = vunpack.c.h.b16 %v516
    %v1932 = vunpack.c.l.b16 %v517
    %v1933 = vunpack.c.h.b16 %v517
    %v1934 = vunpack.c.l.b16 %v518
    %v1935 = vunpack.c.h.b16 %v518
    %v1936 = vunpack.c.l.b16 %v519
    %v1937 = vunpack.c.h.b16 %v519
    %v1938 = vunpack.c.l.b16 %v520
    %v1939 = vunpack.c.h.b16 %v520
    %v1940 = vunpack.c.l.b16 %v521
    %v1941 = vunpack.c.h.b16 %v521
    %v1942 = vunpack.c.l.b16 %v522
    %v1943 = vunpack.c.h.b16 %v522
    %v1944 = vunpack.c.l.b16 %v523
    %v1945 = vunpack.c.h.b16 %v523
    %v1946 = vunpack.c.l.b16 %v524
    %v1947 = vunpack.c.h.b16 %v524
    %v1948 = vunpack.c.l.b16 %v525
    %v1949 = vunpack.c.h.b16 %v525
    %v1950 = vunpack.c.l.b16 %v526
    %v1951 = vunpack.c.h.b16 %v526
    %v1952 = vunpack.c.l.b16 %v527
    %v1953 = vunpack.c.h.b16 %v527
    %v1954 = vunpack.c.l.b16 %v528
    %v1955 = vunpack.c.h.b16 %v528
    %v1956 = vunpack.c.l.b16 %v529
    %v1957 = vunpack.c.h.b16 %v529
    %v1958 = vunpack.c.l.b16 %v530
    %v1959 = vunpack.c.h.b16 %v530
    %v1960 = vunpack.c.l.b16 %v531
    %v1961 = vunpack.c.h.b16 %v531
    %v1962 = vunpack.c.l.b16 %v532
    %v1963 = vunpack.c.h.b16 %v532
    %v1964 = vunpack.c.l.b16 %v533
    %v1965 = vunpack.c.h.b16 %v533
    %v1966 = vunpack.c.l.b16 %v534
    %v1967 = vunpack.c.h.b16 %v534
    %v1968 = vunpack.c.l.b16 %v535
    %v1969 = vunpack.c.h.b16 %v535
    %v1970 = vunpack.c.l.b16 %v536
    %v1971 = vunpack.c.h.b16 %v536
    %v1972 = vunpack.c.l.b16 %v537
    %v1973 = vunpack.c.h.b16 %v537
    %v1974 = vunpack.c.l.b16 %v538
    %v1975 = vunpack.c.h.b16 %v538
    %v1976 = vunpack.c.l.b16 %v539
    %v1977 = vunpack.c.h.b16 %v539
    %v1978 = vunpack.c.l.b16 %v540
    %v1979 = vunpack.c.h.b16 %v540
    %v1980 = vunpack.c.l.b16 %v541
    %v1981 = vunpack.c.h.b16 %v541
    %v1982 = vunpack.c.l.b16 %v542
    %v1983 = vunpack.c.h.b16 %v542
    %v1984 = vunpack.c.l.b16 %v543
    %v1985 = vunpack.c.h.b16 %v543
    %v1986 = vunpack.c.l.b16 %v544
    %v1987 = vunpack.c.h.b16 %v544
    %v1988 = vunpack.c.l.b16 %v545
    %v1989 = vunpack.c.h.b16 %v545
    %v1990 = vunpack.c.l.b16 %v546
    %v1991 = vunpack.c.h.b16 %v546
    %v1992 = vunpack.c.l.b16 %v547
    %v1993 = vunpack.c.h.b16 %v547
    %v1994 = vunpack.c.l.b16 %v548
    %v1995 = vunpack.c.h.b16 %v548
    %v1996 = vunpack.c.l.b16 %v549
    %v1997 = vunpack.c.h.b16 %v549
    %v1998 = vunpack.c.l.b16 %v550
    %v1999 = vunpack.c.h.b16 %v550
    %v2000 = vunpack.c.l.b16 %v551
    %v2001 = vunpack.c.h.b16 %v551
    %v2002 = vunpack.c.l.b16 %v552
    %v2003 = vunpack.c.h.b16 %v552
    %v2004 = vunpack.c.l.b16 %v553
    %v2005 = vunpack.c.h.b16 %v553
    %v2006 = vunpack.c.l.b16 %v554
    %v2007 = vunpack.c.h.b16 %v554
    %v2008 = vunpack.c.l.b16 %v555
    %v2009 = vunpack.c.h.b16 %v555
    %v2010 = vunpack.c.l.b16 %v556
    %v2011 = vunpack.c.h.b16 %v556
    %v2012 = vunpack.c.l.b16 %v557
    %v2013 = vunpack.c.h.b16 %v557
    %v2014 = vunpack.c.l.b16 %v558
    %v2015 = vunpack.c.h.b16 %v558
    %v2016 = vunpack.c.l.b16 %v559
    %v2017 = vunpack.c.h.b16 %v559
    %v2018 = vunpack.c.l.b16 %v560
    %v2019 = vunpack.c.h.b16 %v560
    %v2020 = vunpack.c.l.b16 %v561
    %v2021 = vunpack.c.h.b16 %v561
    %v2022 = vunpack.c.l.b16 %v562
    %v2023 = vunpack.c.h.b16 %v562
    %v2024 = vunpack.c.l.b16 %v563
    %v2025 = vunpack.c.h.b16 %v563
    %v2026 = vunpack.c.l.b16 %v564
    %v2027 = vunpack.c.h.b16 %v564
    %v2028 = vunpack.c.l.b16 %v565
    %v2029 = vunpack.c.h.b16 %v565
    %v2030 = vunpack.c.l.b16 %v566
    %v2031 = vunpack.c.h.b16 %v566
    %v2032 = vunpack.c.l.b16 %v567
    %v2033 = vunpack.c.h.b16 %v567
    %v2034 = vunpack.c.l.b16 %v568
    %v2035 = vunpack.c.h.b16 %v568
    %v2036 = vunpack.c.l.b16 %v569
    %v2037 = vunpack.c.h.b16 %v569
    %v2038 = vunpack.c.l.b16 %v570
    %v2039 = vunpack.c.h.b16 %v570
    %v2040 = vunpack.c.l.b16 %v571
    %v2041 = vunpack.c.h.b16 %v571
    %v2042 = vunpack.c.l.b16 %v572
    %v2043 = vunpack.c.h.b16 %v572
    %v2044 = vunpack.c.l.b16 %v573
    %v2045 = vunpack.c.h.b16 %v573
    %v2046 = vunpack.c.l.b16 %v574
    %v2047 = vunpack.c.h.b16 %v574
    %v2048 = vunpack.c.l.b16 %v575
    %v2049 = vunpack.c.h.b16 %v575
    %v2050 = vunpack.c.l.b16 %v576
    %v2051 = vunpack.c.h.b16 %v576
    %v2052 = vunpack.c.l.b16 %v577
    %v2053 = vunpack.c.h.b16 %v577
    %v2054 = vunpack.c.l.b16 %v578
    %v2055 = vunpack.c.h.b16 %v578
    %v2056 = vunpack.c.l.b16 %v579
    %v2057 = vunpack.c.h.b16 %v579
    %v2058 = vunpack.c.l.b16 %v580
    %v2059 = vunpack.c.h.b16 %v580
    %v2060 = vunpack.c.l.b16 %v581
    %v2061 = vunpack.c.h.b16 %v581
    %v2062 = vunpack.c.l.b16 %v582
    %v2063 = vunpack.c.h.b16 %v582
    %v2064 = vunpack.c.l.b16 %v583
    %v2065 = vunpack.c.h.b16 %v583
    %v2066 = vunpack.c.l.b16 %v584
    %v2067 = vunpack.c.h.b16 %v584
    %v2068 = vunpack.c.l.b16 %v585
    %v2069 = vunpack.c.h.b16 %v585
    %v2070 = vunpack.c.l.b16 %v586
    %v2071 = vunpack.c.h.b16 %v586
    %v2072 = vunpack.c.l.b16 %v587
    %v2073 = vunpack.c.h.b16 %v587
    %v2074 = vunpack.c.l.b16 %v588
    %v2075 = vunpack.c.h.b16 %v588
    %v2076 = vunpack.c.l.b16 %v589
    %v2077 = vunpack.c.h.b16 %v589
    %v2078 = vunpack.c.l.b16 %v590
    %v2079 = vunpack.c.h.b16 %v590
    %v2080 = vunpack.c.l.b16 %v591
    %v2081 = vunpack.c.h.b16 %v591
    %v2082 = vunpack.c.l.b16 %v592
    %v2083 = vunpack.c.h.b16 %v592
    %v2084 = vunpack.c.l.b16 %v593
    %v2085 = vunpack.c.h.b16 %v593
    %v2086 = vunpack.c.l.b16 %v594
    %v2087 = vunpack.c.h.b16 %v594
    %v2088 = vunpack.c.l.b16 %v595
    %v2089 = vunpack.c.h.b16 %v595
    %v2090 = vunpack.c.l.b16 %v596
    %v2091 = vunpack.c.h.b16 %v596
    %v2092 = vunpack.c.l.b16 %v597
    %v2093 = vunpack.c.h.b16 %v597
    %v2094 = vunpack.c.l.b16 %v598
    %v2095 = vunpack.c.h.b16 %v598
    %v2096 = vunpack.c.l.b16 %v599
    %v2097 = vunpack.c.h.b16 %v599
    %v2098 = vunpack.c.l.b16 %v600
    %v2099 = vunpack.c.h.b16 %v600
    %v2100 = vunpack.c.l.b16 %v601
    %v2101 = vunpack.c.h.b16 %v601
    %v2102 = vunpack.c.l.b16 %v602
    %v2103 = vunpack.c.h.b16 %v602
    %v2104 = vunpack.c.l.b16 %v603
    %v2105 = vunpack.c.h.b16 %v603
    %v2106 = vunpack.c.l.b16 %v604
    %v2107 = vunpack.c.h.b16 %v604
    %v2108 = vunpack.c.l.b16 %v605
    %v2109 = vunpack.c.h.b16 %v605
    %v2110 = vunpack.c.l.b16 %v606
    %v2111 = vunpack.c.h.b16 %v606
    %v2112 = vunpack.c.l.b16 %v607
    %v2113 = vunpack.c.h.b16 %v607
    %v2114 = vunpack.c.l.b16 %v608
    %v2115 = vunpack.c.h.b16 %v608
    %v2116 = vunpack.c.l.b16 %v609
    %v2117 = vunpack.c.h.b16 %v609
    %v2118 = vunpack.c.l.b16 %v610
    %v2119 = vunpack.c.h.b16 %v610
    %v2120 = vunpack.c.l.b16 %v611
    %v2121 = vunpack.c.h.b16 %v611
    %v2122 = vunpack.c.l.b16 %v612
    %v2123 = vunpack.c.h.b16 %v612
    %v2124 = vunpack.c.l.b16 %v613
    %v2125 = vunpack.c.h.b16 %v613
    %v2126 = vunpack.c.l.b16 %v614
    %v2127 = vunpack.c.h.b16 %v614
    %v2128 = vunpack.c.l.b16 %v615
    %v2129 = vunpack.c.h.b16 %v615
    %v2130 = vunpack.c.l.b16 %v616
    %v2131 = vunpack.c.h.b16 %v616
    %v2132 = vunpack.c.l.b16 %v617
    %v2133 = vunpack.c.h.b16 %v617
    %v2134 = vunpack.c.l.b16 %v618
    %v2135 = vunpack.c.h.b16 %v618
    %v2136 = vunpack.c.l.b16 %v619
    %v2137 = vunpack.c.h.b16 %v619
    %v2138 = vunpack.c.l.b16 %v620
    %v2139 = vunpack.c.h.b16 %v620
    %v2140 = vunpack.c.l.b16 %v621
    %v2141 = vunpack.c.h.b16 %v621
    %v2142 = vunpack.c.l.b16 %v622
    %v2143 = vunpack.c.h.b16 %v622
    %v2144 = vunpack.c.l.b16 %v623
    %v2145 = vunpack.c.h.b16 %v623
    %v2146 = vunpack.c.l.b16 %v624
    %v2147 = vunpack.c.h.b16 %v624
    %v2148 = vunpack.c.l.b16 %v625
    %v2149 = vunpack.c.h.b16 %v625
    %v2150 = vunpack.c.l.b16 %v626
    %v2151 = vunpack.c.h.b16 %v626
    %v2152 = vunpack.c.l.b16 %v627
    %v2153 = vunpack.c.h.b16 %v627
    %v2154 = vunpack.c.l.b16 %v628
    %v2155 = vunpack.c.h.b16 %v628
    %v2156 = vunpack.c.l.b16 %v629
    %v2157 = vunpack.c.h.b16 %v629
    %v2158 = vunpack.c.l.b16 %v630
    %v2159 = vunpack.c.h.b16 %v630
    %v2160 = vunpack.c.l.b16 %v631
    %v2161 = vunpack.c.h.b16 %v631
    %v2162 = vunpack.c.l.b16 %v632
    %v2163 = vunpack.c.h.b16 %v632
    %v2164 = vunpack.c.l.b16 %v633
    %v2165 = vunpack.c.h.b16 %v633
    %v2166 = vunpack.c.l.b16 %v634
    %v2167 = vunpack.c.h.b16 %v634
    %v2168 = vunpack.c.l.b16 %v635
    %v2169 = vunpack.c.h.b16 %v635
    %v2170 = vunpack.c.l.b16 %v636
    %v2171 = vunpack.c.h.b16 %v636
    %v2172 = vunpack.c.l.b16 %v637
    %v2173 = vunpack.c.h.b16 %v637
    %v2174 = vunpack.c.l.b16 %v638
    %v2175 = vunpack.c.h.b16 %v638
    %v2176 = vunpack.c.l.b16 %v639
    %v2177 = vunpack.c.h.b16 %v639
    %v2178 = vunpack.c.l.b16 %v640
    %v2179 = vunpack.c.h.b16 %v640
    %v2180 = vunpack.c.l.b16 %v641
    %v2181 = vunpack.c.h.b16 %v641
    %v2182 = vunpack.c.l.b16 %v642
    %v2183 = vunpack.c.h.b16 %v642
    %v2184 = vunpack.c.l.b16 %v643
    %v2185 = vunpack.c.h.b16 %v643
    %v2186 = vunpack.c.l.b16 %v644
    %v2187 = vunpack.c.h.b16 %v644
    %v2188 = vunpack.c.l.b16 %v645
    %v2189 = vunpack.c.h.b16 %v645
    %v2190 = vunpack.c.l.b16 %v646
    %v2191 = vunpack.c.h.b16 %v646
    %v2192 = vunpack.c.l.b16 %v647
    %v2193 = vunpack.c.h.b16 %v647
    %v2194 = vunpack.c.l.b16 %v648
    %v2195 = vunpack.c.h.b16 %v648
    %v2196 = vunpack.c.l.b16 %v649
    %v2197 = vunpack.c.h.b16 %v649
    %v2198 = vunpack.c.l.b16 %v650
    %v2199 = vunpack.c.h.b16 %v650
    %v2200 = vunpack.c.l.b16 %v651
    %v2201 = vunpack.c.h.b16 %v651
    %v2202 = vunpack.c.l.b16 %v652
    %v2203 = vunpack.c.h.b16 %v652
    %v2204 = vunpack.c.l.b16 %v653
    %v2205 = vunpack.c.h.b16 %v653
    %v2206 = vunpack.c.l.b16 %v654
    %v2207 = vunpack.c.h.b16 %v654
    %v2208 = vunpack.c.l.b16 %v655
    %v2209 = vunpack.c.h.b16 %v655
    %v2210 = vunpack.c.l.b16 %v656
    %v2211 = vunpack.c.h.b16 %v656
    %v2212 = vunpack.c.l.b16 %v657
    %v2213 = vunpack.c.h.b16 %v657
    %v2214 = vunpack.c.l.b16 %v658
    %v2215 = vunpack.c.h.b16 %v658
    %v2216 = vunpack.c.l.b16 %v659
    %v2217 = vunpack.c.h.b16 %v659
    %v2218 = vpack.c.b16 %v1198, %v1194
    %v2219 = vpack.c.b16 %v1199, %v1195
    %v2220 = vpack.c.b16 %v1200, %v1196
    %v2221 = vpack.c.b16 %v1201, %v1197
    %v2222 = vpack.c.b16 %v1206, %v1202
    %v2223 = vpack.c.b16 %v1207, %v1203
    %v2224 = vpack.c.b16 %v1208, %v1204
    %v2225 = vpack.c.b16 %v1209, %v1205
    %v2226 = vpack.c.b16 %v1214, %v1210
    %v2227 = vpack.c.b16 %v1215, %v1211
    %v2228 = vpack.c.b16 %v1216, %v1212
    %v2229 = vpack.c.b16 %v1217, %v1213
    %v2230 = vpack.c.b16 %v1222, %v1218
    %v2231 = vpack.c.b16 %v1223, %v1219
    %v2232 = vpack.c.b16 %v1224, %v1220
    %v2233 = vpack.c.b16 %v1225, %v1221
    %v2234 = vpack.c.b16 %v1230, %v1226
    %v2235 = vpack.c.b16 %v1231, %v1227
    %v2236 = vpack.c.b16 %v1232, %v1228
    %v2237 = vpack.c.b16 %v1233, %v1229
    %v2238 = vpack.c.b16 %v1238, %v1234
    %v2239 = vpack.c.b16 %v1239, %v1235
    %v2240 = vpack.c.b16 %v1240, %v1236
    %v2241 = vpack.c.b16 %v1241, %v1237
    %v2242 = vpack.c.b16 %v1246, %v1242
    %v2243 = vpack.c.b16 %v1247, %v1243
    %v2244 = vpack.c.b16 %v1248, %v1244
    %v2245 = vpack.c.b16 %v1249, %v1245
    %v2246 = vpack.c.b16 %v1254, %v1250
    %v2247 = vpack.c.b16 %v1255, %v1251
    %v2248 = vpack.c.b16 %v1256, %v1252
    %v2249 = vpack.c.b16 %v1257, %v1253
    %v2250 = vpack.c.b16 %v1262, %v1258
    %v2251 = vpack.c.b16 %v1263, %v1259
    %v2252 = vpack.c.b16 %v1264, %v1260
    %v2253 = vpack.c.b16 %v1265, %v1261
    %v2254 = vpack.c.b16 %v1270, %v1266
    %v2255 = vpack.c.b16 %v1271, %v1267
    %v2256 = vpack.c.b16 %v1272, %v1268
    %v2257 = vpack.c.b16 %v1273, %v1269
    %v2258 = vpack.c.b16 %v1278, %v1274
    %v2259 = vpack.c.b16 %v1279, %v1275
    %v2260 = vpack.c.b16 %v1280, %v1276
    %v2261 = vpack.c.b16 %v1281, %v1277
    %v2262 = vpack.c.b16 %v1286, %v1282
    %v2263 = vpack.c.b16 %v1287, %v1283
    %v2264 = vpack.c.b16 %v1288, %v1284
    %v2265 = vpack.c.b16 %v1289, %v1285
    %v2266 = vpack.c.b16 %v1294, %v1290
    %v2267 = vpack.c.b16 %v1295, %v1291
    %v2268 = vpack.c.b16 %v1296, %v1292
    %v2269 = vpack.c.b16 %v1297, %v1293
    %v2270 = vpack.c.b16 %v1302, %v1298
    %v2271 = vpack.c.b16 %v1303, %v1299
    %v2272 = vpack.c.b16 %v1304, %v1300
    %v2273 = vpack.c.b16 %v1305, %v1301
    %v2274 = vpack.c.b16 %v1310, %v1306
    %v2275 = vpack.c.b16 %v1311, %v1307
    %v2276 = vpack.c.b16 %v1312, %v1308
    %v2277 = vpack.c.b16 %v1313, %v1309
    %v2278 = vpack.c.b16 %v1318, %v1314
    %v2279 = vpack.c.b16 %v1319, %v1315
    %v2280 = vpack.c.b16 %v1320, %v1316
    %v2281 = vpack.c.b16 %v1321, %v1317
    %v2282 = vpack.c.b16 %v1326, %v1322
    %v2283 = vpack.c.b16 %v1327, %v1323
    %v2284 = vpack.c.b16 %v1328, %v1324
    %v2285 = vpack.c.b16 %v1329, %v1325
    %v2286 = vpack.c.b16 %v1334, %v1330
    %v2287 = vpack.c.b16 %v1335, %v1331
    %v2288 = vpack.c.b16 %v1336, %v1332
    %v2289 = vpack.c.b16 %v1337, %v1333
    %v2290 = vpack.c.b16 %v1342, %v1338
    %v2291 = vpack.c.b16 %v1343, %v1339
    %v2292 = vpack.c.b16 %v1344, %v1340
    %v2293 = vpack.c.b16 %v1345, %v1341
    %v2294 = vpack.c.b16 %v1350, %v1346
    %v2295 = vpack.c.b16 %v1351, %v1347
    %v2296 = vpack.c.b16 %v1352, %v1348
    %v2297 = vpack.c.b16 %v1353, %v1349
    %v2298 = vpack.c.b16 %v1358, %v1354
    %v2299 = vpack.c.b16 %v1359, %v1355
    %v2300 = vpack.c.b16 %v1360, %v1356
    %v2301 = vpack.c.b16 %v1361, %v1357
    %v2302 = vpack.c.b16 %v1366, %v1362
    %v2303 = vpack.c.b16 %v1367, %v1363
    %v2304 = vpack.c.b16 %v1368, %v1364
    %v2305 = vpack.c.b16 %v1369, %v1365
    %v2306 = vpack.c.b16 %v1374, %v1370
    %v2307 = vpack.c.b16 %v1375, %v1371
    %v2308 = vpack.c.b16 %v1376, %v1372
    %v2309 = vpack.c.b16 %v1377, %v1373
    %v2310 = vpack.c.b16 %v1382, %v1378
    %v2311 = vpack.c.b16 %v1383, %v1379
    %v2312 = vpack.c.b16 %v1384, %v1380
    %v2313 = vpack.c.b16 %v1385, %v1381
    %v2314 = vpack.c.b16 %v1390, %v1386
    %v2315 = vpack.c.b16 %v1391, %v1387
    %v2316 = vpack.c.b16 %v1392, %v1388
    %v2317 = vpack.c.b16 %v1393, %v1389
    %v2318 = vpack.c.b16 %v1398, %v1394
    %v2319 = vpack.c.b16 %v1399, %v1395
    %v2320 = vpack.c.b16 %v1400, %v1396
    %v2321 = vpack.c.b16 %v1401, %v1397
    %v2322 = vpack.c.b16 %v1406, %v1402
    %v2323 = vpack.c.b16 %v1407, %v1403
    %v2324 = vpack.c.b16 %v1408, %v1404
    %v2325 = vpack.c.b16 %v1409, %v1405
    %v2326 = vpack.c.b16 %v1414, %v1410
    %v2327 = vpack.c.b16 %v1415, %v1411
    %v2328 = vpack.c.b16 %v1416, %v1412
    %v2329 = vpack.c.b16 %v1417, %v1413
    %v2330 = vpack.c.b16 %v1422, %v1418
    %v2331 = vpack.c.b16 %v1423, %v1419
    %v2332 = vpack.c.b16 %v1424, %v1420
    %v2333 = vpack.c.b16 %v1425, %v1421
    %v2334 = vpack.c.b16 %v1430, %v1426
    %v2335 = vpack.c.b16 %v1431, %v1427
    %v2336 = vpack.c.b16 %v1432, %v1428
    %v2337 = vpack.c.b16 %v1433, %v1429
    %v2338 = vpack.c.b16 %v1438, %v1434
    %v2339 = vpack.c.b16 %v1439, %v1435
    %v2340 = vpack.c.b16 %v1440, %v1436
    %v2341 = vpack.c.b16 %v1441, %v1437
    %v2342 = vpack.c.b16 %v1446, %v1442
    %v2343 = vpack.c.b16 %v1447, %v1443
    %v2344 = vpack.c.b16 %v1448, %v1444
    %v2345 = vpack.c.b16 %v1449, %v1445
    %v2346 = vpack.c.b16 %v1454, %v1450
    %v2347 = vpack.c.b16 %v1455, %v1451
    %v2348 = vpack.c.b16 %v1456, %v1452
    %v2349 = vpack.c.b16 %v1457, %v1453
    %v2350 = vpack.c.b16 %v1462, %v1458
    %v2351 = vpack.c.b16 %v1463, %v1459
    %v2352 = vpack.c.b16 %v1464, %v1460
    %v2353 = vpack.c.b16 %v1465, %v1461
    %v2354 = vpack.c.b16 %v1470, %v1466
    %v2355 = vpack.c.b16 %v1471, %v1467
    %v2356 = vpack.c.b16 %v1472, %v1468
    %v2357 = vpack.c.b16 %v1473, %v1469
    %v2358 = vpack.c.b16 %v1478, %v1474
    %v2359 = vpack.c.b16 %v1479, %v1475
    %v2360 = vpack.c.b16 %v1480, %v1476
    %v2361 = vpack.c.b16 %v1481, %v1477
    %v2362 = vpack.c.b16 %v1486, %v1482
    %v2363 = vpack.c.b16 %v1487, %v1483
    %v2364 = vpack.c.b16 %v1488, %v1484
    %v2365 = vpack.c.b16 %v1489, %v1485
    %v2366 = vpack.c.b16 %v1494, %v1490
    %v2367 = vpack.c.b16 %v1495, %v1491
    %v2368 = vpack.c.b16 %v1496, %v1492
    %v2369 = vpack.c.b16 %v1497, %v1493
    %v2370 = vpack.c.b16 %v1502, %v1498
    %v2371 = vpack.c.b16 %v1503, %v1499
    %v2372 = vpack.c.b16 %v1504, %v1500
    %v2373 = vpack.c.b16 %v1505, %v1501
    %v2374 = vpack.c.b16 %v1510, %v1506
    %v2375 = vpack.c.b16 %v1511, %v1507
    %v2376 = vpack.c.b16 %v1512, %v1508
    %v2377 = vpack.c.b16 %v1513, %v1509
    %v2378 = vpack.c.b16 %v1518, %v1514
    %v2379 = vpack.c.b16 %v1519, %v1515
    %v2380 = vpack.c.b16 %v1520, %v1516
    %v2381 = vpack.c.b16 %v1521, %v1517
    %v2382 = vpack.c.b16 %v1526, %v1522
    %v2383 = vpack.c.b16 %v1527, %v1523
    %v2384 = vpack.c.b16 %v1528, %v1524
    %v2385 = vpack.c.b16 %v1529, %v1525
    %v2386 = vpack.c.b16 %v1534, %v1530
    %v2387 = vpack.c.b16 %v1535, %v1531
    %v2388 = vpack.c.b16 %v1536, %v1532
    %v2389 = vpack.c.b16 %v1537, %v1533
    %v2390 = vpack.c.b16 %v1542, %v1538
    %v2391 = vpack.c.b16 %v1543, %v1539
    %v2392 = vpack.c.b16 %v1544, %v1540
    %v2393 = vpack.c.b16 %v1545, %v1541
    %v2394 = vpack.c.b16 %v1550, %v1546
    %v2395 = vpack.c.b16 %v1551, %v1547
    %v2396 = vpack.c.b16 %v1552, %v1548
    %v2397 = vpack.c.b16 %v1553, %v1549
    %v2398 = vpack.c.b16 %v1558, %v1554
    %v2399 = vpack.c.b16 %v1559, %v1555
    %v2400 = vpack.c.b16 %v1560, %v1556
    %v2401 = vpack.c.b16 %v1561, %v1557
    %v2402 = vpack.c.b16 %v1566, %v1562
    %v2403 = vpack.c.b16 %v1567, %v1563
    %v2404 = vpack.c.b16 %v1568, %v1564
    %v2405 = vpack.c.b16 %v1569, %v1565
    %v2406 = vpack.c.b16 %v1574, %v1570
    %v2407 = vpack.c.b16 %v1575, %v1571
    %v2408 = vpack.c.b16 %v1576, %v1572
    %v2409 = vpack.c.b16 %v1577, %v1573
    %v2410 = vpack.c.b16 %v1582, %v1578
    %v2411 = vpack.c.b16 %v1583, %v1579
    %v2412 = vpack.c.b16 %v1584, %v1580
    %v2413 = vpack.c.b16 %v1585, %v1581
    %v2414 = vpack.c.b16 %v1590, %v1586
    %v2415 = vpack.c.b16 %v1591, %v1587
    %v2416 = vpack.c.b16 %v1592, %v1588
    %v2417 = vpack.c.b16 %v1593, %v1589
    %v2418 = vpack.c.b16 %v1598, %v1594
    %v2419 = vpack.c.b16 %v1599, %v1595
    %v2420 = vpack.c.b16 %v1600, %v1596
    %v2421 = vpack.c.b16 %v1601, %v1597
    %v2422 = vpack.c.b16 %v1606, %v1602
    %v2423 = vpack.c.b16 %v1607, %v1603
    %v2424 = vpack.c.b16 %v1608, %v1604
    %v2425 = vpack.c.b16 %v1609, %v1605
    %v2426 = vpack.c.b16 %v1614, %v1610
    %v2427 = vpack.c.b16 %v1615, %v1611
    %v2428 = vpack.c.b16 %v1616, %v1612
    %v2429 = vpack.c.b16 %v1617, %v1613
    %v2430 = vpack.c.b16 %v1622, %v1618
    %v2431 = vpack.c.b16 %v1623, %v1619
    %v2432 = vpack.c.b16 %v1624, %v1620
    %v2433 = vpack.c.b16 %v1625, %v1621
    %v2434 = vpack.c.b16 %v1630, %v1626
    %v2435 = vpack.c.b16 %v1631, %v1627
    %v2436 = vpack.c.b16 %v1632, %v1628
    %v2437 = vpack.c.b16 %v1633, %v1629
    %v2438 = vpack.c.b16 %v1638, %v1634
    %v2439 = vpack.c.b16 %v1639, %v1635
    %v2440 = vpack.c.b16 %v1640, %v1636
    %v2441 = vpack.c.b16 %v1641, %v1637
    %v2442 = vpack.c.b16 %v1646, %v1642
    %v2443 = vpack.c.b16 %v1647, %v1643
    %v2444 = vpack.c.b16 %v1648, %v1644
    %v2445 = vpack.c.b16 %v1649, %v1645
    %v2446 = vpack.c.b16 %v1654, %v1650
    %v2447 = vpack.c.b16 %v1655, %v1651
    %v2448 = vpack.c.b16 %v1656, %v1652
    %v2449 = vpack.c.b16 %v1657, %v1653
    %v2450 = vpack.c.b16 %v1662, %v1658
    %v2451 = vpack.c.b16 %v1663, %v1659
    %v2452 = vpack.c.b16 %v1664, %v1660
    %v2453 = vpack.c.b16 %v1665, %v1661
    %v2454 = vpack.c.b16 %v1670, %v1666
    %v2455 = vpack.c.b16 %v1671, %v1667
    %v2456 = vpack.c.b16 %v1672, %v1668
    %v2457 = vpack.c.b16 %v1673, %v1669
    %v2458 = vpack.c.b16 %v1678, %v1674
    %v2459 = vpack.c.b16 %v1679, %v1675
    %v2460 = vpack.c.b16 %v1680, %v1676
    %v2461 = vpack.c.b16 %v1681, %v1677
    %v2462 = vpack.c.b16 %v1686, %v1682
    %v2463 = vpack.c.b16 %v1687, %v1683
    %v2464 = vpack.c.b16 %v1688, %v1684
    %v2465 = vpack.c.b16 %v1689, %v1685
    %v2466 = vpack.c.b16 %v1694, %v1690
    %v2467 = vpack.c.b16 %v1695, %v1691
    %v2468 = vpack.c.b16 %v1696, %v1692
    %v2469 = vpack.c.b16 %v1697, %v1693
    %v2470 = vpack.c.b16 %v1702, %v1698
    %v2471 = vpack.c.b16 %v1703, %v1699
    %v2472 = vpack.c.b16 %v1704, %v1700
    %v2473 = vpack.c.b16 %v1705, %v1701
    %v2474 = vpack.c.b16 %v1710, %v1706
    %v2475 = vpack.c.b16 %v1711, %v1707
    %v2476 = vpack.c.b16 %v1712, %v1708
    %v2477 = vpack.c.b16 %v1713, %v1709
    %v2478 = vpack.c.b16 %v1718, %v1714
    %v2479 = vpack.c.b16 %v1719, %v1715
    %v2480 = vpack.c.b16 %v1720, %v1716
    %v2481 = vpack.c.b16 %v1721, %v1717
    %v2482 = vpack.c.b16 %v1726, %v1722
    %v2483 = vpack.c.b16 %v1727, %v1723
    %v2484 = vpack.c.b16 %v1728, %v1724
    %v2485 = vpack.c.b16 %v1729, %v1725
    %v2486 = vpack.c.b16 %v1734, %v1730
    %v2487 = vpack.c.b16 %v1735, %v1731
    %v2488 = vpack.c.b16 %v1736, %v1732
    %v2489 = vpack.c.b16 %v1737, %v1733
    %v2490 = vpack.c.b16 %v1742, %v1738
    %v2491 = vpack.c.b16 %v1743, %v1739
    %v2492 = vpack.c.b16 %v1744, %v1740
    %v2493 = vpack.c.b16 %v1745, %v1741
    %v2494 = vpack.c.b16 %v1750, %v1746
    %v2495 = vpack.c.b16 %v1751, %v1747
    %v2496 = vpack.c.b16 %v1752, %v1748
    %v2497 = vpack.c.b16 %v1753, %v1749
    %v2498 = vpack.c.b16 %v1758, %v1754
    %v2499 = vpack.c.b16 %v1759, %v1755
    %v2500 = vpack.c.b16 %v1760, %v1756
    %v2501 = vpack.c.b16 %v1761, %v1757
    %v2502 = vpack.c.b16 %v1766, %v1762
    %v2503 = vpack.c.b16 %v1767, %v1763
    %v2504 = vpack.c.b16 %v1768, %v1764
    %v2505 = vpack.c.b16 %v1769, %v1765
    %v2506 = vpack.c.b16 %v1774, %v1770
    %v2507 = vpack.c.b16 %v1775, %v1771
    %v2508 = vpack.c.b16 %v1776, %v1772
    %v2509 = vpack.c.b16 %v1777, %v1773
    %v2510 = vpack.c.b16 %v1782, %v1778
    %v2511 = vpack.c.b16 %v1783, %v1779
    %v2512 = vpack.c.b16 %v1784, %v1780
    %v2513 = vpack.c.b16 %v1785, %v1781
    %v2514 = vpack.c.b16 %v1790, %v1786
    %v2515 = vpack.c.b16 %v1791, %v1787
    %v2516 = vpack.c.b16 %v1792, %v1788
    %v2517 = vpack.c.b16 %v1793, %v1789
    %v2518 = vpack.c.b16 %v1798, %v1794
    %v2519 = vpack.c.b16 %v1799, %v1795
    %v2520 = vpack.c.b16 %v1800, %v1796
    %v2521 = vpack.c.b16 %v1801, %v1797
    %v2522 = vpack.c.b16 %v1806, %v1802
    %v2523 = vpack.c.b16 %v1807, %v1803
    %v2524 = vpack.c.b16 %v1808, %v1804
    %v2525 = vpack.c.b16 %v1809, %v1805
    %v2526 = vpack.c.b16 %v1814, %v1810
    %v2527 = vpack.c.b16 %v1815, %v1811
    %v2528 = vpack.c.b16 %v1816, %v1812
    %v2529 = vpack.c.b16 %v1817, %v1813
    %v2530 = vpack.c.b16 %v1822, %v1818
    %v2531 = vpack.c.b16 %v1823, %v1819
    %v2532 = vpack.c.b16 %v1824, %v1820
    %v2533 = vpack.c.b16 %v1825, %v1821
    %v2534 = vpack.c.b16 %v1830, %v1826
    %v2535 = vpack.c.b16 %v1831, %v1827
    %v2536 = vpack.c.b16 %v1832, %v1828
    %v2537 = vpack.c.b16 %v1833, %v1829
    %v2538 = vpack.c.b16 %v1838, %v1834
    %v2539 = vpack.c.b16 %v1839, %v1835
    %v2540 = vpack.c.b16 %v1840, %v1836
    %v2541 = vpack.c.b16 %v1841, %v1837
    %v2542 = vpack.c.b16 %v1846, %v1842
    %v2543 = vpack.c.b16 %v1847, %v1843
    %v2544 = vpack.c.b16 %v1848, %v1844
    %v2545 = vpack.c.b16 %v1849, %v1845
    %v2546 = vpack.c.b16 %v1854, %v1850
    %v2547 = vpack.c.b16 %v1855, %v1851
    %v2548 = vpack.c.b16 %v1856, %v1852
    %v2549 = vpack.c.b16 %v1857, %v1853
    %v2550 = vpack.c.b16 %v1862, %v1858
    %v2551 = vpack.c.b16 %v1863, %v1859
    %v2552 = vpack.c.b16 %v1864, %v1860
    %v2553 = vpack.c.b16 %v1865, %v1861
    %v2554 = vpack.c.b16 %v1870, %v1866
    %v2555 = vpack.c.b16 %v1871, %v1867
    %v2556 = vpack.c.b16 %v1872, %v1868
    %v2557 = vpack.c.b16 %v1873, %v1869
    %v2558 = vpack.c.b16 %v1878, %v1874
    %v2559 = vpack.c.b16 %v1879, %v1875
    %v2560 = vpack.c.b16 %v1880, %v1876
    %v2561 = vpack.c.b16 %v1881, %v1877
    %v2562 = vpack.c.b16 %v1886, %v1882
    %v2563 = vpack.c.b16 %v1887, %v1883
    %v2564 = vpack.c.b16 %v1888, %v1884
    %v2565 = vpack.c.b16 %v1889, %v1885
    %v2566 = vpack.c.b16 %v1894, %v1890
    %v2567 = vpack.c.b16 %v1895, %v1891
    %v2568 = vpack.c.b16 %v1896, %v1892
    %v2569 = vpack.c.b16 %v1897, %v1893
    %v2570 = vpack.c.b16 %v1902, %v1898
    %v2571 = vpack.c.b16 %v1903, %v1899
    %v2572 = vpack.c.b16 %v1904, %v1900
    %v2573 = vpack.c.b16 %v1905, %v1901
    %v2574 = vpack.c.b16 %v1910, %v1906
    %v2575 = vpack.c.b16 %v1911, %v1907
    %v2576 = vpack.c.b16 %v1912, %v1908
    %v2577 = vpack.c.b16 %v1913, %v1909
    %v2578 = vpack.c.b16 %v1918, %v1914
    %v2579 = vpack.c.b16 %v1919, %v1915
    %v2580 = vpack.c.b16 %v1920, %v1916
    %v2581 = vpack.c.b16 %v1921, %v1917
    %v2582 = vpack.c.b16 %v1926, %v1922
    %v2583 = vpack.c.b16 %v1927, %v1923
    %v2584 = vpack.c.b16 %v1928, %v1924
    %v2585 = vpack.c.b16 %v1929, %v1925
    %v2586 = vpack.c.b16 %v1934, %v1930
    %v2587 = vpack.c.b16 %v1935, %v1931
    %v2588 = vpack.c.b16 %v1936, %v1932
    %v2589 = vpack.c.b16 %v1937, %v1933
    %v2590 = vpack.c.b16 %v1942, %v1938
    %v2591 = vpack.c.b16 %v1943, %v1939
    %v2592 = vpack.c.b16 %v1944, %v1940
    %v2593 = vpack.c.b16 %v1945, %v1941
    %v2594 = vpack.c.b16 %v1950, %v1946
    %v2595 = vpack.c.b16 %v1951, %v1947
    %v2596 = vpack.c.b16 %v1952, %v1948
    %v2597 = vpack.c.b16 %v1953, %v1949
    %v2598 = vpack.c.b16 %v1958, %v1954
    %v2599 = vpack.c.b16 %v1959, %v1955
    %v2600 = vpack.c.b16 %v1960, %v1956
    %v2601 = vpack.c.b16 %v1961, %v1957
    %v2602 = vpack.c.b16 %v1966, %v1962
    %v2603 = vpack.c.b16 %v1967, %v1963
    %v2604 = vpack.c.b16 %v1968, %v1964
    %v2605 = vpack.c.b16 %v1969, %v1965
    %v2606 = vpack.c.b16 %v1974, %v1970
    %v2607 = vpack.c.b16 %v1975, %v1971
    %v2608 = vpack.c.b16 %v1976, %v1972
    %v2609 = vpack.c.b16 %v1977, %v1973
    %v2610 = vpack.c.b16 %v1982, %v1978
    %v2611 = vpack.c.b16 %v1983, %v1979
    %v2612 = vpack.c.b16 %v1984, %v1980
    %v2613 = vpack.c.b16 %v1985, %v1981
    %v2614 = vpack.c.b16 %v1990, %v1986
    %v2615 = vpack.c.b16 %v1991, %v1987
    %v2616 = vpack.c.b16 %v1992, %v1988
    %v2617 = vpack.c.b16 %v1993, %v1989
    %v2618 = vpack.c.b16 %v1998, %v1994
    %v2619 = vpack.c.b16 %v1999, %v1995
    %v2620 = vpack.c.b16 %v2000, %v1996
    %v2621 = vpack.c.b16 %v2001, %v1997
    %v2622 = vpack.c.b16 %v2006, %v2002
    %v2623 = vpack.c.b16 %v2007, %v2003
    %v2624 = vpack.c.b16 %v2008, %v2004
    %v2625 = vpack.c.b16 %v2009, %v2005
    %v2626 = vpack.c.b16 %v2014, %v2010
    %v2627 = vpack.c.b16 %v2015, %v2011
    %v2628 = vpack.c.b16 %v2016, %v2012
    %v2629 = vpack.c.b16 %v2017, %v2013
    %v2630 = vpack.c.b16 %v2022, %v2018
    %v2631 = vpack.c.b16 %v2023, %v2019
    %v2632 = vpack.c.b16 %v2024, %v2020
    %v2633 = vpack.c.b16 %v2025, %v2021
    %v2634 = vpack.c.b16 %v2030, %v2026
    %v2635 = vpack.c.b16 %v2031, %v2027
    %v2636 = vpack.c.b16 %v2032, %v2028
    %v2637 = vpack.c.b16 %v2033, %v2029
    %v2638 = vpack.c.b16 %v2038, %v2034
    %v2639 = vpack.c.b16 %v2039, %v2035
    %v2640 = vpack.c.b16 %v2040, %v2036
    %v2641 = vpack.c.b16 %v2041, %v2037
    %v2642 = vpack.c.b16 %v2046, %v2042
    %v2643 = vpack.c.b16 %v2047, %v2043
    %v2644 = vpack.c.b16 %v2048, %v2044
    %v2645 = vpack.c.b16 %v2049, %v2045
    %v2646 = vpack.c.b16 %v2054, %v2050
    %v2647 = vpack.c.b16 %v2055, %v2051
    %v2648 = vpack.c.b16 %v2056, %v2052
    %v2649 = vpack.c.b16 %v2057, %v2053
    %v2650 = vpack.c.b16 %v2062, %v2058
    %v2651 = vpack.c.b16 %v2063, %v2059
    %v2652 = vpack.c.b16 %v2064, %v2060
    %v2653 = vpack.c.b16 %v2065, %v2061
    %v2654 = vpack.c.b16 %v2070, %v2066
    %v2655 = vpack.c.b16 %v2071, %v2067
    %v2656 = vpack.c.b16 %v2072, %v2068
    %v2657 = vpack.c.b16 %v2073, %v2069
    %v2658 = vpack.c.b16 %v2078, %v2074
    %v2659 = vpack.c.b16 %v2079, %v2075
    %v2660 = vpack.c.b16 %v2080, %v2076
    %v2661 = vpack.c.b16 %v2081, %v2077
    %v2662 = vpack.c.b16 %v2086, %v2082
    %v2663 = vpack.c.b16 %v2087, %v2083
    %v2664 = vpack.c.b16 %v2088, %v2084
    %v2665 = vpack.c.b16 %v2089, %v2085
    %v2666 = vpack.c.b16 %v2094, %v2090
    %v2667 = vpack.c.b16 %v2095, %v2091
    %v2668 = vpack.c.b16 %v2096, %v2092
    %v2669 = vpack.c.b16 %v2097, %v2093
    %v2670 = vpack.c.b16 %v2102, %v2098
    %v2671 = vpack.c.b16 %v2103, %v2099
    %v2672 = vpack.c.b16 %v2104, %v2100
    %v2673 = vpack.c.b16 %v2105, %v2101
    %v2674 = vpack.c.b16 %v2110, %v2106
    %v2675 = vpack.c.b16 %v2111, %v2107
    %v2676 = vpack.c.b16 %v2112, %v2108
    %v2677 = vpack.c.b16 %v2113, %v2109
    %v2678 = vpack.c.b16 %v2118, %v2114
    %v2679 = vpack.c.b16 %v2119, %v2115
    %v2680 = vpack.c.b16 %v2120, %v2116
    %v2681 = vpack.c.b16 %v2121, %v2117
    %v2682 = vpack.c.b16 %v2126, %v2122
    %v2683 = vpack.c.b16 %v2127, %v2123
    %v2684 = vpack.c.b16 %v2128, %v2124
    %v2685 = vpack.c.b16 %v2129, %v2125
    %v2686 = vpack.c.b16 %v2134, %v2130
    %v2687 = vpack.c.b16 %v2135, %v2131
    %v2688 = vpack.c.b16 %v2136, %v2132
    %v2689 = vpack.c.b16 %v2137, %v2133
    %v2690 = vpack.c.b16 %v2142, %v2138
    %v2691 = vpack.c.b16 %v2143, %v2139
    %v2692 = vpack.c.b16 %v2144, %v2140
    %v2693 = vpack.c.b16 %v2145, %v2141
    %v2694 = vpack.c.b16 %v2150, %v2146
    %v2695 = vpack.c.b16 %v2151, %v2147
    %v2696 = vpack.c.b16 %v2152, %v2148
    %v2697 = vpack.c.b16 %v2153, %v2149
    %v2698 = vpack.c.b16 %v2158, %v2154
    %v2699 = vpack.c.b16 %v2159, %v2155
    %v2700 = vpack.c.b16 %v2160, %v2156
    %v2701 = vpack.c.b16 %v2161, %v2157
    %v2702 = vpack.c.b16 %v2166, %v2162
    %v2703 = vpack.c.b16 %v2167, %v2163
    %v2704 = vpack.c.b16 %v2168, %v2164
    %v2705 = vpack.c.b16 %v2169, %v2165
    %v2706 = vpack.c.b16 %v2174, %v2170
    %v2707 = vpack.c.b16 %v2175, %v2171
    %v2708 = vpack.c.b16 %v2176, %v2172
    %v2709 = vpack.c.b16 %v2177, %v2173
    %v2710 = vpack.c.b16 %v2182, %v2178
    %v2711 = vpack.c.b16 %v2183, %v2179
    %v2712 = vpack.c.b16 %v2184, %v2180
    %v2713 = vpack.c.b16 %v2185, %v2181
    %v2714 = vpack.c.b16 %v2190, %v2186
    %v2715 = vpack.c.b16 %v2191, %v2187
    %v2716 = vpack.c.b16 %v2192, %v2188
    %v2717 = vpack.c.b16 %v2193, %v2189
    %v2718 = vpack.c.b16 %v2198, %v2194
    %v2719 = vpack.c.b16 %v2199, %v2195
    %v2720 = vpack.c.b16 %v2200, %v2196
    %v2721 = vpack.c.b16 %v2201, %v2197
    %v2722 = vpack.c.b16 %v2206, %v2202
    %v2723 = vpack.c.b16 %v2207, %v2203
    %v2724 = vpack.c.b16 %v2208, %v2204
    %v2725 = vpack.c.b16 %v2209, %v2205
    %v2726 = vpack.c.b16 %v2214, %v2210
    %v2727 = vpack.c.b16 %v2215, %v2211
    %v2728 = vpack.c.b16 %v2216, %v2212
    %v2729 = vpack.c.b16 %v2217, %v2213
    %3242 = vmatprep.subr.bf16.mxu0 %v2219
    %3243 = vmatpush1.bf16.msra.mxu0 %v2218
    %3244 = vmatprep.subr.bf16.mxu0 %v2223
    %3245 = vmatpush1.bf16.msra.mxu0 %v2222
    %3246 = vmatprep.subr.bf16.mxu0 %v2227
    %3247 = vmatpush1.bf16.msra.mxu0 %v2226
    %3248 = vmatprep.subr.bf16.mxu0 %v2231
    %3249 = vmatpush1.bf16.msra.mxu0 %v2230
    %3250 = vmatprep.subr.bf16.mxu0 %v2235
    %3251 = vmatpush1.bf16.msra.mxu0 %v2234
    %3252 = vmatprep.subr.bf16.mxu0 %v2239
    %3253 = vmatpush1.bf16.msra.mxu0 %v2238
    %3254 = vmatprep.subr.bf16.mxu0 %v2243
    %3255 = vmatpush1.bf16.msra.mxu0 %v2242
    %3256 = vmatprep.subr.bf16.mxu0 %v2247
    %3257 = vmatpush1.bf16.msra.mxu0 %v2246
    %3258 = vmatprep.subr.bf16.mxu0 %v2251
    %3259 = vmatpush1.bf16.msra.mxu0 %v2250
    %3260 = vmatprep.subr.bf16.mxu0 %v2255
    %3261 = vmatpush1.bf16.msra.mxu0 %v2254
    %3262 = vmatprep.subr.bf16.mxu0 %v2259
    %3263 = vmatpush1.bf16.msra.mxu0 %v2258
    %3264 = vmatprep.subr.bf16.mxu0 %v2263
    %3265 = vmatpush1.bf16.msra.mxu0 %v2262
    %3266 = vmatprep.subr.bf16.mxu0 %v2267
    %3267 = vmatpush1.bf16.msra.mxu0 %v2266
    %3268 = vmatprep.subr.bf16.mxu0 %v2271
    %3269 = vmatpush1.bf16.msra.mxu0 %v2270
    %3270 = vmatprep.subr.bf16.mxu0 %v2275
    %3271 = vmatpush1.bf16.msra.mxu0 %v2274
    %3272 = vmatprep.subr.bf16.mxu0 %v2279
    %3273 = vmatpush1.bf16.msra.mxu0 %v2278
    %3274 = vmatprep.mubr.bf16.mxu0 %v133
    %3275 = vmatmul.mubr.bf16.gmra.mrb[0].mxu0 %v132
    %v3276 = vpop.f32.mrb[0].mxu0
    %v3277 = vadd.f32 %v665, %v3276
    %v3278 = vpop.f32.mrb[0].mxu0
    %v3279 = vadd.f32 %v669, %v3278
    %v3280 = vpop.f32.mrb[0].mxu0
    %v3281 = vadd.f32 %v665, %v3280
    %v3282 = vpop.f32.mrb[0].mxu0
    %v3283 = vadd.f32 %v669, %v3282
    %3284 = vdwg.mxu0
    %3285 = vmatprep.subr.bf16.mxu0 %v2283
    %3286 = vmatpush1.bf16.msra.mxu0 %v2282
    %3287 = vmatprep.subr.bf16.mxu0 %v2287
    %3288 = vmatpush1.bf16.msra.mxu0 %v2286
    %3289 = vmatprep.subr.bf16.mxu0 %v2291
    %3290 = vmatpush1.bf16.msra.mxu0 %v2290
    %3291 = vmatprep.subr.bf16.mxu0 %v2295
    %3292 = vmatpush1.bf16.msra.mxu0 %v2294
    %3293 = vmatprep.subr.bf16.mxu0 %v2299
    %3294 = vmatpush1.bf16.msra.mxu0 %v2298
    %3295 = vmatprep.subr.bf16.mxu0 %v2303
    %3296 = vmatpush1.bf16.msra.mxu0 %v2302
    %3297 = vmatprep.subr.bf16.mxu0 %v2307
    %3298 = vmatpush1.bf16.msra.mxu0 %v2306
    %3299 = vmatprep.subr.bf16.mxu0 %v2311
    %3300 = vmatpush1.bf16.msra.mxu0 %v2310
    %3301 = vmatprep.subr.bf16.mxu0 %v2315
    %3302 = vmatpush1.bf16.msra.mxu0 %v2314
    %3303 = vmatprep.subr.bf16.mxu0 %v2319
    %3304 = vmatpush1.bf16.msra.mxu0 %v2318
    %3305 = vmatprep.subr.bf16.mxu0 %v2323
    %3306 = vmatpush1.bf16.msra.mxu0 %v2322
    %3307 = vmatprep.subr.bf16.mxu0 %v2327
    %3308 = vmatpush1.bf16.msra.mxu0 %v2326
    %3309 = vmatprep.subr.bf16.mxu0 %v2331
    %3310 = vmatpush1.bf16.msra.mxu0 %v2330
    %3311 = vmatprep.subr.bf16.mxu0 %v2335
    %3312 = vmatpush1.bf16.msra.mxu0 %v2334
    %3313 = vmatprep.subr.bf16.mxu0 %v2339
    %3314 = vmatpush1.bf16.msra.mxu0 %v2338
    %3315 = vmatprep.subr.bf16.mxu0 %v2343
    %3316 = vmatpush1.bf16.msra.mxu0 %v2342
    %3317 = vmatprep.mubr.bf16.mxu0 %v135
    %3318 = vmatmul.mubr.bf16.gmra.mrb[0].mxu0 %v134
    %v3319 = vpop.f32.mrb[0].mxu0
    %v3320 = vadd.f32 %v3277, %v3319
    %v3321 = vpop.f32.mrb[0].mxu0
    %v3322 = vadd.f32 %v3279, %v3321
    %v3323 = vpop.f32.mrb[0].mxu0
    %v3324 = vadd.f32 %v3281, %v3323
    %v3325 = vpop.f32.mrb[0].mxu0
    %v3326 = vadd.f32 %v3283, %v3325
    %3327 = vdwg.mxu0
    %3328 = vmatprep.subr.bf16.mxu0 %v2347
    %3329 = vmatpush1.bf16.msra.mxu0 %v2346
    %3330 = vmatprep.subr.bf16.mxu0 %v2351
    %3331 = vmatpush1.bf16.msra.mxu0 %v2350
    %3332 = vmatprep.subr.bf16.mxu0 %v2355
    %3333 = vmatpush1.bf16.msra.mxu0 %v2354
    %3334 = vmatprep.subr.bf16.mxu0 %v2359
    %3335 = vmatpush1.bf16.msra.mxu0 %v2358
    %3336 = vmatprep.subr.bf16.mxu0 %v2363
    %3337 = vmatpush1.bf16.msra.mxu0 %v2362
    %3338 = vmatprep.subr.bf16.mxu0 %v2367
    %3339 = vmatpush1.bf16.msra.mxu0 %v2366
    %3340 = vmatprep.subr.bf16.mxu0 %v2371
    %3341 = vmatpush1.bf16.msra.mxu0 %v2370
    %3342 = vmatprep.subr.bf16.mxu0 %v2375
    %3343 = vmatpush1.bf16.msra.mxu0 %v2374
    %3344 = vmatprep.subr.bf16.mxu0 %v2379
    %3345 = vmatpush1.bf16.msra.mxu0 %v2378
    %3346 = vmatprep.subr.bf16.mxu0 %v2383
    %3347 = vmatpush1.bf16.msra.mxu0 %v2382
    %3348 = vmatprep.subr.bf16.mxu0 %v2387
    %3349 = vmatpush1.bf16.msra.mxu0 %v2386
    %3350 = vmatprep.subr.bf16.mxu0 %v2391
    %3351 = vmatpush1.bf16.msra.mxu0 %v2390
    %3352 = vmatprep.subr.bf16.mxu0 %v2395
    %3353 = vmatpush1.bf16.msra.mxu0 %v2394
    %3354 = vmatprep.subr.bf16.mxu0 %v2399
    %3355 = vmatpush1.bf16.msra.mxu0 %v2398
    %3356 = vmatprep.subr.bf16.mxu0 %v2403
    %3357 = vmatpush1.bf16.msra.mxu0 %v2402
    %3358 = vmatprep.subr.bf16.mxu0 %v2407
    %3359 = vmatpush1.bf16.msra.mxu0 %v2406
    %3360 = vmatprep.mubr.bf16.mxu0 %v137
    %3361 = vmatmul.mubr.bf16.gmra.mrb[0].mxu0 %v136
    %v3362 = vpop.f32.mrb[0].mxu0
    %v3363 = vadd.f32 %v3320, %v3362
    %v3364 = vpop.f32.mrb[0].mxu0
    %v3365 = vadd.f32 %v3322, %v3364
    %v3366 = vpop.f32.mrb[0].mxu0
    %v3367 = vadd.f32 %v3324, %v3366
    %v3368 = vpop.f32.mrb[0].mxu0
    %v3369 = vadd.f32 %v3326, %v3368
    %3370 = vdwg.mxu0
    %3371 = vmatprep.subr.bf16.mxu0 %v2411
    %3372 = vmatpush1.bf16.msra.mxu0 %v2410
    %3373 = vmatprep.subr.bf16.mxu0 %v2415
    %3374 = vmatpush1.bf16.msra.mxu0 %v2414
    %3375 = vmatprep.subr.bf16.mxu0 %v2419
    %3376 = vmatpush1.bf16.msra.mxu0 %v2418
    %3377 = vmatprep.subr.bf16.mxu0 %v2423
    %3378 = vmatpush1.bf16.msra.mxu0 %v2422
    %3379 = vmatprep.subr.bf16.mxu0 %v2427
    %3380 = vmatpush1.bf16.msra.mxu0 %v2426
    %3381 = vmatprep.subr.bf16.mxu0 %v2431
    %3382 = vmatpush1.bf16.msra.mxu0 %v2430
    %3383 = vmatprep.subr.bf16.mxu0 %v2435
    %3384 = vmatpush1.bf16.msra.mxu0 %v2434
    %3385 = vmatprep.subr.bf16.mxu0 %v2439
    %3386 = vmatpush1.bf16.msra.mxu0 %v2438
    %3387 = vmatprep.subr.bf16.mxu0 %v2443
    %3388 = vmatpush1.bf16.msra.mxu0 %v2442
    %3389 = vmatprep.subr.bf16.mxu0 %v2447
    %3390 = vmatpush1.bf16.msra.mxu0 %v2446
    %3391 = vmatprep.subr.bf16.mxu0 %v2451
    %3392 = vmatpush1.bf16.msra.mxu0 %v2450
    %3393 = vmatprep.subr.bf16.mxu0 %v2455
    %3394 = vmatpush1.bf16.msra.mxu0 %v2454
    %3395 = vmatprep.subr.bf16.mxu0 %v2459
    %3396 = vmatpush1.bf16.msra.mxu0 %v2458
    %3397 = vmatprep.subr.bf16.mxu0 %v2463
    %3398 = vmatpush1.bf16.msra.mxu0 %v2462
    %3399 = vmatprep.subr.bf16.mxu0 %v2467
    %3400 = vmatpush1.bf16.msra.mxu0 %v2466
    %3401 = vmatprep.subr.bf16.mxu0 %v2471
    %3402 = vmatpush1.bf16.msra.mxu0 %v2470
    %3403 = vmatprep.mubr.bf16.mxu0 %v139
    %3404 = vmatmul.mubr.bf16.gmra.mrb[0].mxu0 %v138
    %v3405 = vpop.f32.mrb[0].mxu0
    %v3406 = vadd.f32 %v3363, %v3405
    %v3407 = vpop.f32.mrb[0].mxu0
    %v3408 = vadd.f32 %v3365, %v3407
    %v3409 = vpop.f32.mrb[0].mxu0
    %v3410 = vadd.f32 %v3367, %v3409
    %v3411 = vpop.f32.mrb[0].mxu0
    %v3412 = vadd.f32 %v3369, %v3411
    %3413 = vdwg.mxu0
    %3414 = vmatprep.subr.bf16.mxu0 %v2475
    %3415 = vmatpush1.bf16.msra.mxu0 %v2474
    %3416 = vmatprep.subr.bf16.mxu0 %v2479
    %3417 = vmatpush1.bf16.msra.mxu0 %v2478
    %3418 = vmatprep.subr.bf16.mxu0 %v2483
    %3419 = vmatpush1.bf16.msra.mxu0 %v2482
    %3420 = vmatprep.subr.bf16.mxu0 %v2487
    %3421 = vmatpush1.bf16.msra.mxu0 %v2486
    %3422 = vmatprep.subr.bf16.mxu0 %v2491
    %3423 = vmatpush1.bf16.msra.mxu0 %v2490
    %3424 = vmatprep.subr.bf16.mxu0 %v2495
    %3425 = vmatpush1.bf16.msra.mxu0 %v2494
    %3426 = vmatprep.subr.bf16.mxu0 %v2499
    %3427 = vmatpush1.bf16.msra.mxu0 %v2498
    %3428 = vmatprep.subr.bf16.mxu0 %v2503
    %3429 = vmatpush1.bf16.msra.mxu0 %v2502
    %3430 = vmatprep.subr.bf16.mxu0 %v2507
    %3431 = vmatpush1.bf16.msra.mxu0 %v2506
    %3432 = vmatprep.subr.bf16.mxu0 %v2511
    %3433 = vmatpush1.bf16.msra.mxu0 %v2510
    %3434 = vmatprep.subr.bf16.mxu0 %v2515
    %3435 = vmatpush1.bf16.msra.mxu0 %v2514
    %3436 = vmatprep.subr.bf16.mxu0 %v2519
    %3437 = vmatpush1.bf16.msra.mxu0 %v2518
    %3438 = vmatprep.subr.bf16.mxu0 %v2523
    %3439 = vmatpush1.bf16.msra.mxu0 %v2522
    %3440 = vmatprep.subr.bf16.mxu0 %v2527
    %3441 = vmatpush1.bf16.msra.mxu0 %v2526
    %3442 = vmatprep.subr.bf16.mxu0 %v2531
    %3443 = vmatpush1.bf16.msra.mxu0 %v2530
    %3444 = vmatprep.subr.bf16.mxu0 %v2535
    %3445 = vmatpush1.bf16.msra.mxu0 %v2534
    %3446 = vmatprep.mubr.bf16.mxu0 %v141
    %3447 = vmatmul.mubr.bf16.gmra.mrb[0].mxu0 %v140
    %v3448 = vpop.f32.mrb[0].mxu0
    %v3449 = vadd.f32 %v3406, %v3448
    %v3450 = vpop.f32.mrb[0].mxu0
    %v3451 = vadd.f32 %v3408, %v3450
    %v3452 = vpop.f32.mrb[0].mxu0
    %v3453 = vadd.f32 %v3410, %v3452
    %v3454 = vpop.f32.mrb[0].mxu0
    %v3455 = vadd.f32 %v3412, %v3454
    %3456 = vdwg.mxu0
    %3457 = vmatprep.subr.bf16.mxu0 %v2539
    %3458 = vmatpush1.bf16.msra.mxu0 %v2538
    %3459 = vmatprep.subr.bf16.mxu0 %v2543
    %3460 = vmatpush1.bf16.msra.mxu0 %v2542
    %3461 = vmatprep.subr.bf16.mxu0 %v2547
    %3462 = vmatpush1.bf16.msra.mxu0 %v2546
    %3463 = vmatprep.subr.bf16.mxu0 %v2551
    %3464 = vmatpush1.bf16.msra.mxu0 %v2550
    %3465 = vmatprep.subr.bf16.mxu0 %v2555
    %3466 = vmatpush1.bf16.msra.mxu0 %v2554
    %3467 = vmatprep.subr.bf16.mxu0 %v2559
    %3468 = vmatpush1.bf16.msra.mxu0 %v2558
    %3469 = vmatprep.subr.bf16.mxu0 %v2563
    %3470 = vmatpush1.bf16.msra.mxu0 %v2562
    %3471 = vmatprep.subr.bf16.mxu0 %v2567
    %3472 = vmatpush1.bf16.msra.mxu0 %v2566
    %3473 = vmatprep.subr.bf16.mxu0 %v2571
    %3474 = vmatpush1.bf16.msra.mxu0 %v2570
    %3475 = vmatprep.subr.bf16.mxu0 %v2575
    %3476 = vmatpush1.bf16.msra.mxu0 %v2574
    %3477 = vmatprep.subr.bf16.mxu0 %v2579
    %3478 = vmatpush1.bf16.msra.mxu0 %v2578
    %3479 = vmatprep.subr.bf16.mxu0 %v2583
    %3480 = vmatpush1.bf16.msra.mxu0 %v2582
    %3481 = vmatprep.subr.bf16.mxu0 %v2587
    %3482 = vmatpush1.bf16.msra.mxu0 %v2586
    %3483 = vmatprep.subr.bf16.mxu0 %v2591
    %3484 = vmatpush1.bf16.msra.mxu0 %v2590
    %3485 = vmatprep.subr.bf16.mxu0 %v2595
    %3486 = vmatpush1.bf16.msra.mxu0 %v2594
    %3487 = vmatprep.subr.bf16.mxu0 %v2599
    %3488 = vmatpush1.bf16.msra.mxu0 %v2598
    %3489 = vmatprep.mubr.bf16.mxu0 %v143
    %3490 = vmatmul.mubr.bf16.gmra.mrb[0].mxu0 %v142
    %v3491 = vpop.f32.mrb[0].mxu0
    %v3492 = vadd.f32 %v3449, %v3491
    %v3493 = vpop.f32.mrb[0].mxu0
    %v3494 = vadd.f32 %v3451, %v3493
    %v3495 = vpop.f32.mrb[0].mxu0
    %v3496 = vadd.f32 %v3453, %v3495
    %v3497 = vpop.f32.mrb[0].mxu0
    %v3498 = vadd.f32 %v3455, %v3497
    %3499 = vdwg.mxu0
    %3500 = vmatprep.subr.bf16.mxu0 %v2603
    %3501 = vmatpush1.bf16.msra.mxu0 %v2602
    %3502 = vmatprep.subr.bf16.mxu0 %v2607
    %3503 = vmatpush1.bf16.msra.mxu0 %v2606
    %3504 = vmatprep.subr.bf16.mxu0 %v2611
    %3505 = vmatpush1.bf16.msra.mxu0 %v2610
    %3506 = vmatprep.subr.bf16.mxu0 %v2615
    %3507 = vmatpush1.bf16.msra.mxu0 %v2614
    %3508 = vmatprep.subr.bf16.mxu0 %v2619
    %3509 = vmatpush1.bf16.msra.mxu0 %v2618
    %3510 = vmatprep.subr.bf16.mxu0 %v2623
    %3511 = vmatpush1.bf16.msra.mxu0 %v2622
    %3512 = vmatprep.subr.bf16.mxu0 %v2627
    %3513 = vmatpush1.bf16.msra.mxu0 %v2626
    %3514 = vmatprep.subr.bf16.mxu0 %v2631
    %3515 = vmatpush1.bf16.msra.mxu0 %v2630
    %3516 = vmatprep.subr.bf16.mxu0 %v2635
    %3517 = vmatpush1.bf16.msra.mxu0 %v2634
    %3518 = vmatprep.subr.bf16.mxu0 %v2639
    %3519 = vmatpush1.bf16.msra.mxu0 %v2638
    %3520 = vmatprep.subr.bf16.mxu0 %v2643
    %3521 = vmatpush1.bf16.msra.mxu0 %v2642
    %3522 = vmatprep.subr.bf16.mxu0 %v2647
    %3523 = vmatpush1.bf16.msra.mxu0 %v2646
    %3524 = vmatprep.subr.bf16.mxu0 %v2651
    %3525 = vmatpush1.bf16.msra.mxu0 %v2650
    %3526 = vmatprep.subr.bf16.mxu0 %v2655
    %3527 = vmatpush1.bf16.msra.mxu0 %v2654
    %3528 = vmatprep.subr.bf16.mxu0 %v2659
    %3529 = vmatpush1.bf16.msra.mxu0 %v2658
    %3530 = vmatprep.subr.bf16.mxu0 %v2663
    %3531 = vmatpush1.bf16.msra.mxu0 %v2662
    %3532 = vmatprep.mubr.bf16.mxu0 %v145
    %3533 = vmatmul.mubr.bf16.gmra.mrb[0].mxu0 %v144
    %v3534 = vpop.f32.mrb[0].mxu0
    %v3535 = vadd.f32 %v3492, %v3534
    %v3536 = vpop.f32.mrb[0].mxu0
    %v3537 = vadd.f32 %v3494, %v3536
    %v3538 = vpop.f32.mrb[0].mxu0
    %v3539 = vadd.f32 %v3496, %v3538
    %v3540 = vpop.f32.mrb[0].mxu0
    %v3541 = vadd.f32 %v3498, %v3540
    %3542 = vdwg.mxu0
    %3543 = vmatprep.subr.bf16.mxu0 %v2667
    %3544 = vmatpush1.bf16.msra.mxu0 %v2666
    %3545 = vmatprep.subr.bf16.mxu0 %v2671
    %3546 = vmatpush1.bf16.msra.mxu0 %v2670
    %3547 = vmatprep.subr.bf16.mxu0 %v2675
    %3548 = vmatpush1.bf16.msra.mxu0 %v2674
    %3549 = vmatprep.subr.bf16.mxu0 %v2679
    %3550 = vmatpush1.bf16.msra.mxu0 %v2678
    %3551 = vmatprep.subr.bf16.mxu0 %v2683
    %3552 = vmatpush1.bf16.msra.mxu0 %v2682
    %3553 = vmatprep.subr.bf16.mxu0 %v2687
    %3554 = vmatpush1.bf16.msra.mxu0 %v2686
    %3555 = vmatprep.subr.bf16.mxu0 %v2691
    %3556 = vmatpush1.bf16.msra.mxu0 %v2690
    %3557 = vmatprep.subr.bf16.mxu0 %v2695
    %3558 = vmatpush1.bf16.msra.mxu0 %v2694
    %3559 = vmatprep.subr.bf16.mxu0 %v2699
    %3560 = vmatpush1.bf16.msra.mxu0 %v2698
    %3561 = vmatprep.subr.bf16.mxu0 %v2703
    %3562 = vmatpush1.bf16.msra.mxu0 %v2702
    %3563 = vmatprep.subr.bf16.mxu0 %v2707
    %3564 = vmatpush1.bf16.msra.mxu0 %v2706
    %3565 = vmatprep.subr.bf16.mxu0 %v2711
    %3566 = vmatpush1.bf16.msra.mxu0 %v2710
    %3567 = vmatprep.subr.bf16.mxu0 %v2715
    %3568 = vmatpush1.bf16.msra.mxu0 %v2714
    %3569 = vmatprep.subr.bf16.mxu0 %v2719
    %3570 = vmatpush1.bf16.msra.mxu0 %v2718
    %3571 = vmatprep.subr.bf16.mxu0 %v2723
    %3572 = vmatpush1.bf16.msra.mxu0 %v2722
    %3573 = vmatprep.subr.bf16.mxu0 %v2727
    %3574 = vmatpush1.bf16.msra.mxu0 %v2726
    %3575 = vmatprep.mubr.bf16.mxu0 %v147
    %3576 = vmatmul.mubr.bf16.gmra.mrb[0].mxu0 %v146
    %v3577 = vpop.f32.mrb[0].mxu0
    %v3578 = vadd.f32 %v3535, %v3577
    %v3579 = vpop.f32.mrb[0].mxu0
    %v3580 = vadd.f32 %v3537, %v3579
    %v3581 = vpop.f32.mrb[0].mxu0
    %v3582 = vadd.f32 %v3539, %v3581
    %v3583 = vpop.f32.mrb[0].mxu0
    %v3584 = vadd.f32 %v3541, %v3583
    %3585 = vdwg.mxu0
    %3586 = vmatprep.subr.bf16.mxu0 %v2221
    %3587 = vmatpush1.bf16.msra.mxu0 %v2220
    %3588 = vmatprep.subr.bf16.mxu0 %v2225
    %3589 = vmatpush1.bf16.msra.mxu0 %v2224
    %3590 = vmatprep.subr.bf16.mxu0 %v2229
    %3591 = vmatpush1.bf16.msra.mxu0 %v2228
    %3592 = vmatprep.subr.bf16.mxu0 %v2233
    %3593 = vmatpush1.bf16.msra.mxu0 %v2232
    %3594 = vmatprep.subr.bf16.mxu0 %v2237
    %3595 = vmatpush1.bf16.msra.mxu0 %v2236
    %3596 = vmatprep.subr.bf16.mxu0 %v2241
    %3597 = vmatpush1.bf16.msra.mxu0 %v2240
    %3598 = vmatprep.subr.bf16.mxu0 %v2245
    %3599 = vmatpush1.bf16.msra.mxu0 %v2244
    %3600 = vmatprep.subr.bf16.mxu0 %v2249
    %3601 = vmatpush1.bf16.msra.mxu0 %v2248
    %3602 = vmatprep.subr.bf16.mxu0 %v2253
    %3603 = vmatpush1.bf16.msra.mxu0 %v2252
    %3604 = vmatprep.subr.bf16.mxu0 %v2257
    %3605 = vmatpush1.bf16.msra.mxu0 %v2256
    %3606 = vmatprep.subr.bf16.mxu0 %v2261
    %3607 = vmatpush1.bf16.msra.mxu0 %v2260
    %3608 = vmatprep.subr.bf16.mxu0 %v2265
    %3609 = vmatpush1.bf16.msra.mxu0 %v2264
    %3610 = vmatprep.subr.bf16.mxu0 %v2269
    %3611 = vmatpush1.bf16.msra.mxu0 %v2268
    %3612 = vmatprep.subr.bf16.mxu0 %v2273
    %3613 = vmatpush1.bf16.msra.mxu0 %v2272
    %3614 = vmatprep.subr.bf16.mxu0 %v2277
    %3615 = vmatpush1.bf16.msra.mxu0 %v2276
    %3616 = vmatprep.subr.bf16.mxu0 %v2281
    %3617 = vmatpush1.bf16.msra.mxu0 %v2280
    %3618 = vmatprep.mubr.bf16.mxu0 %v133
    %3619 = vmatmul.mubr.bf16.gmra.mrb[0].mxu0 %v132
    %v3620 = vpop.f32.mrb[0].mxu0
    %v3621 = vadd.f32 %v673, %v3620
    %v3622 = vpop.f32.mrb[0].mxu0
    %v3623 = vadd.f32 %v677, %v3622
    %v3624 = vpop.f32.mrb[0].mxu0
    %v3625 = vadd.f32 %v673, %v3624
    %v3626 = vpop.f32.mrb[0].mxu0
    %v3627 = vadd.f32 %v677, %v3626
    %3628 = vdwg.mxu0
    %3629 = vmatprep.subr.bf16.mxu0 %v2285
    %3630 = vmatpush1.bf16.msra.mxu0 %v2284
    %3631 = vmatprep.subr.bf16.mxu0 %v2289
    %3632 = vmatpush1.bf16.msra.mxu0 %v2288
    %3633 = vmatprep.subr.bf16.mxu0 %v2293
    %3634 = vmatpush1.bf16.msra.mxu0 %v2292
    %3635 = vmatprep.subr.bf16.mxu0 %v2297
    %3636 = vmatpush1.bf16.msra.mxu0 %v2296
    %3637 = vmatprep.subr.bf16.mxu0 %v2301
    %3638 = vmatpush1.bf16.msra.mxu0 %v2300
    %3639 = vmatprep.subr.bf16.mxu0 %v2305
    %3640 = vmatpush1.bf16.msra.mxu0 %v2304
    %3641 = vmatprep.subr.bf16.mxu0 %v2309
    %3642 = vmatpush1.bf16.msra.mxu0 %v2308
    %3643 = vmatprep.subr.bf16.mxu0 %v2313
    %3644 = vmatpush1.bf16.msra.mxu0 %v2312
    %3645 = vmatprep.subr.bf16.mxu0 %v2317
    %3646 = vmatpush1.bf16.msra.mxu0 %v2316
    %3647 = vmatprep.subr.bf16.mxu0 %v2321
    %3648 = vmatpush1.bf16.msra.mxu0 %v2320
    %3649 = vmatprep.subr.bf16.mxu0 %v2325
    %3650 = vmatpush1.bf16.msra.mxu0 %v2324
    %3651 = vmatprep.subr.bf16.mxu0 %v2329
    %3652 = vmatpush1.bf16.msra.mxu0 %v2328
    %3653 = vmatprep.subr.bf16.mxu0 %v2333
    %3654 = vmatpush1.bf16.msra.mxu0 %v2332
    %3655 = vmatprep.subr.bf16.mxu0 %v2337
    %3656 = vmatpush1.bf16.msra.mxu0 %v2336
    %3657 = vmatprep.subr.bf16.mxu0 %v2341
    %3658 = vmatpush1.bf16.msra.mxu0 %v2340
    %3659 = vmatprep.subr.bf16.mxu0 %v2345
    %3660 = vmatpush1.bf16.msra.mxu0 %v2344
    %3661 = vmatprep.mubr.bf16.mxu0 %v135
    %3662 = vmatmul.mubr.bf16.gmra.mrb[0].mxu0 %v134
    %v3663 = vpop.f32.mrb[0].mxu0
    %v3664 = vadd.f32 %v3621, %v3663
    %v3665 = vpop.f32.mrb[0].mxu0
    %v3666 = vadd.f32 %v3623, %v3665
    %v3667 = vpop.f32.mrb[0].mxu0
    %v3668 = vadd.f32 %v3625, %v3667
    %v3669 = vpop.f32.mrb[0].mxu0
    %v3670 = vadd.f32 %v3627, %v3669
    %3671 = vdwg.mxu0
    %3672 = vmatprep.subr.bf16.mxu0 %v2349
    %3673 = vmatpush1.bf16.msra.mxu0 %v2348
    %3674 = vmatprep.subr.bf16.mxu0 %v2353
    %3675 = vmatpush1.bf16.msra.mxu0 %v2352
    %3676 = vmatprep.subr.bf16.mxu0 %v2357
    %3677 = vmatpush1.bf16.msra.mxu0 %v2356
    %3678 = vmatprep.subr.bf16.mxu0 %v2361
    %3679 = vmatpush1.bf16.msra.mxu0 %v2360
    %3680 = vmatprep.subr.bf16.mxu0 %v2365
    %3681 = vmatpush1.bf16.msra.mxu0 %v2364
    %3682 = vmatprep.subr.bf16.mxu0 %v2369
    %3683 = vmatpush1.bf16.msra.mxu0 %v2368
    %3684 = vmatprep.subr.bf16.mxu0 %v2373
    %3685 = vmatpush1.bf16.msra.mxu0 %v2372
    %3686 = vmatprep.subr.bf16.mxu0 %v2377
    %3687 = vmatpush1.bf16.msra.mxu0 %v2376
    %3688 = vmatprep.subr.bf16.mxu0 %v2381
    %3689 = vmatpush1.bf16.msra.mxu0 %v2380
    %3690 = vmatprep.subr.bf16.mxu0 %v2385
    %3691 = vmatpush1.bf16.msra.mxu0 %v2384
    %3692 = vmatprep.subr.bf16.mxu0 %v2389
    %3693 = vmatpush1.bf16.msra.mxu0 %v2388
    %3694 = vmatprep.subr.bf16.mxu0 %v2393
    %3695 = vmatpush1.bf16.msra.mxu0 %v2392
    %3696 = vmatprep.subr.bf16.mxu0 %v2397
    %3697 = vmatpush1.bf16.msra.mxu0 %v2396
    %3698 = vmatprep.subr.bf16.mxu0 %v2401
    %3699 = vmatpush1.bf16.msra.mxu0 %v2400
    %3700 = vmatprep.subr.bf16.mxu0 %v2405
    %3701 = vmatpush1.bf16.msra.mxu0 %v2404
    %3702 = vmatprep.subr.bf16.mxu0 %v2409
    %3703 = vmatpush1.bf16.msra.mxu0 %v2408
    %3704 = vmatprep.mubr.bf16.mxu0 %v137
    %3705 = vmatmul.mubr.bf16.gmra.mrb[0].mxu0 %v136
    %v3706 = vpop.f32.mrb[0].mxu0
    %v3707 = vadd.f32 %v3664, %v3706
    %v3708 = vpop.f32.mrb[0].mxu0
    %v3709 = vadd.f32 %v3666, %v3708
    %v3710 = vpop.f32.mrb[0].mxu0
    %v3711 = vadd.f32 %v3668, %v3710
    %v3712 = vpop.f32.mrb[0].mxu0
    %v3713 = vadd.f32 %v3670, %v3712
    %3714 = vdwg.mxu0
    %3715 = vmatprep.subr.bf16.mxu0 %v2413
    %3716 = vmatpush1.bf16.msra.mxu0 %v2412
    %3717 = vmatprep.subr.bf16.mxu0 %v2417
    %3718 = vmatpush1.bf16.msra.mxu0 %v2416
    %3719 = vmatprep.subr.bf16.mxu0 %v2421
    %3720 = vmatpush1.bf16.msra.mxu0 %v2420
    %3721 = vmatprep.subr.bf16.mxu0 %v2425
    %3722 = vmatpush1.bf16.msra.mxu0 %v2424
    %3723 = vmatprep.subr.bf16.mxu0 %v2429
    %3724 = vmatpush1.bf16.msra.mxu0 %v2428
    %3725 = vmatprep.subr.bf16.mxu0 %v2433
    %3726 = vmatpush1.bf16.msra.mxu0 %v2432
    %3727 = vmatprep.subr.bf16.mxu0 %v2437
    %3728 = vmatpush1.bf16.msra.mxu0 %v2436
    %3729 = vmatprep.subr.bf16.mxu0 %v2441
    %3730 = vmatpush1.bf16.msra.mxu0 %v2440
    %3731 = vmatprep.subr.bf16.mxu0 %v2445
    %3732 = vmatpush1.bf16.msra.mxu0 %v2444
    %3733 = vmatprep.subr.bf16.mxu0 %v2449
    %3734 = vmatpush1.bf16.msra.mxu0 %v2448
    %3735 = vmatprep.subr.bf16.mxu0 %v2453
    %3736 = vmatpush1.bf16.msra.mxu0 %v2452
    %3737 = vmatprep.subr.bf16.mxu0 %v2457
    %3738 = vmatpush1.bf16.msra.mxu0 %v2456
    %3739 = vmatprep.subr.bf16.mxu0 %v2461
    %3740 = vmatpush1.bf16.msra.mxu0 %v2460
    %3741 = vmatprep.subr.bf16.mxu0 %v2465
    %3742 = vmatpush1.bf16.msra.mxu0 %v2464
    %3743 = vmatprep.subr.bf16.mxu0 %v2469
    %3744 = vmatpush1.bf16.msra.mxu0 %v2468
    %3745 = vmatprep.subr.bf16.mxu0 %v2473
    %3746 = vmatpush1.bf16.msra.mxu0 %v2472
    %3747 = vmatprep.mubr.bf16.mxu0 %v139
    %3748 = vmatmul.mubr.bf16.gmra.mrb[0].mxu0 %v138
    %v3749 = vpop.f32.mrb[0].mxu0
    %v3750 = vadd.f32 %v3707, %v3749
    %v3751 = vpop.f32.mrb[0].mxu0
    %v3752 = vadd.f32 %v3709, %v3751
    %v3753 = vpop.f32.mrb[0].mxu0
    %v3754 = vadd.f32 %v3711, %v3753
    %v3755 = vpop.f32.mrb[0].mxu0
    %v3756 = vadd.f32 %v3713, %v3755
    %3757 = vdwg.mxu0
    %3758 = vmatprep.subr.bf16.mxu0 %v2477
    %3759 = vmatpush1.bf16.msra.mxu0 %v2476
    %3760 = vmatprep.subr.bf16.mxu0 %v2481
    %3761 = vmatpush1.bf16.msra.mxu0 %v2480
    %3762 = vmatprep.subr.bf16.mxu0 %v2485
    %3763 = vmatpush1.bf16.msra.mxu0 %v2484
    %3764 = vmatprep.subr.bf16.mxu0 %v2489
    %3765 = vmatpush1.bf16.msra.mxu0 %v2488
    %3766 = vmatprep.subr.bf16.mxu0 %v2493
    %3767 = vmatpush1.bf16.msra.mxu0 %v2492
    %3768 = vmatprep.subr.bf16.mxu0 %v2497
    %3769 = vmatpush1.bf16.msra.mxu0 %v2496
    %3770 = vmatprep.subr.bf16.mxu0 %v2501
    %3771 = vmatpush1.bf16.msra.mxu0 %v2500
    %3772 = vmatprep.subr.bf16.mxu0 %v2505
    %3773 = vmatpush1.bf16.msra.mxu0 %v2504
    %3774 = vmatprep.subr.bf16.mxu0 %v2509
    %3775 = vmatpush1.bf16.msra.mxu0 %v2508
    %3776 = vmatprep.subr.bf16.mxu0 %v2513
    %3777 = vmatpush1.bf16.msra.mxu0 %v2512
    %3778 = vmatprep.subr.bf16.mxu0 %v2517
    %3779 = vmatpush1.bf16.msra.mxu0 %v2516
    %3780 = vmatprep.subr.bf16.mxu0 %v2521
    %3781 = vmatpush1.bf16.msra.mxu0 %v2520
    %3782 = vmatprep.subr.bf16.mxu0 %v2525
    %3783 = vmatpush1.bf16.msra.mxu0 %v2524
    %3784 = vmatprep.subr.bf16.mxu0 %v2529
    %3785 = vmatpush1.bf16.msra.mxu0 %v2528
    %3786 = vmatprep.subr.bf16.mxu0 %v2533
    %3787 = vmatpush1.bf16.msra.mxu0 %v2532
    %3788 = vmatprep.subr.bf16.mxu0 %v2537
    %3789 = vmatpush1.bf16.msra.mxu0 %v2536
    %3790 = vmatprep.mubr.bf16.mxu0 %v141
    %3791 = vmatmul.mubr.bf16.gmra.mrb[0].mxu0 %v140
    %v3792 = vpop.f32.mrb[0].mxu0
    %v3793 = vadd.f32 %v3750, %v3792
    %v3794 = vpop.f32.mrb[0].mxu0
    %v3795 = vadd.f32 %v3752, %v3794
    %v3796 = vpop.f32.mrb[0].mxu0
    %v3797 = vadd.f32 %v3754, %v3796
    %v3798 = vpop.f32.mrb[0].mxu0
    %v3799 = vadd.f32 %v3756, %v3798
    %3800 = vdwg.mxu0
    %3801 = vmatprep.subr.bf16.mxu0 %v2541
    %3802 = vmatpush1.bf16.msra.mxu0 %v2540
    %3803 = vmatprep.subr.bf16.mxu0 %v2545
    %3804 = vmatpush1.bf16.msra.mxu0 %v2544
    %3805 = vmatprep.subr.bf16.mxu0 %v2549
    %3806 = vmatpush1.bf16.msra.mxu0 %v2548
    %3807 = vmatprep.subr.bf16.mxu0 %v2553
    %3808 = vmatpush1.bf16.msra.mxu0 %v2552
    %3809 = vmatprep.subr.bf16.mxu0 %v2557
    %3810 = vmatpush1.bf16.msra.mxu0 %v2556
    %3811 = vmatprep.subr.bf16.mxu0 %v2561
    %3812 = vmatpush1.bf16.msra.mxu0 %v2560
    %3813 = vmatprep.subr.bf16.mxu0 %v2565
    %3814 = vmatpush1.bf16.msra.mxu0 %v2564
    %3815 = vmatprep.subr.bf16.mxu0 %v2569
    %3816 = vmatpush1.bf16.msra.mxu0 %v2568
    %3817 = vmatprep.subr.bf16.mxu0 %v2573
    %3818 = vmatpush1.bf16.msra.mxu0 %v2572
    %3819 = vmatprep.subr.bf16.mxu0 %v2577
    %3820 = vmatpush1.bf16.msra.mxu0 %v2576
    %3821 = vmatprep.subr.bf16.mxu0 %v2581
    %3822 = vmatpush1.bf16.msra.mxu0 %v2580
    %3823 = vmatprep.subr.bf16.mxu0 %v2585
    %3824 = vmatpush1.bf16.msra.mxu0 %v2584
    %3825 = vmatprep.subr.bf16.mxu0 %v2589
    %3826 = vmatpush1.bf16.msra.mxu0 %v2588
    %3827 = vmatprep.subr.bf16.mxu0 %v2593
    %3828 = vmatpush1.bf16.msra.mxu0 %v2592
    %3829 = vmatprep.subr.bf16.mxu0 %v2597
    %3830 = vmatpush1.bf16.msra.mxu0 %v2596
    %3831 = vmatprep.subr.bf16.mxu0 %v2601
    %3832 = vmatpush1.bf16.msra.mxu0 %v2600
    %3833 = vmatprep.mubr.bf16.mxu0 %v143
    %3834 = vmatmul.mubr.bf16.gmra.mrb[0].mxu0 %v142
    %v3835 = vpop.f32.mrb[0].mxu0
    %v3836 = vadd.f32 %v3793, %v3835
    %v3837 = vpop.f32.mrb[0].mxu0
    %v3838 = vadd.f32 %v3795, %v3837
    %v3839 = vpop.f32.mrb[0].mxu0
    %v3840 = vadd.f32 %v3797, %v3839
    %v3841 = vpop.f32.mrb[0].mxu0
    %v3842 = vadd.f32 %v3799, %v3841
    %3843 = vdwg.mxu0
    %3844 = vmatprep.subr.bf16.mxu0 %v2605
    %3845 = vmatpush1.bf16.msra.mxu0 %v2604
    %3846 = vmatprep.subr.bf16.mxu0 %v2609
    %3847 = vmatpush1.bf16.msra.mxu0 %v2608
    %3848 = vmatprep.subr.bf16.mxu0 %v2613
    %3849 = vmatpush1.bf16.msra.mxu0 %v2612
    %3850 = vmatprep.subr.bf16.mxu0 %v2617
    %3851 = vmatpush1.bf16.msra.mxu0 %v2616
    %3852 = vmatprep.subr.bf16.mxu0 %v2621
    %3853 = vmatpush1.bf16.msra.mxu0 %v2620
    %3854 = vmatprep.subr.bf16.mxu0 %v2625
    %3855 = vmatpush1.bf16.msra.mxu0 %v2624
    %3856 = vmatprep.subr.bf16.mxu0 %v2629
    %3857 = vmatpush1.bf16.msra.mxu0 %v2628
    %3858 = vmatprep.subr.bf16.mxu0 %v2633
    %3859 = vmatpush1.bf16.msra.mxu0 %v2632
    %3860 = vmatprep.subr.bf16.mxu0 %v2637
    %3861 = vmatpush1.bf16.msra.mxu0 %v2636
    %3862 = vmatprep.subr.bf16.mxu0 %v2641
    %3863 = vmatpush1.bf16.msra.mxu0 %v2640
    %3864 = vmatprep.subr.bf16.mxu0 %v2645
    %3865 = vmatpush1.bf16.msra.mxu0 %v2644
    %3866 = vmatprep.subr.bf16.mxu0 %v2649
    %3867 = vmatpush1.bf16.msra.mxu0 %v2648
    %3868 = vmatprep.subr.bf16.mxu0 %v2653
    %3869 = vmatpush1.bf16.msra.mxu0 %v2652
    %3870 = vmatprep.subr.bf16.mxu0 %v2657
    %3871 = vmatpush1.bf16.msra.mxu0 %v2656
    %3872 = vmatprep.subr.bf16.mxu0 %v2661
    %3873 = vmatpush1.bf16.msra.mxu0 %v2660
    %3874 = vmatprep.subr.bf16.mxu0 %v2665
    %3875 = vmatpush1.bf16.msra.mxu0 %v2664
    %3876 = vmatprep.mubr.bf16.mxu0 %v145
    %3877 = vmatmul.mubr.bf16.gmra.mrb[0].mxu0 %v144
    %v3878 = vpop.f32.mrb[0].mxu0
    %v3879 = vadd.f32 %v3836, %v3878
    %v3880 = vpop.f32.mrb[0].mxu0
    %v3881 = vadd.f32 %v3838, %v3880
    %v3882 = vpop.f32.mrb[0].mxu0
    %v3883 = vadd.f32 %v3840, %v3882
    %v3884 = vpop.f32.mrb[0].mxu0
    %v3885 = vadd.f32 %v3842, %v3884
    %3886 = vdwg.mxu0
    %3887 = vmatprep.subr.bf16.mxu0 %v2669
    %3888 = vmatpush1.bf16.msra.mxu0 %v2668
    %3889 = vmatprep.subr.bf16.mxu0 %v2673
    %3890 = vmatpush1.bf16.msra.mxu0 %v2672
    %3891 = vmatprep.subr.bf16.mxu0 %v2677
    %3892 = vmatpush1.bf16.msra.mxu0 %v2676
    %3893 = vmatprep.subr.bf16.mxu0 %v2681
    %3894 = vmatpush1.bf16.msra.mxu0 %v2680
    %3895 = vmatprep.subr.bf16.mxu0 %v2685
    %3896 = vmatpush1.bf16.msra.mxu0 %v2684
    %3897 = vmatprep.subr.bf16.mxu0 %v2689
    %3898 = vmatpush1.bf16.msra.mxu0 %v2688
    %3899 = vmatprep.subr.bf16.mxu0 %v2693
    %3900 = vmatpush1.bf16.msra.mxu0 %v2692
    %3901 = vmatprep.subr.bf16.mxu0 %v2697
    %3902 = vmatpush1.bf16.msra.mxu0 %v2696
    %3903 = vmatprep.subr.bf16.mxu0 %v2701
    %3904 = vmatpush1.bf16.msra.mxu0 %v2700
    %3905 = vmatprep.subr.bf16.mxu0 %v2705
    %3906 = vmatpush1.bf16.msra.mxu0 %v2704
    %3907 = vmatprep.subr.bf16.mxu0 %v2709
    %3908 = vmatpush1.bf16.msra.mxu0 %v2708
    %3909 = vmatprep.subr.bf16.mxu0 %v2713
    %3910 = vmatpush1.bf16.msra.mxu0 %v2712
    %3911 = vmatprep.subr.bf16.mxu0 %v2717
    %3912 = vmatpush1.bf16.msra.mxu0 %v2716
    %3913 = vmatprep.subr.bf16.mxu0 %v2721
    %3914 = vmatpush1.bf16.msra.mxu0 %v2720
    %3915 = vmatprep.subr.bf16.mxu0 %v2725
    %3916 = vmatpush1.bf16.msra.mxu0 %v2724
    %3917 = vmatprep.subr.bf16.mxu0 %v2729
    %3918 = vmatpush1.bf16.msra.mxu0 %v2728
    %3919 = vmatprep.mubr.bf16.mxu0 %v147
    %3920 = vmatmul.mubr.bf16.gmra.mrb[0].mxu0 %v146
    %v3921 = vpop.f32.mrb[0].mxu0
    %v3922 = vadd.f32 %v3879, %v3921
    %v3923 = vpop.f32.mrb[0].mxu0
    %v3924 = vadd.f32 %v3881, %v3923
    %v3925 = vpop.f32.mrb[0].mxu0
    %v3926 = vadd.f32 %v3883, %v3925
    %v3927 = vpop.f32.mrb[0].mxu0
    %v3928 = vadd.f32 %v3885, %v3927
    %3929 = vdwg.mxu0
    %v3930 = vld [vmem:[#allocation11] sm:$0xff]
    %v3931 = vld [vmem:[#allocation11 + $0x8] sm:$0xff]
    %v3932 = vld [vmem:[#allocation11 + $0x10] sm:$0xff]
    %v3933 = vld [vmem:[#allocation11 + $0x18] sm:$0xff]
    %v3934 = vld [vmem:[#allocation11 + $0x20] sm:$0xff]
    %v3935 = vld [vmem:[#allocation11 + $0x28] sm:$0xff]
    %v3936 = vld [vmem:[#allocation11 + $0x30] sm:$0xff]
    %v3937 = vld [vmem:[#allocation11 + $0x38] sm:$0xff]
    %v3938 = vadd.f32 %v3578, %v3930
    %v3939 = vadd.f32 %v3580, %v3931
    %v3940 = vadd.f32 %v3922, %v3932
    %v3941 = vadd.f32 %v3924, %v3933
    %v3942 = vadd.f32 %v3582, %v3934
    %v3943 = vadd.f32 %v3584, %v3935
    %v3944 = vadd.f32 %v3926, %v3936
    %v3945 = vadd.f32 %v3928, %v3937
    %v3946 = vadd.f32 %v3938, %v3939
    %v3947 = vadd.f32 %v3946, %v3940
    %v3948 = vadd.f32 %v3947, %v3941
    %3949 = vadd.xlane.f32.xlu0 %v3948
    %v3950 = vpop.xlane.xlu0 %3949
    %v3951 = vadd.f32 %v3942, %v3943
    %v3952 = vadd.f32 %v3951, %v3944
    %v3953 = vadd.f32 %v3952, %v3945
    %3954 = vadd.xlane.f32.xlu0 %v3953
    %v3955 = vpop.xlane.xlu0 %3954
    %v3956 = vrcp.pop 512.0
    %v3957 = vmul.f32 %v3950, %v3956
    %v3958 = vmul.f32 %v3955, %v3956
    %v3959 = vsub.f32 %v3938, %v3957
    %v3960 = vsub.f32 %v3939, %v3957
    %v3961 = vsub.f32 %v3940, %v3957
    %v3962 = vsub.f32 %v3941, %v3957
    %v3963 = vsub.f32 %v3942, %v3958
    %v3964 = vsub.f32 %v3943, %v3958
    %v3965 = vsub.f32 %v3944, %v3958
    %v3966 = vsub.f32 %v3945, %v3958
    %v3967 = vmul.f32 %v3959, %v3959
    %v3968 = vmul.f32 %v3960, %v3960
    %v3969 = vmul.f32 %v3961, %v3961
    %v3970 = vmul.f32 %v3962, %v3962
    %v3971 = vmul.f32 %v3963, %v3963
    %v3972 = vmul.f32 %v3964, %v3964
    %v3973 = vmul.f32 %v3965, %v3965
    %v3974 = vmul.f32 %v3966, %v3966
    %v3975 = vadd.f32 %v3967, %v3968
    %v3976 = vadd.f32 %v3975, %v3969
    %v3977 = vadd.f32 %v3976, %v3970
    %3978 = vadd.xlane.f32.xlu0 %v3977
    %v3979 = vpop.xlane.xlu0 %3978
    %v3980 = vadd.f32 %v3971, %v3972
    %v3981 = vadd.f32 %v3980, %v3973
    %v3982 = vadd.f32 %v3981, %v3974
    %3983 = vadd.xlane.f32.xlu0 %v3982
    %v3984 = vpop.xlane.xlu0 %3983
    %v3985 = vmul.f32 %v3979, %v3956
    %v3986 = vmul.f32 %v3984, %v3956
    %v3987 = vadd.f32 %v3985, 1e-12
    %v3988 = vadd.f32 %v3986, 1e-12
    %v3989 = vrsqrt.pop %v3987
    %v3990 = vrsqrt.pop %v3988
    %v3991 = vmul.f32 %v3959, %v3989
    %v3992 = vmul.f32 %v3960, %v3989
    %v3993 = vmul.f32 %v3961, %v3989
    %v3994 = vmul.f32 %v3962, %v3989
    %v3995 = vmul.f32 %v3963, %v3990
    %v3996 = vmul.f32 %v3964, %v3990
    %v3997 = vmul.f32 %v3965, %v3990
    %v3998 = vmul.f32 %v3966, %v3990
    %v3999 = vld [vmem:[#allocation8] sm:$0xf]
    %v4001 = vlaneseq
    %v4002 = vshrl.u32 %v4001, 7
    %v4003 = vsub.s32 0, %v4002
    %v4004 = vrot.slane %v3999, %v4003
    %v4005 = vlaneseq
    %v4006 = vshrl.u32 %v4005, 7
    %v4007 = vsub.s32 1, %v4006
    %v4008 = vrot.slane %v3999, %v4007
    %v4009 = vlaneseq
    %v4010 = vshrl.u32 %v4009, 7
    %v4011 = vsub.s32 2, %v4010
    %v4012 = vrot.slane %v3999, %v4011
    %v4013 = vlaneseq
    %v4014 = vshrl.u32 %v4013, 7
    %v4015 = vsub.s32 3, %v4014
    %v4016 = vrot.slane %v3999, %v4015
    %v4021 = vmul.f32 %v4004, %v3991
    %v4022 = vmul.f32 %v4008, %v3992
    %v4023 = vmul.f32 %v4012, %v3993
    %v4024 = vmul.f32 %v4016, %v3994
    %v4025 = vmul.f32 %v4004, %v3995
    %v4026 = vmul.f32 %v4008, %v3996
    %v4027 = vmul.f32 %v4012, %v3997
    %v4028 = vmul.f32 %v4016, %v3998
    %v4029 = vld [vmem:[#allocation10] sm:$0xf]
    %v4031 = vlaneseq
    %v4032 = vshrl.u32 %v4031, 7
    %v4033 = vsub.s32 0, %v4032
    %v4034 = vrot.slane %v4029, %v4033
    %v4035 = vlaneseq
    %v4036 = vshrl.u32 %v4035, 7
    %v4037 = vsub.s32 1, %v4036
    %v4038 = vrot.slane %v4029, %v4037
    %v4039 = vlaneseq
    %v4040 = vshrl.u32 %v4039, 7
    %v4041 = vsub.s32 2, %v4040
    %v4042 = vrot.slane %v4029, %v4041
    %v4043 = vlaneseq
    %v4044 = vshrl.u32 %v4043, 7
    %v4045 = vsub.s32 3, %v4044
    %v4046 = vrot.slane %v4029, %v4045
    %v4051 = vadd.f32 %v4021, %v4034
    %v4052 = vadd.f32 %v4022, %v4038
    %v4053 = vadd.f32 %v4023, %v4042
    %v4054 = vadd.f32 %v4024, %v4046
    %v4055 = vadd.f32 %v4025, %v4034
    %v4056 = vadd.f32 %v4026, %v4038
    %v4057 = vadd.f32 %v4027, %v4042
    %v4058 = vadd.f32 %v4028, %v4046
    %v4059 = vpack.c.bf16 %v4055, %v4051
    %v4060 = vpack.c.bf16 %v4056, %v4052
    %v4061 = vpack.c.bf16 %v4057, %v4053
    %v4062 = vpack.c.bf16 %v4058, %v4054
    %v4067 = vunpack.c.l.b16 %v4059
    %v4068 = vunpack.c.l.b16 %v4060
    %v4069 = vunpack.c.l.b16 %v4061
    %v4070 = vunpack.c.l.b16 %v4062
    %v4071 = vunpack.c.h.b16 %v4059
    %v4072 = vunpack.c.h.b16 %v4060
    %v4073 = vunpack.c.h.b16 %v4061
    %v4074 = vunpack.c.h.b16 %v4062
    %v4075 = vpack.c.b16 %v4068, %v4067
    %v4076 = vpack.c.b16 %v4070, %v4069
    %v4077 = vpack.c.b16 %v4072, %v4071
    %v4078 = vpack.c.b16 %v4074, %v4073
    %4083 = vst [vmem:[#allocation13] sm:$0xff] %v4075
    %4084 = vst [vmem:[#allocation13 + $0x8] sm:$0xff] %v4076
    %4085 = vst [vmem:[#allocation13 + $0x10] sm:$0xff] %v4077
    %4086 = vst [vmem:[#allocation13 + $0x18] sm:$0xff] %v4078
    // Predicated region
    $region50: #{tpu_custom_call.1} parent=1 // pred_check
      _
    $region51: #{tpu_custom_call.1} parent=1 // pred_check_branch
      %4088 = sbr.rel (0) target = $region53
    $region52: #{tpu_custom_call.1} parent=1 // pred_region
      %s4090 = ssub.s32 512, 512
      %4091 = vsyncadd [#allocation4], %s4090
      %s4092 = sshll.u32 [#allocation13], 4
      %s4093 = int_to_ptr.vmem [resolvable:$true] %s4092
      %4098 = dma.vmem_to_hbm [thread:$0]  %s4093, 512, %s6, [#allocation4], 256, 256, 16
    $region53: #{tpu_custom_call.1} parent=1 // pred_fallthru
      _
    // Predicated region
    $region54: #{tpu_custom_call.1} parent=1 // pred_check
      _
    $region55: #{tpu_custom_call.1} parent=1 // pred_check_branch
      %4100 = sbr.rel (0) target = $region57
    $region56: #{tpu_custom_call.1} parent=1 // pred_region
      %4101 = dma.done [#allocation4], 512
    $region57: #{tpu_custom_call.1} parent=1 // pred_fallthru
      _
    %4102 = vsyncpa [#allocation3], 1
    %4103 = vsyncpa [#allocation6], 1
    %4104 = vsyncpa [#allocation9], 1
    %4105 = vsyncpa [#allocation12], 1
    %4106 = vsyncpa [#allocation4], 1

</llo_original>
